<compile_context>
chip_gen: v7x
topology: tpu7x:2x2x1
jax: 0.10.0
libtpu: 0.0.40
codegen_flags: <defaults>
</compile_context>

<pallas_src>
import functools
import math

import jax
import jax.numpy as jnp
from jax.experimental import pallas as pl
from jax.experimental.pallas import tpu as pltpu


# --------------------------------------------------------------------------
# helpers
# --------------------------------------------------------------------------
def _round_up(x, m):
    return ((x + m - 1) // m) * m


def _pick_k_tile(n, target=256, align=128):
    """Pad n to a 128-aligned size and choose a k tile that divides it."""
    npad = _round_up(n, align)
    if npad >= target:
        tile = target
        npad = _round_up(npad, tile)
    else:
        tile = npad
    return npad, tile


def _pick_x_tile(nx, ncp):
    """Choose an image-row tile so the MXU sees M = ncp*tx in ~[128, 512]."""
    tgt = max(8, min(64, _round_up(max(1, 256 // ncp), 8)))
    nx8 = _round_up(nx, 8)
    if nx8 <= tgt:
        return nx8, nx8
    return _round_up(nx8, tgt), tgt


# --------------------------------------------------------------------------
# Fused adjoint NUFFT kernel
#   grid = (Nxp//tx, Kp//tk)   (x-tiles parallel, k-sample reduction last)
#   per step:
#     Ex (tx,tk), Ey (tk,Nyp) separable DFT factors (f32 cos/sin),
#     U[c*tx+x, k] = W[c,k]*Ex[x,k]  (VPU, then bf16),
#     acc (Ncp*tx, Nyp) += U @ Ey    (MXU, bf16 in / f32 acc),
#   epilogue: fused conj(S) coil combine via a (tx, Ncp*tx) selection matmul.
# --------------------------------------------------------------------------
def _adj_nufft_kernel(wr_ref, wi_ref, kx_ref, ky_ref, gx_ref, gy_ref,
                      sr_ref, si_ref, xsel_ref, or_ref, oi_ref,
                      accr, acci, *, scale):
    k = pl.program_id(1)

    @pl.when(k == 0)
    def _():
        accr[...] = jnp.zeros_like(accr)
        acci[...] = jnp.zeros_like(acci)

    ncp, tx, nyp = sr_ref.shape
    tk = kx_ref.shape[1]

    # Separable DFT factors (transcendentals stay in f32).
    phx = gx_ref[...] * kx_ref[...]                       # (tx,1)*(1,tk) -> (tx,tk)
    exr = jnp.cos(phx)
    exi = jnp.sin(phx)
    phy = ky_ref[...] * gy_ref[...]                       # (tk,1)*(1,Nyp) -> (tk,Nyp)
    eyr = jnp.cos(phy).astype(jnp.bfloat16)
    eyi = jnp.sin(phy).astype(jnp.bfloat16)

    # U[c,x,k] = W[c,k] * Ex[x,k]   (complex, f32), flatten to (Ncp*tx, tk) bf16.
    wr3 = wr_ref[...][:, None, :]                         # (Ncp,1,tk)
    wi3 = wi_ref[...][:, None, :]
    ex3r = exr[None, :, :]                                # (1,tx,tk)
    ex3i = exi[None, :, :]
    ur = (wr3 * ex3r - wi3 * ex3i).reshape(ncp * tx, tk).astype(jnp.bfloat16)
    ui = (wr3 * ex3i + wi3 * ex3r).reshape(ncp * tx, tk).astype(jnp.bfloat16)

    # acc[c*tx+x, y] += sum_k U * Ey   (complex)
    accr[...] += (jnp.dot(ur, eyr, preferred_element_type=jnp.float32)
                  - jnp.dot(ui, eyi, preferred_element_type=jnp.float32))
    acci[...] += (jnp.dot(ur, eyi, preferred_element_type=jnp.float32)
                  + jnp.dot(ui, eyr, preferred_element_type=jnp.float32))

    # Epilogue: fused coil combine  img[x,y] = sum_c conj(S[c,x,y]) * acc[c,x,y]
    @pl.when(k == pl.num_programs(1) - 1)
    def _():
        sr2 = sr_ref[...].reshape(ncp * tx, nyp)
        si2 = si_ref[...].reshape(ncp * tx, nyp)
        xr = accr[...]
        xi = acci[...]
        pr = sr2 * xr + si2 * xi
        pi = sr2 * xi - si2 * xr
        xsel = xsel_ref[...]                              # (tx, Ncp*tx), 0/1
        or_ref[...] = jnp.dot(xsel, pr, preferred_element_type=jnp.float32) * scale
        oi_ref[...] = jnp.dot(xsel, pi, preferred_element_type=jnp.float32) * scale


def nufft_adjoint(wr, wi, kx, ky, gx_col, gy_row, sr, si, xsel,
                  *, scale, tk, tx):
    Ncp, Kp = wr.shape
    _, Nxp, Nyp = sr.shape
    grid = (Nxp // tx, Kp // tk)
    kernel = functools.partial(_adj_nufft_kernel, scale=scale)
    return pl.pallas_call(
        kernel,
        out_shape=(jax.ShapeDtypeStruct((Nxp, Nyp), jnp.float32),
                   jax.ShapeDtypeStruct((Nxp, Nyp), jnp.float32)),
        grid_spec=pltpu.PrefetchScalarGridSpec(
            num_scalar_prefetch=0,
            grid=grid,
            in_specs=[
                pl.BlockSpec((Ncp, tk), lambda j, k: (0, k)),          # W real (streamed)
                pl.BlockSpec((Ncp, tk), lambda j, k: (0, k)),          # W imag (streamed)
                pl.BlockSpec((1, tk), lambda j, k: (0, k)),            # kx row
                pl.BlockSpec((tk, 1), lambda j, k: (k, 0)),            # ky col
                pl.BlockSpec((tx, 1), lambda j, k: (j, 0)),            # gx col
                pl.BlockSpec((1, Nyp), lambda j, k: (0, 0)),           # gy row
                pl.BlockSpec((Ncp, tx, Nyp), lambda j, k: (0, j, 0)),  # smaps real
                pl.BlockSpec((Ncp, tx, Nyp), lambda j, k: (0, j, 0)),  # smaps imag
                pl.BlockSpec((tx, Ncp * tx), lambda j, k: (0, 0)),     # coil-sum matrix
            ],
            out_specs=(
                pl.BlockSpec((tx, Nyp), lambda j, k: (j, 0)),
                pl.BlockSpec((tx, Nyp), lambda j, k: (j, 0)),
            ),
            scratch_shapes=[pltpu.VMEM((Ncp * tx, Nyp), jnp.float32),
                            pltpu.VMEM((Ncp * tx, Nyp), jnp.float32)]),
        compiler_params=pltpu.CompilerParams(
            dimension_semantics=("parallel", "arbitrary"),
            vmem_limit_bytes=32 * 1024 * 1024),
    )(wr, wi, kx, ky, gx_col, gy_row, sr, si, xsel)


# --------------------------------------------------------------------------
# Fused forward NUFFT kernel
#   grid = (Kp//tk, Nxp//tx)   (k-tiles parallel, image-row reduction last)
#   per step:
#     conj(Ey) (Nyp,tk) on the fly,
#     V = Y_tile @ conj(Ey)   (MXU, bf16 in / f32 acc, M = Ncp*tx),
#     multiply by conj(Ex)[x,k] (tiled over coils) and reduce over x within
#     each coil with a (Ncp, Ncp*tx) selection matmul.
#   Y = S * img is precomputed in the wrapper (hoisted coil expand).
# --------------------------------------------------------------------------
def _fwd_nufft_kernel(yr_ref, yi_ref, kx_ref, ky_ref, gx_ref, gy_ref,
                      csel_ref, or_ref, oi_ref, accr, acci, *, scale):
    p = pl.program_id(1)

    @pl.when(p == 0)
    def _():
        accr[...] = jnp.zeros_like(accr)
        acci[...] = jnp.zeros_like(acci)

    ncp, tx, nyp = yr_ref.shape
    tk = kx_ref.shape[1]

    # conj(Ey)[y,k] = cos - i*sin of  gy[y]*ky[k]   (f32 transcendentals)
    phy = gy_ref[...] * ky_ref[...]                       # (Nyp,1)*(1,tk) -> (Nyp,tk)
    cyr = jnp.cos(phy).astype(jnp.bfloat16)
    cyi = jnp.sin(phy).astype(jnp.bfloat16)

    yr = yr_ref[...].reshape(ncp * tx, nyp).astype(jnp.bfloat16)
    yi = yi_ref[...].reshape(ncp * tx, nyp).astype(jnp.bfloat16)

    # V[c*tx+x, k] = sum_y Y[c,x,y] * conj(Ey)[y,k]
    vr = (jnp.dot(yr, cyr, preferred_element_type=jnp.float32)
          + jnp.dot(yi, cyi, preferred_element_type=jnp.float32))
    vi = (jnp.dot(yi, cyr, preferred_element_type=jnp.float32)
          - jnp.dot(yr, cyi, preferred_element_type=jnp.float32))

    # Multiply by conj(Ex)[x,k] (repeat the (tx,tk) factor over coils) ...
    phx = gx_ref[...] * kx_ref[...]                       # (tx,1)*(1,tk) -> (tx,tk)
    cxr = jnp.tile(jnp.cos(phx), (ncp, 1))                # (Ncp*tx, tk)
    cxi = jnp.tile(jnp.sin(phx), (ncp, 1))
    pr = vr * cxr + vi * cxi
    pi = vi * cxr - vr * cxi

    # ... and sum over x within each coil via the constant selection matmul.
    csel = csel_ref[...]                                  # (Ncp, Ncp*tx), 0/1
    accr[...] += jnp.dot(csel, pr, preferred_element_type=jnp.float32)
    acci[...] += jnp.dot(csel, pi, preferred_element_type=jnp.float32)

    @pl.when(p == pl.num_programs(1) - 1)
    def _():
        or_ref[...] = accr[...] * scale
        oi_ref[...] = acci[...] * scale


def nufft_forward(yr, yi, kx, ky, gx_col, gy_col, csel, *, scale, tk, tx):
    Ncp, Nxp, Nyp = yr.shape
    _, Kp = kx.shape
    grid = (Kp // tk, Nxp // tx)
    kernel = functools.partial(_fwd_nufft_kernel, scale=scale)
    return pl.pallas_call(
        kernel,
        out_shape=(jax.ShapeDtypeStruct((Ncp, Kp), jnp.float32),
                   jax.ShapeDtypeStruct((Ncp, Kp), jnp.float32)),
        grid_spec=pltpu.PrefetchScalarGridSpec(
            num_scalar_prefetch=0,
            grid=grid,
            in_specs=[
                pl.BlockSpec((Ncp, tx, Nyp), lambda j, p: (0, p, 0)),  # Y real
                pl.BlockSpec((Ncp, tx, Nyp), lambda j, p: (0, p, 0)),  # Y imag
                pl.BlockSpec((1, tk), lambda j, p: (0, j)),            # kx row
                pl.BlockSpec((1, tk), lambda j, p: (0, j)),            # ky row
                pl.BlockSpec((tx, 1), lambda j, p: (p, 0)),            # gx col
                pl.BlockSpec((Nyp, 1), lambda j, p: (0, 0)),           # gy col
                pl.BlockSpec((Ncp, Ncp * tx), lambda j, p: (0, 0)),    # x-sum matrix
            ],
            out_specs=(
                pl.BlockSpec((Ncp, tk), lambda j, p: (0, j)),
                pl.BlockSpec((Ncp, tk), lambda j, p: (0, j)),
            ),
            scratch_shapes=[pltpu.VMEM((Ncp, tk), jnp.float32),
                            pltpu.VMEM((Ncp, tk), jnp.float32)]),
        compiler_params=pltpu.CompilerParams(
            dimension_semantics=("parallel", "arbitrary"),
            vmem_limit_bytes=32 * 1024 * 1024),
    )(yr, yi, kx, ky, gx_col, gy_col, csel)


# --------------------------------------------------------------------------
# MCNUFFT module (JAX / Pallas version)
# --------------------------------------------------------------------------
class MCNUFFTPallas:
    """Equivalent of the PyTorch MCNUFFT module.

    ktraj : (2, K[, Nt]) float  — non-uniform k-space coords (radians)
    dcomp : (K[, Nt])    float  — density compensation
    smaps : (Ncoil, Nx, Ny) complex64 — coil sensitivity maps
    """

    def __init__(self, ktraj, dcomp, smaps):
        self.ktraj = jnp.squeeze(jnp.asarray(ktraj, jnp.float32))
        self.dcomp = jnp.squeeze(jnp.asarray(dcomp, jnp.float32))
        smaps = jnp.asarray(smaps, jnp.complex64)
        self.Nc, self.Nx, self.Ny = smaps.shape
        self.K = int(self.ktraj.shape[1])

        # padded sizes / tiles
        self.Ncp = max(8, _round_up(self.Nc, 8))
        self.Nyp = _round_up(self.Ny, 128)                 # lane-dense image cols
        self.Nxp, self.tx = _pick_x_tile(self.Nx, self.Ncp)
        self.Kp, self.tk = _pick_k_tile(self.K)

        # padded coil maps (real / imag planes) as (Ncp, Nxp, Nyp)
        pad3 = ((0, self.Ncp - self.Nc), (0, self.Nxp - self.Nx),
                (0, self.Nyp - self.Ny))
        self.sr = jnp.pad(jnp.real(smaps), pad3).astype(jnp.float32)
        self.si = jnp.pad(jnp.imag(smaps), pad3).astype(jnp.float32)

        # centered grid coordinate vectors (padded region is harmless: padded
        # smaps / images are zero, padded outputs are sliced off)
        gx = jnp.arange(self.Nxp, dtype=jnp.float32) - self.Nx // 2
        gy = jnp.arange(self.Nyp, dtype=jnp.float32) - self.Ny // 2
        self.gx_col = gx.reshape(self.Nxp, 1)
        self.gy_row = gy.reshape(1, self.Nyp)
        self.gy_col = gy.reshape(self.Nyp, 1)

        # constant selection matrices (grouped sums done on the MXU)
        #   xsel[x, c*tx + x] = 1   (adjoint coil combine)
        #   csel[c, c*tx + x] = 1   (forward per-coil x reduction)
        eye_tx = jnp.eye(self.tx, dtype=jnp.float32)
        self.xsel = jnp.kron(jnp.ones((1, self.Ncp), jnp.float32), eye_tx)
        self.csel = jnp.kron(jnp.eye(self.Ncp, dtype=jnp.float32),
                             jnp.ones((1, self.tx), jnp.float32))

        self.scale = float(1.0 / math.sqrt(self.Nx * self.Ny))

        # jit once per instance
        self._adj1 = jax.jit(self._adjoint_frame)
        self._fwd1 = jax.jit(self._forward_frame)
        self._adjN = jax.jit(self._adjoint_frames)
        self._fwdN = jax.jit(self._forward_frames)

    # -------------------- per-frame paths --------------------
    def _adjoint_frame(self, kdata, ktraj, dcomp):
        # kdata: (Nc, K) complex ; ktraj: (2, K) ; dcomp: (K,)
        w = kdata * dcomp[None, :]
        pad = ((0, self.Ncp - self.Nc), (0, self.Kp - self.K))
        wr = jnp.pad(jnp.real(w).astype(jnp.float32), pad)
        wi = jnp.pad(jnp.imag(w).astype(jnp.float32), pad)
        kx = jnp.pad(ktraj[0], (0, self.Kp - self.K)).reshape(1, self.Kp)
        ky = jnp.pad(ktraj[1], (0, self.Kp - self.K)).reshape(self.Kp, 1)
        ir, ii = nufft_adjoint(wr, wi, kx, ky, self.gx_col, self.gy_row,
                               self.sr, self.si, self.xsel,
                               scale=self.scale, tk=self.tk, tx=self.tx)
        img = ir[:self.Nx, :self.Ny] + 1j * ii[:self.Nx, :self.Ny]
        return img.astype(jnp.complex64)

    def _forward_frame(self, image, ktraj):
        # image: (Nx, Ny) complex ; ktraj: (2, K)
        pad2 = ((0, self.Nxp - self.Nx), (0, self.Nyp - self.Ny))
        gr = jnp.pad(jnp.real(image).astype(jnp.float32), pad2)
        gi = jnp.pad(jnp.imag(image).astype(jnp.float32), pad2)
        # hoisted coil expand: Y = S * img  (done once, outside the k loop)
        yr = self.sr * gr[None, :, :] - self.si * gi[None, :, :]
        yi = self.sr * gi[None, :, :] + self.si * gr[None, :, :]
        kx = jnp.pad(ktraj[0], (0, self.Kp - self.K)).reshape(1, self.Kp)
        ky = jnp.pad(ktraj[1], (0, self.Kp - self.K)).reshape(1, self.Kp)
        cr, ci = nufft_forward(yr, yi, kx, ky, self.gx_col, self.gy_col,
                               self.csel, scale=self.scale,
                               tk=self.tk, tx=self.tx)
        out = cr[:self.Nc, :self.K] + 1j * ci[:self.Nc, :self.K]
        return out.astype(jnp.complex64)

    # -------------------- multi-frame (lax.scan) --------------------
    # TODO(synk): frames could be folded into a leading 'parallel' grid axis to
    # use both TensorCores on v7x when per-frame tile counts are small.
    def _adjoint_frames(self, kdata, ktraj, dcomp):
        kd = jnp.moveaxis(kdata, -1, 0)
        kt = jnp.moveaxis(ktraj, -1, 0)
        dc = jnp.moveaxis(dcomp, -1, 0)

        def body(carry, x):
            kd_i, kt_i, dc_i = x
            return carry, self._adjoint_frame(kd_i, kt_i, dc_i)

        _, imgs = jax.lax.scan(body, None, (kd, kt, dc))
        return jnp.moveaxis(imgs, 0, -1)                  # (Nx, Ny, Nt)

    def _forward_frames(self, images, ktraj):
        ims = jnp.moveaxis(images, -1, 0)
        kt = jnp.moveaxis(ktraj, -1, 0)

        def body(carry, x):
            im_i, kt_i = x
            return carry, self._forward_frame(im_i, kt_i)

        _, ksp = jax.lax.scan(body, None, (ims, kt))
        return jnp.moveaxis(ksp, 0, -1)                   # (Nc, K, Nt)

    # -------------------- public API --------------------
    def __call__(self, inv, data):
        data = jnp.squeeze(jnp.asarray(data, jnp.complex64))
        if inv:
            if data.ndim > 2:
                return self._adjN(data, self.ktraj, self.dcomp)
            kt = self.ktraj if self.ktraj.ndim == 2 else self.ktraj[:, :, 0]
            dc = self.dcomp if self.dcomp.ndim == 1 else self.dcomp[:, 0]
            return self._adj1(data, kt, dc)
        else:
            if data.ndim > 2:
                return self._fwdN(data, self.ktraj)
            kt = self.ktraj if self.ktraj.ndim == 2 else self.ktraj[:, :, 0]
            return self._fwd1(data, kt)


# --------------------------------------------------------------------------
# Dense jnp references (exact NDFT) for numerical sanity checks
# --------------------------------------------------------------------------
def _ref_adjoint(kdata, ktraj, dcomp, smaps):
    Nc, Nx, Ny = smaps.shape
    gx = jnp.arange(Nx, dtype=jnp.float32) - Nx // 2
    gy = jnp.arange(Ny, dtype=jnp.float32) - Ny // 2
    gxp = jnp.repeat(gx, Ny)
    gyp = jnp.tile(gy, Nx)
    phase = ktraj[0][:, None] * gxp[None, :] + ktraj[1][:, None] * gyp[None, :]
    E = jnp.exp(1j * phase)                               # (K, P)
    w = kdata * dcomp[None, :]
    x = w @ E                                             # (Nc, P)
    img = jnp.sum(jnp.conj(smaps.reshape(Nc, -1)) * x, axis=0)
    return (img / math.sqrt(Nx * Ny)).reshape(Nx, Ny)


def _ref_forward(image, ktraj, smaps):
    Nc, Nx, Ny = smaps.shape
    gx = jnp.arange(Nx, dtype=jnp.float32) - Nx // 2
    gy = jnp.arange(Ny, dtype=jnp.float32) - Ny // 2
    gxp = jnp.repeat(gx, Ny)
    gyp = jnp.tile(gy, Nx)
    phase = ktraj[0][:, None] * gxp[None, :] + ktraj[1][:, None] * gyp[None, :]
    E = jnp.exp(1j * phase)                               # (K, P)
    Y = smaps.reshape(Nc, -1) * image.reshape(1, -1)      # (Nc, P)
    return (Y @ jnp.conj(E).T) / math.sqrt(Nx * Ny)


# --------------------------------------------------------------------------
if __name__ == "__main__":
    # TODO(synk): exact NDFT replaces torchkbnufft KB-gridding; interpolation
    # error / apodization of the KB kernel is not reproduced.
    Nx, Ny, Nc, K, Nt = 16, 16, 4, 128, 2

    key = jax.random.PRNGKey(0)
    k1, k2, k3, k4, k5, k6, k7, k8 = jax.random.split(key, 8)

    ktraj = jax.random.uniform(k1, (2, K, Nt), jnp.float32,
                               minval=-jnp.pi, maxval=jnp.pi)
    dcomp = jax.random.uniform(k2, (K, Nt), jnp.float32, minval=0.1, maxval=1.0)
    smaps = (jax.random.normal(k3, (Nc, Nx, Ny), jnp.float32)
             + 1j * jax.random.normal(k4, (Nc, Nx, Ny), jnp.float32)
             ).astype(jnp.complex64)

    mcnufft = MCNUFFTPallas(ktraj, dcomp, smaps)

    # adjoint path (inv=True): multi-coil k-space data -> image series
    kdata = (jax.random.normal(k5, (Nc, K, Nt), jnp.float32)
             + 1j * jax.random.normal(k6, (Nc, K, Nt), jnp.float32)
             ).astype(jnp.complex64)
    img_series = mcnufft(True, kdata)          # (Nx, Ny, Nt) complex64
    jax.block_until_ready(img_series)
    assert img_series.shape == (Nx, Ny, Nt)

    # forward path (inv=False): image series -> multi-coil k-space
    imgs = (jax.random.normal(k7, (Nx, Ny, Nt), jnp.float32)
            + 1j * jax.random.normal(k8, (Nx, Ny, Nt), jnp.float32)
            ).astype(jnp.complex64)
    ksp_series = mcnufft(False, imgs)          # (Nc, K, Nt) complex64
    jax.block_until_ready(ksp_series)
    assert ksp_series.shape == (Nc, K, Nt)

    # single-frame (2D) branches — operator built from a single-frame
    # trajectory, matching how the PyTorch module is used for 2D data.
    mcnufft1 = MCNUFFTPallas(ktraj[:, :, 0:1], dcomp[:, 0:1], smaps)
    img_single = mcnufft1(True, kdata[:, :, 0])
    ksp_single = mcnufft1(False, imgs[:, :, 0])
    jax.block_until_ready((img_single, ksp_single))
    assert img_single.shape == (Nx, Ny) and ksp_single.shape == (Nc, K)

    # numerical sanity checks against dense exact-NDFT references
    ref_img = _ref_adjoint(kdata[:, :, 0], ktraj[:, :, 0], dcomp[:, 0], smaps)
    rel = float(jnp.linalg.norm(img_series[:, :, 0] - ref_img)
                / jnp.linalg.norm(ref_img))
    assert rel < 5e-2, f"adjoint mismatch: rel err {rel}"

    ref_ksp = _ref_forward(imgs[:, :, 0], ktraj[:, :, 0], smaps)
    rel = float(jnp.linalg.norm(ksp_series[:, :, 0] - ref_ksp)
                / jnp.linalg.norm(ref_ksp))
    assert rel < 5e-2, f"forward mismatch: rel err {rel}"

    print("KERNEL_OK")
</pallas_src>

<mosaic_0001>
module attributes {stable_mosaic.version = 11 : i64} {
  func.func @_adj_nufft_kernel(%arg0: i32, %arg1: i32, %arg2: memref<8x128xf32, #tpu.memory_space<vmem>>, %arg3: memref<8x128xf32, #tpu.memory_space<vmem>>, %arg4: memref<1x128xf32, #tpu.memory_space<vmem>>, %arg5: memref<128x1xf32, #tpu.memory_space<vmem>>, %arg6: memref<16x1xf32, #tpu.memory_space<vmem>>, %arg7: memref<1x128xf32, #tpu.memory_space<vmem>>, %arg8: memref<8x16x128xf32, #tpu.memory_space<vmem>>, %arg9: memref<8x16x128xf32, #tpu.memory_space<vmem>>, %arg10: memref<16x128xf32, #tpu.memory_space<vmem>>, %arg11: memref<16x128xf32, #tpu.memory_space<vmem>>, %arg12: memref<16x128xf32, #tpu.memory_space<vmem>>, %arg13: memref<128x128xf32, #tpu.memory_space<vmem>>, %arg14: memref<128x128xf32, #tpu.memory_space<vmem>>) attributes {dimension_semantics = [#tpu.dimension_semantics<parallel>, #tpu.dimension_semantics<arbitrary>], iteration_bounds = array<i64: 1, 1>, scalar_prefetch = 0 : i64, scratch_operands = 2 : i64, tpu.core_type = #tpu.core_type<tc>, window_params = [{transform_indices = @transform_0, window_bounds = array<i64: 8, 128>}, {transform_indices = @transform_1, window_bounds = array<i64: 8, 128>}, {transform_indices = @transform_2, window_bounds = array<i64: 1, 128>}, {transform_indices = @transform_3, window_bounds = array<i64: 128, 1>}, {transform_indices = @transform_4, window_bounds = array<i64: 16, 1>}, {pipeline_mode = #tpu.pipeline_mode<synchronous>, transform_indices = @transform_5, window_bounds = array<i64: 1, 128>}, {transform_indices = @transform_6, window_bounds = array<i64: 8, 16, 128>}, {transform_indices = @transform_7, window_bounds = array<i64: 8, 16, 128>}, {pipeline_mode = #tpu.pipeline_mode<synchronous>, transform_indices = @transform_8, window_bounds = array<i64: 16, 128>}, {transform_indices = @transform_9, window_bounds = array<i64: 16, 128>}, {transform_indices = @transform_10, window_bounds = array<i64: 16, 128>}]} {
    %c0_i32 = arith.constant 0 : i32
    %0 = arith.cmpi eq, %arg1, %c0_i32 : i32
    %1 = arith.extui %0 : i1 to i32
    %c0_i32_0 = arith.constant 0 : i32
    %2 = arith.cmpi ne, %1, %c0_i32_0 : i32
    scf.if %2 {
      %cst_25 = arith.constant 0.000000e+00 : f32
      %58 = vector.broadcast %cst_25 : f32 to vector<128x128xf32>
      %c0_26 = arith.constant 0 : index
      %c0_27 = arith.constant 0 : index
      %59 = vector.load %arg13[%c0_26, %c0_27] : memref<128x128xf32, #tpu.memory_space<vmem>>, vector<128x128xf32>
      tpu.vector_store %arg13[%c0_26, %c0_27], %58 {strides = array<i32>} : memref<128x128xf32, #tpu.memory_space<vmem>>, vector<128x128xf32>,
      %cst_28 = arith.constant 0.000000e+00 : f32
      %60 = vector.broadcast %cst_28 : f32 to vector<128x128xf32>
      %c0_29 = arith.constant 0 : index
      %c0_30 = arith.constant 0 : index
      %61 = vector.load %arg14[%c0_29, %c0_30] : memref<128x128xf32, #tpu.memory_space<vmem>>, vector<128x128xf32>
      tpu.vector_store %arg14[%c0_29, %c0_30], %60 {strides = array<i32>} : memref<128x128xf32, #tpu.memory_space<vmem>>, vector<128x128xf32>,
    } else {
    }
    %c0 = arith.constant 0 : index
    %c0_1 = arith.constant 0 : index
    %3 = vector.load %arg6[%c0, %c0_1] : memref<16x1xf32, #tpu.memory_space<vmem>>, vector<16x1xf32>
    %c0_2 = arith.constant 0 : index
    %c0_3 = arith.constant 0 : index
    %4 = vector.load %arg4[%c0_2, %c0_3] : memref<1x128xf32, #tpu.memory_space<vmem>>, vector<1x128xf32>
    %5 = vector.broadcast %3 : vector<16x1xf32> to vector<16x128xf32>
    %6 = vector.broadcast %4 : vector<1x128xf32> to vector<16x128xf32>
    %7 = arith.mulf %5, %6 : vector<16x128xf32>
    %8 = math.cos %7 : vector<16x128xf32>
    %9 = math.sin %7 : vector<16x128xf32>
    %c0_4 = arith.constant 0 : index
    %c0_5 = arith.constant 0 : index
    %10 = vector.load %arg5[%c0_4, %c0_5] : memref<128x1xf32, #tpu.memory_space<vmem>>, vector<128x1xf32>
    %c0_6 = arith.constant 0 : index
    %c0_7 = arith.constant 0 : index
    %11 = vector.load %arg7[%c0_6, %c0_7] : memref<1x128xf32, #tpu.memory_space<vmem>>, vector<1x128xf32>
    %12 = vector.broadcast %10 : vector<128x1xf32> to vector<128x128xf32>
    %13 = vector.broadcast %11 : vector<1x128xf32> to vector<128x128xf32>
    %14 = arith.mulf %12, %13 : vector<128x128xf32>
    %15 = math.cos %14 : vector<128x128xf32>
    %16 = arith.truncf %15 : vector<128x128xf32> to vector<128x128xbf16>
    %17 = math.sin %14 : vector<128x128xf32>
    %18 = arith.truncf %17 : vector<128x128xf32> to vector<128x128xbf16>
    %c0_8 = arith.constant 0 : index
    %c0_9 = arith.constant 0 : index
    %19 = vector.load %arg2[%c0_8, %c0_9] : memref<8x128xf32, #tpu.memory_space<vmem>>, vector<8x128xf32>
    %20 = vector.shape_cast %19 : vector<8x128xf32> to vector<8x1x128xf32>
    %c0_10 = arith.constant 0 : index
    %c0_11 = arith.constant 0 : index
    %21 = vector.load %arg3[%c0_10, %c0_11] : memref<8x128xf32, #tpu.memory_space<vmem>>, vector<8x128xf32>
    %22 = vector.shape_cast %21 : vector<8x128xf32> to vector<8x1x128xf32>
    %23 = vector.shape_cast %8 : vector<16x128xf32> to vector<1x16x128xf32>
    %24 = vector.shape_cast %9 : vector<16x128xf32> to vector<1x16x128xf32>
    %25 = vector.broadcast %20 : vector<8x1x128xf32> to vector<8x16x128xf32>
    %26 = vector.broadcast %23 : vector<1x16x128xf32> to vector<8x16x128xf32>
    %27 = arith.mulf %25, %26 : vector<8x16x128xf32>
    %28 = vector.broadcast %22 : vector<8x1x128xf32> to vector<8x16x128xf32>
    %29 = vector.broadcast %24 : vector<1x16x128xf32> to vector<8x16x128xf32>
    %30 = arith.mulf %28, %29 : vector<8x16x128xf32>
    %31 = arith.subf %27, %30 : vector<8x16x128xf32>
    %32 = vector.shape_cast %31 : vector<8x16x128xf32> to vector<128x128xf32>
    %33 = arith.truncf %32 : vector<128x128xf32> to vector<128x128xbf16>
    %34 = vector.broadcast %20 : vector<8x1x128xf32> to vector<8x16x128xf32>
    %35 = vector.broadcast %24 : vector<1x16x128xf32> to vector<8x16x128xf32>
    %36 = arith.mulf %34, %35 : vector<8x16x128xf32>
    %37 = vector.broadcast %22 : vector<8x1x128xf32> to vector<8x16x128xf32>
    %38 = vector.broadcast %23 : vector<1x16x128xf32> to vector<8x16x128xf32>
    %39 = arith.mulf %37, %38 : vector<8x16x128xf32>
    %40 = arith.addf %36, %39 : vector<8x16x128xf32>
    %41 = vector.shape_cast %40 : vector<8x16x128xf32> to vector<128x128xf32>
    %42 = arith.truncf %41 : vector<128x128xf32> to vector<128x128xbf16>
    %c0_12 = arith.constant 0 : index
    %c0_13 = arith.constant 0 : index
    %43 = vector.load %arg13[%c0_12, %c0_13] : memref<128x128xf32, #tpu.memory_space<vmem>>, vector<128x128xf32>
    %cst = arith.constant dense<0.000000e+00> : vector<128x128xf32>
    %44 = tpu.matmul %33, %16, %cst {dimension_numbers = #tpu.dot_dimension_numbers<[1], [0], [0], [1], [0, 0, 1, 1], [], []>} : vector<128x128xbf16>, vector<128x128xbf16>, vector<128x128xf32> -> vector<128x128xf32>
    %cst_14 = arith.constant dense<0.000000e+00> : vector<128x128xf32>
    %45 = tpu.matmul %42, %18, %cst_14 {dimension_numbers = #tpu.dot_dimension_numbers<[1], [0], [0], [1], [0, 0, 1, 1], [], []>} : vector<128x128xbf16>, vector<128x128xbf16>, vector<128x128xf32> -> vector<128x128xf32>
    %46 = arith.subf %44, %45 : vector<128x128xf32>
    %47 = arith.addf %43, %46 : vector<128x128xf32>
    %c0_15 = arith.constant 0 : index
    %c0_16 = arith.constant 0 : index
    %48 = vector.load %arg13[%c0_15, %c0_16] : memref<128x128xf32, #tpu.memory_space<vmem>>, vector<128x128xf32>
    tpu.vector_store %arg13[%c0_15, %c0_16], %47 {strides = array<i32>} : memref<128x128xf32, #tpu.memory_space<vmem>>, vector<128x128xf32>,
    %c0_17 = arith.constant 0 : index
    %c0_18 = arith.constant 0 : index
    %49 = vector.load %arg14[%c0_17, %c0_18] : memref<128x128xf32, #tpu.memory_space<vmem>>, vector<128x128xf32>
    %cst_19 = arith.constant dense<0.000000e+00> : vector<128x128xf32>
    %50 = tpu.matmul %33, %18, %cst_19 {dimension_numbers = #tpu.dot_dimension_numbers<[1], [0], [0], [1], [0, 0, 1, 1], [], []>} : vector<128x128xbf16>, vector<128x128xbf16>, vector<128x128xf32> -> vector<128x128xf32>
    %cst_20 = arith.constant dense<0.000000e+00> : vector<128x128xf32>
    %51 = tpu.matmul %42, %16, %cst_20 {dimension_numbers = #tpu.dot_dimension_numbers<[1], [0], [0], [1], [0, 0, 1, 1], [], []>} : vector<128x128xbf16>, vector<128x128xbf16>, vector<128x128xf32> -> vector<128x128xf32>
    %52 = arith.addf %50, %51 : vector<128x128xf32>
    %53 = arith.addf %49, %52 : vector<128x128xf32>
    %c0_21 = arith.constant 0 : index
    %c0_22 = arith.constant 0 : index
    %54 = vector.load %arg14[%c0_21, %c0_22] : memref<128x128xf32, #tpu.memory_space<vmem>>, vector<128x128xf32>
    tpu.vector_store %arg14[%c0_21, %c0_22], %53 {strides = array<i32>} : memref<128x128xf32, #tpu.memory_space<vmem>>, vector<128x128xf32>,
    %c0_i32_23 = arith.constant 0 : i32
    %55 = arith.cmpi eq, %arg1, %c0_i32_23 : i32
    %56 = arith.extui %55 : i1 to i32
    %c0_i32_24 = arith.constant 0 : i32
    %57 = arith.cmpi ne, %56, %c0_i32_24 : i32
    scf.if %57 {
      %c0_25 = arith.constant 0 : index
      %c0_26 = arith.constant 0 : index
      %c0_27 = arith.constant 0 : index
      %58 = vector.load %arg8[%c0_25, %c0_26, %c0_27] : memref<8x16x128xf32, #tpu.memory_space<vmem>>, vector<8x16x128xf32>
      %59 = vector.shape_cast %58 : vector<8x16x128xf32> to vector<128x128xf32>
      %c0_28 = arith.constant 0 : index
      %c0_29 = arith.constant 0 : index
      %c0_30 = arith.constant 0 : index
      %60 = vector.load %arg9[%c0_28, %c0_29, %c0_30] : memref<8x16x128xf32, #tpu.memory_space<vmem>>, vector<8x16x128xf32>
      %61 = vector.shape_cast %60 : vector<8x16x128xf32> to vector<128x128xf32>
      %c0_31 = arith.constant 0 : index
      %c0_32 = arith.constant 0 : index
      %62 = vector.load %arg13[%c0_31, %c0_32] : memref<128x128xf32, #tpu.memory_space<vmem>>, vector<128x128xf32>
      %c0_33 = arith.constant 0 : index
      %c0_34 = arith.constant 0 : index
      %63 = vector.load %arg14[%c0_33, %c0_34] : memref<128x128xf32, #tpu.memory_space<vmem>>, vector<128x128xf32>
      %64 = arith.mulf %59, %62 : vector<128x128xf32>
      %65 = arith.mulf %61, %63 : vector<128x128xf32>
      %66 = arith.addf %64, %65 : vector<128x128xf32>
      %67 = arith.mulf %59, %63 : vector<128x128xf32>
      %68 = arith.mulf %61, %62 : vector<128x128xf32>
      %69 = arith.subf %67, %68 : vector<128x128xf32>
      %c0_35 = arith.constant 0 : index
      %c0_36 = arith.constant 0 : index
      %70 = vector.load %arg10[%c0_35, %c0_36] : memref<16x128xf32, #tpu.memory_space<vmem>>, vector<16x128xf32>
      %cst_37 = arith.constant dense<0.000000e+00> : vector<16x128xf32>
      %71 = tpu.matmul %70, %66, %cst_37 {dimension_numbers = #tpu.dot_dimension_numbers<[1], [0], [0], [1], [0, 0, 1, 1], [], []>} : vector<16x128xf32>, vector<128x128xf32>, vector<16x128xf32> -> vector<16x128xf32>
      %cst_38 = arith.constant 6.250000e-02 : f32
      %72 = vector.broadcast %cst_38 : f32 to vector<16x128xf32>
      %73 = arith.mulf %71, %72 : vector<16x128xf32>
      %c0_39 = arith.constant 0 : index
      %c0_40 = arith.constant 0 : index
      %74 = vector.load %arg11[%c0_39, %c0_40] : memref<16x128xf32, #tpu.memory_space<vmem>>, vector<16x128xf32>
      tpu.vector_store %arg11[%c0_39, %c0_40], %73 {strides = array<i32>} : memref<16x128xf32, #tpu.memory_space<vmem>>, vector<16x128xf32>,
      %cst_41 = arith.constant dense<0.000000e+00> : vector<16x128xf32>
      %75 = tpu.matmul %70, %69, %cst_41 {dimension_numbers = #tpu.dot_dimension_numbers<[1], [0], [0], [1], [0, 0, 1, 1], [], []>} : vector<16x128xf32>, vector<128x128xf32>, vector<16x128xf32> -> vector<16x128xf32>
      %cst_42 = arith.constant 6.250000e-02 : f32
      %76 = vector.broadcast %cst_42 : f32 to vector<16x128xf32>
      %77 = arith.mulf %75, %76 : vector<16x128xf32>
      %c0_43 = arith.constant 0 : index
      %c0_44 = arith.constant 0 : index
      %78 = vector.load %arg12[%c0_43, %c0_44] : memref<16x128xf32, #tpu.memory_space<vmem>>, vector<16x128xf32>
      tpu.vector_store %arg12[%c0_43, %c0_44], %77 {strides = array<i32>} : memref<16x128xf32, #tpu.memory_space<vmem>>, vector<16x128xf32>,
    } else {
    }
    return
  }
  func.func @transform_0(%arg0: i32, %arg1: i32) -> (i32, i32) {
    %c0_i32 = arith.constant 0 : i32
    %c0_i32_0 = arith.constant 0 : i32
    return %c0_i32, %arg1 : i32, i32
  }
  func.func @transform_1(%arg0: i32, %arg1: i32) -> (i32, i32) {
    %c0_i32 = arith.constant 0 : i32
    %c0_i32_0 = arith.constant 0 : i32
    return %c0_i32, %arg1 : i32, i32
  }
  func.func @transform_2(%arg0: i32, %arg1: i32) -> (i32, i32) {
    %c0_i32 = arith.constant 0 : i32
    %c0_i32_0 = arith.constant 0 : i32
    return %c0_i32, %arg1 : i32, i32
  }
  func.func @transform_3(%arg0: i32, %arg1: i32) -> (i32, i32) {
    %c0_i32 = arith.constant 0 : i32
    %c0_i32_0 = arith.constant 0 : i32
    return %arg1, %c0_i32 : i32, i32
  }
  func.func @transform_4(%arg0: i32, %arg1: i32) -> (i32, i32) {
    %c0_i32 = arith.constant 0 : i32
    %c0_i32_0 = arith.constant 0 : i32
    return %arg0, %c0_i32 : i32, i32
  }
  func.func @transform_5(%arg0: i32, %arg1: i32) -> (i32, i32) {
    %c0_i32 = arith.constant 0 : i32
    %c0_i32_0 = arith.constant 0 : i32
    %c0_i32_1 = arith.constant 0 : i32
    return %c0_i32, %c0_i32_0 : i32, i32
  }
  func.func @transform_6(%arg0: i32, %arg1: i32) -> (i32, i32, i32) {
    %c0_i32 = arith.constant 0 : i32
    %c0_i32_0 = arith.constant 0 : i32
    %c0_i32_1 = arith.constant 0 : i32
    return %c0_i32, %arg0, %c0_i32_0 : i32, i32, i32
  }
  func.func @transform_7(%arg0: i32, %arg1: i32) -> (i32, i32, i32) {
    %c0_i32 = arith.constant 0 : i32
    %c0_i32_0 = arith.constant 0 : i32
    %c0_i32_1 = arith.constant 0 : i32
    return %c0_i32, %arg0, %c0_i32_0 : i32, i32, i32
  }
  func.func @transform_8(%arg0: i32, %arg1: i32) -> (i32, i32) {
    %c0_i32 = arith.constant 0 : i32
    %c0_i32_0 = arith.constant 0 : i32
    %c0_i32_1 = arith.constant 0 : i32
    return %c0_i32, %c0_i32_0 : i32, i32
  }
  func.func @transform_9(%arg0: i32, %arg1: i32) -> (i32, i32) {
    %c0_i32 = arith.constant 0 : i32
    %c0_i32_0 = arith.constant 0 : i32
    return %arg0, %c0_i32 : i32, i32
  }
  func.func @transform_10(%arg0: i32, %arg1: i32) -> (i32, i32) {
    %c0_i32 = arith.constant 0 : i32
    %c0_i32_0 = arith.constant 0 : i32
    return %arg0, %c0_i32 : i32, i32
  }
}

</mosaic_0001>

<llo_original>
// kernel: custom-call.1
$region0: #{custom-call.1}
  %s0 = inlined_call_operand.vmem [shape: c64[4,128,2], index: 0, kind: input, shape index: {}]
  %s1 = inlined_call_operand.vmem [shape: f32[4,128,2], index: 1, kind: output, shape index: {}]
  %s2 = scalar_lea.vmem %s0, 8
  %v3 = vld [vmem:[%s2] sm:$0xff]
  %4 = vst [vmem:[%s1] sm:$0xff] %v3

// kernel: custom-call.3
$region0: #{custom-call.3}
  %s0 = inlined_call_operand.vmem [shape: f32[2,16,16], index: 0, kind: output, shape index: {}]

// kernel: custom-call
$region0: #{custom-call}
  %s0 = inlined_call_operand.vmem [shape: c64[4,128,2], index: 0, kind: input, shape index: {}]
  %s1 = inlined_call_operand.vmem [shape: f32[4,128,2], index: 1, kind: output, shape index: {}]
  %v2 = vld [vmem:[%s0] sm:$0xff]
  %3 = vst [vmem:[%s1] sm:$0xff] %v2

// kernel: custom-call.2
$region0: #{custom-call.2}
  %s0 = inlined_call_operand.vmem [shape: f32[16,16,2], index: 0, kind: input, shape index: {}]
  %s1 = inlined_call_operand.vmem [shape: f32[16,16,2], index: 1, kind: input, shape index: {}]
  %s2 = inlined_call_operand.hbm [shape: c64[16,16,2], index: 2, kind: output, shape index: {}]
  %s3 = scalar_lea.hbm %s2, 512
  $region1: #{custom-call.2} parent=0
    #allocation0 [shape = 's32[1]{0}', space=sflag, size = 0x4, scoped, tag = 'scoped memory for custom-call.2']
    %4 = vsyncpa [#allocation0], 0
    %s5 = sshll.u32 %s0, 4
    %s6 = int_to_ptr.vmem [resolvable:$true] %s5
    %8 = dma.vmem_to_hbm [thread:$0]  %s6, 512, %s2, [#allocation0]
    %9 = dma.done [#allocation0], 512
    %10 = vsyncpa [#allocation0], 1
  $region2: #{custom-call.2} parent=0
    #allocation1 [shape = 's32[1]{0}', space=sflag, size = 0x4, scoped, tag = 'scoped memory for custom-call.2']
    %11 = vsyncpa [#allocation1], 0
    %s12 = sshll.u32 %s1, 4
    %s13 = int_to_ptr.vmem [resolvable:$true] %s12
    %15 = dma.vmem_to_hbm [thread:$0]  %s13, 512, %s3, [#allocation1]
    %16 = dma.done [#allocation1], 512
    %17 = vsyncpa [#allocation1], 1

// kernel: closed_call.8
$region0: #{closed_call.8}
  #allocation0 [shape = 'u32[]', space=smem, size = 0x4, offset = 0x4, fixed_abs, tag = 'smem constant byte address 0x4 - core index']
  #allocation1 [shape = 'u32[144,128]{1,0:T(1,128)}', space=vmem, size = 0x12000, scoped, tag = 'internal scratch']
  #allocation2 [shape = 'f32[128,128]{1,0:T(8,128)}', space=vmem, size = 0x10000, scoped, tag = 'scratch operand']
  #allocation3 [shape = 'f32[128,128]{1,0:T(8,128)}', space=vmem, size = 0x10000, scoped, tag = 'scratch operand']
  %s0 = inlined_call_operand.vmem [shape: f32[8,128], index: 0, kind: input, shape index: {}]
  %s1 = inlined_call_operand.vmem [shape: f32[8,128], index: 1, kind: input, shape index: {}]
  %s2 = inlined_call_operand.vmem [shape: f32[1,128], index: 2, kind: input, shape index: {}]
  %s3 = inlined_call_operand.vmem [shape: f32[128,1], index: 3, kind: input, shape index: {}]
  %s4 = inlined_call_operand.vmem [shape: f32[16,1], index: 4, kind: input, shape index: {}]
  %s5 = inlined_call_operand.vmem [shape: f32[1,128], index: 5, kind: input, shape index: {}]
  %s6 = inlined_call_operand.vmem [shape: f32[8,16,128], index: 6, kind: input, shape index: {}]
  %s7 = inlined_call_operand.hbm [shape: f32[8,16,128], index: 7, kind: input, shape index: {}]
  %s8 = inlined_call_operand.vmem [shape: f32[16,128], index: 8, kind: input, shape index: {}]
  %s9 = inlined_call_operand.vmem [shape: f32[16,128], index: 9, kind: output, shape index: {0}]
  %s10 = inlined_call_operand.vmem [shape: f32[16,128], index: 10, kind: output, shape index: {1}]
  %11 = xla_tuple %s9, %s10
  %s12 = sld [smem:[#allocation0]]
  $region66: #{closed_call.8} parent=0
    _
  %s14 = ssub.s32 1, %s12
  %s15 = scalar_select 0, %s14, %s12
  $region1: #{closed_call.8} parent=0
    #allocation4 [shape = 'u8[65536]{0}', space=vmem, size = 0x10000, scoped, tag = 'input window, operand 7, single buffered']
    #allocation5 [shape = 's32[1]{0}', space=sflag, size = 0x4, scoped, tag = 'scoped memory for closed_call.8']
    %16 = vsyncpa [#allocation5], 0
    // Predicated region
    $region2: #{closed_call.8} parent=1 // pred_check
      _
    $region3: #{closed_call.8} parent=1 // pred_check_branch
      %18 = sbr.rel (0) target = $region5
    $region4: #{closed_call.8} parent=1 // pred_region
      _
    $region5: #{closed_call.8} parent=1 // pred_fallthru
      _
    // Predicated region
    $region6: #{closed_call.8} parent=1 // pred_check
      _
    $region7: #{closed_call.8} parent=1 // pred_check_branch
      %20 = sbr.rel (0) target = $region9
    $region8: #{closed_call.8} parent=1 // pred_region
      _
    $region9: #{closed_call.8} parent=1 // pred_fallthru
      _
    // Predicated region
    $region10: #{closed_call.8} parent=1 // pred_check
      _
    $region11: #{closed_call.8} parent=1 // pred_check_branch
      %22 = sbr.rel (0) target = $region13
    $region12: #{closed_call.8} parent=1 // pred_region
      _
    $region13: #{closed_call.8} parent=1 // pred_fallthru
      _
    // Predicated region
    $region14: #{closed_call.8} parent=1 // pred_check
      _
    $region15: #{closed_call.8} parent=1 // pred_check_branch
      %24 = sbr.rel (0) target = $region17
    $region16: #{closed_call.8} parent=1 // pred_region
      _
    $region17: #{closed_call.8} parent=1 // pred_fallthru
      _
    // Predicated region
    $region18: #{closed_call.8} parent=1 // pred_check
      _
    $region19: #{closed_call.8} parent=1 // pred_check_branch
      %26 = sbr.rel (0) target = $region21
    $region20: #{closed_call.8} parent=1 // pred_region
      _
    $region21: #{closed_call.8} parent=1 // pred_fallthru
      _
    // Predicated region
    $region22: #{closed_call.8} parent=1 // pred_check
      _
    $region23: #{closed_call.8} parent=1 // pred_check_branch
      %28 = sbr.rel (0) target = $region25
    $region24: #{closed_call.8} parent=1 // pred_region
      _
    $region25: #{closed_call.8} parent=1 // pred_fallthru
      _
    // Predicated region
    $region26: #{closed_call.8} parent=1 // pred_check
      _
    $region27: #{closed_call.8} parent=1 // pred_check_branch
      %30 = sbr.rel (0) target = $region29
    $region28: #{closed_call.8} parent=1 // pred_region
      _
    $region29: #{closed_call.8} parent=1 // pred_fallthru
      _
    // Predicated region
    $region30: #{closed_call.8} parent=1 // pred_check
      _
    $region31: #{closed_call.8} parent=1 // pred_check_branch
      %32 = sbr.rel (0) target = $region33
    $region32: #{closed_call.8} parent=1 // pred_region
      %s34 = ssub.s32 2048, 2048
      %35 = vsyncadd [#allocation5], %s34
      %s36 = sshll.u32 [#allocation4], 4
      %s37 = int_to_ptr.vmem [resolvable:$true] %s36
      %42 = dma.hbm_to_vmem [thread:$0]  %s7, 2048, %s37, [#allocation5], 128, 128, 8
    $region33: #{closed_call.8} parent=1 // pred_fallthru
      _
    // Predicated region
    $region34: #{closed_call.8} parent=1 // pred_check
      _
    $region35: #{closed_call.8} parent=1 // pred_check_branch
      %44 = sbr.rel (0) target = $region37
    $region36: #{closed_call.8} parent=1 // pred_region
      _
    $region37: #{closed_call.8} parent=1 // pred_fallthru
      _
    // Predicated region
    $region38: #{closed_call.8} parent=1 // pred_check
      _
    $region39: #{closed_call.8} parent=1 // pred_check_branch
      %46 = sbr.rel (0) target = $region41
    $region40: #{closed_call.8} parent=1 // pred_region
      %47 = dma.done [#allocation5], 2048
    $region41: #{closed_call.8} parent=1 // pred_fallthru
      _
    %p49 = scmp.eq.s32.totalorder 0, 0
    // Predicated region
    $region42: #{closed_call.8} parent=1 // pred_check
      %p50 = pneg %p49
    $region43: #{closed_call.8} parent=1 // pred_check_branch
      %52 = sbr.rel (%p50) target = $region45
    $region44: #{closed_call.8} parent=1 // pred_region
      %53 = vst [vmem:[#allocation2] sm:$0xff] 0.0
      %54 = vst [vmem:[#allocation2 + $0x8] sm:$0xff] 0.0
      %55 = vst [vmem:[#allocation2 + $0x10] sm:$0xff] 0.0
      %56 = vst [vmem:[#allocation2 + $0x18] sm:$0xff] 0.0
      %57 = vst [vmem:[#allocation2 + $0x20] sm:$0xff] 0.0
      %58 = vst [vmem:[#allocation2 + $0x28] sm:$0xff] 0.0
      %59 = vst [vmem:[#allocation2 + $0x30] sm:$0xff] 0.0
      %60 = vst [vmem:[#allocation2 + $0x38] sm:$0xff] 0.0
      %61 = vst [vmem:[#allocation2 + $0x40] sm:$0xff] 0.0
      %62 = vst [vmem:[#allocation2 + $0x48] sm:$0xff] 0.0
      %63 = vst [vmem:[#allocation2 + $0x50] sm:$0xff] 0.0
      %64 = vst [vmem:[#allocation2 + $0x58] sm:$0xff] 0.0
      %65 = vst [vmem:[#allocation2 + $0x60] sm:$0xff] 0.0
      %66 = vst [vmem:[#allocation2 + $0x68] sm:$0xff] 0.0
      %67 = vst [vmem:[#allocation2 + $0x70] sm:$0xff] 0.0
      %68 = vst [vmem:[#allocation2 + $0x78] sm:$0xff] 0.0
      %69 = vst [vmem:[#allocation3] sm:$0xff] 0.0
      %70 = vst [vmem:[#allocation3 + $0x8] sm:$0xff] 0.0
      %71 = vst [vmem:[#allocation3 + $0x10] sm:$0xff] 0.0
      %72 = vst [vmem:[#allocation3 + $0x18] sm:$0xff] 0.0
      %73 = vst [vmem:[#allocation3 + $0x20] sm:$0xff] 0.0
      %74 = vst [vmem:[#allocation3 + $0x28] sm:$0xff] 0.0
      %75 = vst [vmem:[#allocation3 + $0x30] sm:$0xff] 0.0
      %76 = vst [vmem:[#allocation3 + $0x38] sm:$0xff] 0.0
      %77 = vst [vmem:[#allocation3 + $0x40] sm:$0xff] 0.0
      %78 = vst [vmem:[#allocation3 + $0x48] sm:$0xff] 0.0
      %79 = vst [vmem:[#allocation3 + $0x50] sm:$0xff] 0.0
      %80 = vst [vmem:[#allocation3 + $0x58] sm:$0xff] 0.0
      %81 = vst [vmem:[#allocation3 + $0x60] sm:$0xff] 0.0
      %82 = vst [vmem:[#allocation3 + $0x68] sm:$0xff] 0.0
      %83 = vst [vmem:[#allocation3 + $0x70] sm:$0xff] 0.0
      %84 = vst [vmem:[#allocation3 + $0x78] sm:$0xff] 0.0
    $region45: #{closed_call.8} parent=1 // pred_fallthru
      _
    %v85 = vld [vmem:[%s4] sm:$0xff]
    %v86 = vld [vmem:[%s4 + $0x8] sm:$0xff]
    %v87 = vld [vmem:[%s2] sm:$0x1]
    %89 = vset.pattern.permute.xlu0 0
    %90 = vperm.xlu0 %89, %v85
    %v91 = vpop.permute.xlu0 %90
    %94 = vset.pattern.permute.xlu0 0
    %95 = vperm.xlu0 %94, %v86
    %v96 = vpop.permute.xlu0 %95
    %v99 = vlaneseq
    %v100 = vshrl.u32 %v99, 7
    %v101 = vsub.s32 0, %v100
    %v102 = vrot.slane %v87, %v101
    %v104 = vmul.f32 %v91, %v102
    %v105 = vmul.f32 %v96, %v102
    %v106 = vand.u32 2147483647, %v104
    %vm107 = vcmp.le.f32.partialorder %v106, 0.7853982
    %vm108 = vcmp.lt.s32.totalorder %v104, 0
    %v109 = vand.u32 %v104, 2139095040
    %v110 = vshrl.u32 %v109, 23
    %v111 = vsub.s32 %v110, 127
    %v112 = vand.u32 2147483647, %v104
    %v113 = vand.u32 %v112, 8388607
    %v114 = vor.u32 %v113, 8388608
    %v115 = vsub.s32 0, %v114
    %v116 = vadd.s32 %v111, 1
    %vm117 = vcmp.gt.s32.totalorder %v116, 0
    %v118 = vsel %vm117, %v116, 0
    %v119 = vshrl.u32 %v118, 5
    %v120 = vand.u32 %v118, 31
    %v121 = vsub.s32 32, %v120
    %v122 = vshrl.u32 683565275, %v121
    %v123 = vshll.u32 683565275, %v120
    %v124 = vshrl.u32 2475754826, %v121
    %v125 = vor.u32 %v123, %v124
    %v126 = vshll.u32 2475754826, %v120
    %v127 = vshrl.u32 2131351028, %v121
    %v128 = vor.u32 %v126, %v127
    %v129 = vshll.u32 2131351028, %v120
    %v130 = vshrl.u32 2102212464, %v121
    %v131 = vor.u32 %v129, %v130
    %v132 = vshll.u32 2102212464, %v120
    %v133 = vshrl.u32 920167782, %v121
    %v134 = vor.u32 %v132, %v133
    %v135 = vshll.u32 920167782, %v120
    %v136 = vshrl.u32 1326507024, %v121
    %v137 = vor.u32 %v135, %v136
    %vm138 = vcmp.lt.s32.totalorder %v119, 1
    %vm139 = vcmp.lt.s32.totalorder %v119, 2
    %vm140 = vcmp.lt.s32.totalorder %v119, 3
    %vm141 = vcmp.lt.s32.totalorder %v119, 4
    %v142 = vsel %vm138, %v122, %v125
    %v143 = vsel %vm141, %v131, 2102212464
    %v144 = vsel %vm140, %v128, %v143
    %v145 = vsel %vm139, %v142, %v144
    %v146 = vsel %vm138, %v125, %v128
    %v147 = vsel %vm141, %v134, 920167782
    %v148 = vsel %vm140, %v131, %v147
    %v149 = vsel %vm139, %v146, %v148
    %v150 = vsel %vm138, %v128, %v131
    %v151 = vsel %vm141, %v137, 1326507024
    %v152 = vsel %vm140, %v134, %v151
    %v153 = vsel %vm139, %v150, %v152
    %v154 = vshll.u32 %v114, 8
    %v155 = vmul.u32.u64.compose %v154, %v153
    %v156 = vextract.low.u32 %v155
    %v157 = vextract.high.u32 %v155
    %v158 = vmul.u32.u64.compose %v154, %v149
    %v159 = vextract.low.u32 %v158
    %v160 = vextract.high.u32 %v158
    %v161 = vmul.u32 %v154, %v145
    %v162 = vadd.s32 %v157, %v159
    %vm163 = vc.u32 %v157, %v159
    %v164 = vadd.s32 %v160, 1
    %v165 = vsel %vm163, %v164, %v160
    %v166 = vadd.s32 %v161, %v165
    %v167 = vadd.s32 %v166, 536870912
    %v168 = vshrl.u32 %v167, 30
    %v169 = vshll.u32 %v168, 30
    %v170 = vsub.s32 %v166, %v169
    %vm171 = vcmp.lt.s32.totalorder %v170, 0
    %v172 = vsub.s32 0, %v170
    %v173 = vsel %vm171, %v172, %v170
    %v174 = vclz %v173
    %v175 = vsub.s32 %v174, 2
    %vm176 = vcmp.gt.s32.totalorder 0, %v175
    %v177 = vsel %vm176, 0, %v175
    %v178 = vsub.s32 32, %v177
    %v179 = vshll.u32 %v170, %v177
    %v180 = vshrl.u32 %v162, %v178
    %v181 = vor.u32 %v179, %v180
    %v182 = vsub.s32 4294967266, %v177
    %v183 = vadd.s32 %v182, 127
    %v184 = vshll.u32 %v183, 23
    %v185 = vor.u32 4788187, %v184
    %v186 = vand.u32 2147483647, %v185
    %v188 = vcvt.s32.f32 %v181
    %v189 = vmul.f32 %v188, %v186
    %v190 = vxor.u32 %v189, 2147483648
    %v191 = vsel %vm108, %v190, %v189
    %v192 = vsub.s32 4, %v168
    %v193 = vsel %vm108, %v192, %v168
    %v194 = vsel %vm107, %v104, %v191
    %v195 = vsel %vm107, 0, %v193
    %v196 = vcosq.f32.pop %v194
    %v197 = vsinq.f32.pop %v194
    %vm198 = vweird.f32 %v104
    %v199 = vand.u32 %v195, 3
    %vm200 = vcmp.lt.s32.totalorder %v199, 2
    %vm201 = vcmp.eq.s32.totalorder %v199, 0
    %v202 = vxor.u32 %v197, 2147483648
    %v203 = vsel %vm201, %v196, %v202
    %vm204 = vcmp.eq.s32.totalorder %v199, 2
    %v205 = vxor.u32 %v196, 2147483648
    %v206 = vsel %vm204, %v205, %v197
    %v207 = vsel %vm200, %v203, %v206
    %v208 = vsel %vm198, nan, %v207
    %v209 = vand.u32 2147483647, %v105
    %vm210 = vcmp.le.f32.partialorder %v209, 0.7853982
    %vm211 = vcmp.lt.s32.totalorder %v105, 0
    %v212 = vand.u32 %v105, 2139095040
    %v213 = vshrl.u32 %v212, 23
    %v214 = vsub.s32 %v213, 127
    %v215 = vand.u32 2147483647, %v105
    %v216 = vand.u32 %v215, 8388607
    %v217 = vor.u32 %v216, 8388608
    %v218 = vsub.s32 0, %v217
    %v219 = vadd.s32 %v214, 1
    %vm220 = vcmp.gt.s32.totalorder %v219, 0
    %v221 = vsel %vm220, %v219, 0
    %v222 = vshrl.u32 %v221, 5
    %v223 = vand.u32 %v221, 31
    %v224 = vsub.s32 32, %v223
    %v225 = vshrl.u32 683565275, %v224
    %v226 = vshll.u32 683565275, %v223
    %v227 = vshrl.u32 2475754826, %v224
    %v228 = vor.u32 %v226, %v227
    %v229 = vshll.u32 2475754826, %v223
    %v230 = vshrl.u32 2131351028, %v224
    %v231 = vor.u32 %v229, %v230
    %v232 = vshll.u32 2131351028, %v223
    %v233 = vshrl.u32 2102212464, %v224
    %v234 = vor.u32 %v232, %v233
    %v235 = vshll.u32 2102212464, %v223
    %v236 = vshrl.u32 920167782, %v224
    %v237 = vor.u32 %v235, %v236
    %v238 = vshll.u32 920167782, %v223
    %v239 = vshrl.u32 1326507024, %v224
    %v240 = vor.u32 %v238, %v239
    %vm241 = vcmp.lt.s32.totalorder %v222, 1
    %vm242 = vcmp.lt.s32.totalorder %v222, 2
    %vm243 = vcmp.lt.s32.totalorder %v222, 3
    %vm244 = vcmp.lt.s32.totalorder %v222, 4
    %v245 = vsel %vm241, %v225, %v228
    %v246 = vsel %vm244, %v234, 2102212464
    %v247 = vsel %vm243, %v231, %v246
    %v248 = vsel %vm242, %v245, %v247
    %v249 = vsel %vm241, %v228, %v231
    %v250 = vsel %vm244, %v237, 920167782
    %v251 = vsel %vm243, %v234, %v250
    %v252 = vsel %vm242, %v249, %v251
    %v253 = vsel %vm241, %v231, %v234
    %v254 = vsel %vm244, %v240, 1326507024
    %v255 = vsel %vm243, %v237, %v254
    %v256 = vsel %vm242, %v253, %v255
    %v257 = vshll.u32 %v217, 8
    %v258 = vmul.u32.u64.compose %v257, %v256
    %v259 = vextract.low.u32 %v258
    %v260 = vextract.high.u32 %v258
    %v261 = vmul.u32.u64.compose %v257, %v252
    %v262 = vextract.low.u32 %v261
    %v263 = vextract.high.u32 %v261
    %v264 = vmul.u32 %v257, %v248
    %v265 = vadd.s32 %v260, %v262
    %vm266 = vc.u32 %v260, %v262
    %v267 = vadd.s32 %v263, 1
    %v268 = vsel %vm266, %v267, %v263
    %v269 = vadd.s32 %v264, %v268
    %v270 = vadd.s32 %v269, 536870912
    %v271 = vshrl.u32 %v270, 30
    %v272 = vshll.u32 %v271, 30
    %v273 = vsub.s32 %v269, %v272
    %vm274 = vcmp.lt.s32.totalorder %v273, 0
    %v275 = vsub.s32 0, %v273
    %v276 = vsel %vm274, %v275, %v273
    %v277 = vclz %v276
    %v278 = vsub.s32 %v277, 2
    %vm279 = vcmp.gt.s32.totalorder 0, %v278
    %v280 = vsel %vm279, 0, %v278
    %v281 = vsub.s32 32, %v280
    %v282 = vshll.u32 %v273, %v280
    %v283 = vshrl.u32 %v265, %v281
    %v284 = vor.u32 %v282, %v283
    %v285 = vsub.s32 4294967266, %v280
    %v286 = vadd.s32 %v285, 127
    %v287 = vshll.u32 %v286, 23
    %v288 = vor.u32 4788187, %v287
    %v289 = vand.u32 2147483647, %v288
    %v291 = vcvt.s32.f32 %v284
    %v292 = vmul.f32 %v291, %v289
    %v293 = vxor.u32 %v292, 2147483648
    %v294 = vsel %vm211, %v293, %v292
    %v295 = vsub.s32 4, %v271
    %v296 = vsel %vm211, %v295, %v271
    %v297 = vsel %vm210, %v105, %v294
    %v298 = vsel %vm210, 0, %v296
    %v299 = vcosq.f32.pop %v297
    %v300 = vsinq.f32.pop %v297
    %vm301 = vweird.f32 %v105
    %v302 = vand.u32 %v298, 3
    %vm303 = vcmp.lt.s32.totalorder %v302, 2
    %vm304 = vcmp.eq.s32.totalorder %v302, 0
    %v305 = vxor.u32 %v300, 2147483648
    %v306 = vsel %vm304, %v299, %v305
    %vm307 = vcmp.eq.s32.totalorder %v302, 2
    %v308 = vxor.u32 %v299, 2147483648
    %v309 = vsel %vm307, %v308, %v300
    %v310 = vsel %vm303, %v306, %v309
    %v311 = vsel %vm301, nan, %v310
    %v312 = vand.u32 2147483647, %v104
    %vm313 = vcmp.le.f32.partialorder %v312, 0.7853982
    %vm314 = vcmp.lt.s32.totalorder %v104, 0
    %v315 = vand.u32 %v104, 2139095040
    %v316 = vshrl.u32 %v315, 23
    %v317 = vsub.s32 %v316, 127
    %v318 = vand.u32 2147483647, %v104
    %v319 = vand.u32 %v318, 8388607
    %v320 = vor.u32 %v319, 8388608
    %v321 = vsub.s32 0, %v320
    %v322 = vadd.s32 %v317, 1
    %vm323 = vcmp.gt.s32.totalorder %v322, 0
    %v324 = vsel %vm323, %v322, 0
    %v325 = vshrl.u32 %v324, 5
    %v326 = vand.u32 %v324, 31
    %v327 = vsub.s32 32, %v326
    %v328 = vshrl.u32 683565275, %v327
    %v329 = vshll.u32 683565275, %v326
    %v330 = vshrl.u32 2475754826, %v327
    %v331 = vor.u32 %v329, %v330
    %v332 = vshll.u32 2475754826, %v326
    %v333 = vshrl.u32 2131351028, %v327
    %v334 = vor.u32 %v332, %v333
    %v335 = vshll.u32 2131351028, %v326
    %v336 = vshrl.u32 2102212464, %v327
    %v337 = vor.u32 %v335, %v336
    %v338 = vshll.u32 2102212464, %v326
    %v339 = vshrl.u32 920167782, %v327
    %v340 = vor.u32 %v338, %v339
    %v341 = vshll.u32 920167782, %v326
    %v342 = vshrl.u32 1326507024, %v327
    %v343 = vor.u32 %v341, %v342
    %vm344 = vcmp.lt.s32.totalorder %v325, 1
    %vm345 = vcmp.lt.s32.totalorder %v325, 2
    %vm346 = vcmp.lt.s32.totalorder %v325, 3
    %vm347 = vcmp.lt.s32.totalorder %v325, 4
    %v348 = vsel %vm344, %v328, %v331
    %v349 = vsel %vm347, %v337, 2102212464
    %v350 = vsel %vm346, %v334, %v349
    %v351 = vsel %vm345, %v348, %v350
    %v352 = vsel %vm344, %v331, %v334
    %v353 = vsel %vm347, %v340, 920167782
    %v354 = vsel %vm346, %v337, %v353
    %v355 = vsel %vm345, %v352, %v354
    %v356 = vsel %vm344, %v334, %v337
    %v357 = vsel %vm347, %v343, 1326507024
    %v358 = vsel %vm346, %v340, %v357
    %v359 = vsel %vm345, %v356, %v358
    %v360 = vshll.u32 %v320, 8
    %v361 = vmul.u32.u64.compose %v360, %v359
    %v362 = vextract.low.u32 %v361
    %v363 = vextract.high.u32 %v361
    %v364 = vmul.u32.u64.compose %v360, %v355
    %v365 = vextract.low.u32 %v364
    %v366 = vextract.high.u32 %v364
    %v367 = vmul.u32 %v360, %v351
    %v368 = vadd.s32 %v363, %v365
    %vm369 = vc.u32 %v363, %v365
    %v370 = vadd.s32 %v366, 1
    %v371 = vsel %vm369, %v370, %v366
    %v372 = vadd.s32 %v367, %v371
    %v373 = vadd.s32 %v372, 536870912
    %v374 = vshrl.u32 %v373, 30
    %v375 = vshll.u32 %v374, 30
    %v376 = vsub.s32 %v372, %v375
    %vm377 = vcmp.lt.s32.totalorder %v376, 0
    %v378 = vsub.s32 0, %v376
    %v379 = vsel %vm377, %v378, %v376
    %v380 = vclz %v379
    %v381 = vsub.s32 %v380, 2
    %vm382 = vcmp.gt.s32.totalorder 0, %v381
    %v383 = vsel %vm382, 0, %v381
    %v384 = vsub.s32 32, %v383
    %v385 = vshll.u32 %v376, %v383
    %v386 = vshrl.u32 %v368, %v384
    %v387 = vor.u32 %v385, %v386
    %v388 = vsub.s32 4294967266, %v383
    %v389 = vadd.s32 %v388, 127
    %v390 = vshll.u32 %v389, 23
    %v391 = vor.u32 4788187, %v390
    %v392 = vand.u32 2147483647, %v391
    %v394 = vcvt.s32.f32 %v387
    %v395 = vmul.f32 %v394, %v392
    %v396 = vxor.u32 %v395, 2147483648
    %v397 = vsel %vm314, %v396, %v395
    %v398 = vsub.s32 4, %v374
    %v399 = vsel %vm314, %v398, %v374
    %v400 = vsel %vm313, %v104, %v397
    %v401 = vsel %vm313, 0, %v399
    %v402 = vcosq.f32.pop %v400
    %v403 = vsinq.f32.pop %v400
    %vm404 = vweird.f32 %v104
    %v405 = vadd.s32 %v401, 3
    %v406 = vand.u32 %v405, 3
    %vm407 = vcmp.lt.s32.totalorder %v406, 2
    %vm408 = vcmp.eq.s32.totalorder %v406, 0
    %v409 = vxor.u32 %v403, 2147483648
    %v410 = vsel %vm408, %v402, %v409
    %vm411 = vcmp.eq.s32.totalorder %v406, 2
    %v412 = vxor.u32 %v402, 2147483648
    %v413 = vsel %vm411, %v412, %v403
    %v414 = vsel %vm407, %v410, %v413
    %v415 = vsel %vm404, nan, %v414
    %v416 = vand.u32 2147483647, %v105
    %vm417 = vcmp.le.f32.partialorder %v416, 0.7853982
    %vm418 = vcmp.lt.s32.totalorder %v105, 0
    %v419 = vand.u32 %v105, 2139095040
    %v420 = vshrl.u32 %v419, 23
    %v421 = vsub.s32 %v420, 127
    %v422 = vand.u32 2147483647, %v105
    %v423 = vand.u32 %v422, 8388607
    %v424 = vor.u32 %v423, 8388608
    %v425 = vsub.s32 0, %v424
    %v426 = vadd.s32 %v421, 1
    %vm427 = vcmp.gt.s32.totalorder %v426, 0
    %v428 = vsel %vm427, %v426, 0
    %v429 = vshrl.u32 %v428, 5
    %v430 = vand.u32 %v428, 31
    %v431 = vsub.s32 32, %v430
    %v432 = vshrl.u32 683565275, %v431
    %v433 = vshll.u32 683565275, %v430
    %v434 = vshrl.u32 2475754826, %v431
    %v435 = vor.u32 %v433, %v434
    %v436 = vshll.u32 2475754826, %v430
    %v437 = vshrl.u32 2131351028, %v431
    %v438 = vor.u32 %v436, %v437
    %v439 = vshll.u32 2131351028, %v430
    %v440 = vshrl.u32 2102212464, %v431
    %v441 = vor.u32 %v439, %v440
    %v442 = vshll.u32 2102212464, %v430
    %v443 = vshrl.u32 920167782, %v431
    %v444 = vor.u32 %v442, %v443
    %v445 = vshll.u32 920167782, %v430
    %v446 = vshrl.u32 1326507024, %v431
    %v447 = vor.u32 %v445, %v446
    %vm448 = vcmp.lt.s32.totalorder %v429, 1
    %vm449 = vcmp.lt.s32.totalorder %v429, 2
    %vm450 = vcmp.lt.s32.totalorder %v429, 3
    %vm451 = vcmp.lt.s32.totalorder %v429, 4
    %v452 = vsel %vm448, %v432, %v435
    %v453 = vsel %vm451, %v441, 2102212464
    %v454 = vsel %vm450, %v438, %v453
    %v455 = vsel %vm449, %v452, %v454
    %v456 = vsel %vm448, %v435, %v438
    %v457 = vsel %vm451, %v444, 920167782
    %v458 = vsel %vm450, %v441, %v457
    %v459 = vsel %vm449, %v456, %v458
    %v460 = vsel %vm448, %v438, %v441
    %v461 = vsel %vm451, %v447, 1326507024
    %v462 = vsel %vm450, %v444, %v461
    %v463 = vsel %vm449, %v460, %v462
    %v464 = vshll.u32 %v424, 8
    %v465 = vmul.u32.u64.compose %v464, %v463
    %v466 = vextract.low.u32 %v465
    %v467 = vextract.high.u32 %v465
    %v468 = vmul.u32.u64.compose %v464, %v459
    %v469 = vextract.low.u32 %v468
    %v470 = vextract.high.u32 %v468
    %v471 = vmul.u32 %v464, %v455
    %v472 = vadd.s32 %v467, %v469
    %vm473 = vc.u32 %v467, %v469
    %v474 = vadd.s32 %v470, 1
    %v475 = vsel %vm473, %v474, %v470
    %v476 = vadd.s32 %v471, %v475
    %v477 = vadd.s32 %v476, 536870912
    %v478 = vshrl.u32 %v477, 30
    %v479 = vshll.u32 %v478, 30
    %v480 = vsub.s32 %v476, %v479
    %vm481 = vcmp.lt.s32.totalorder %v480, 0
    %v482 = vsub.s32 0, %v480
    %v483 = vsel %vm481, %v482, %v480
    %v484 = vclz %v483
    %v485 = vsub.s32 %v484, 2
    %vm486 = vcmp.gt.s32.totalorder 0, %v485
    %v487 = vsel %vm486, 0, %v485
    %v488 = vsub.s32 32, %v487
    %v489 = vshll.u32 %v480, %v487
    %v490 = vshrl.u32 %v472, %v488
    %v491 = vor.u32 %v489, %v490
    %v492 = vsub.s32 4294967266, %v487
    %v493 = vadd.s32 %v492, 127
    %v494 = vshll.u32 %v493, 23
    %v495 = vor.u32 4788187, %v494
    %v496 = vand.u32 2147483647, %v495
    %v498 = vcvt.s32.f32 %v491
    %v499 = vmul.f32 %v498, %v496
    %v500 = vxor.u32 %v499, 2147483648
    %v501 = vsel %vm418, %v500, %v499
    %v502 = vsub.s32 4, %v478
    %v503 = vsel %vm418, %v502, %v478
    %v504 = vsel %vm417, %v105, %v501
    %v505 = vsel %vm417, 0, %v503
    %v506 = vcosq.f32.pop %v504
    %v507 = vsinq.f32.pop %v504
    %vm508 = vweird.f32 %v105
    %v509 = vadd.s32 %v505, 3
    %v510 = vand.u32 %v509, 3
    %vm511 = vcmp.lt.s32.totalorder %v510, 2
    %vm512 = vcmp.eq.s32.totalorder %v510, 0
    %v513 = vxor.u32 %v507, 2147483648
    %v514 = vsel %vm512, %v506, %v513
    %vm515 = vcmp.eq.s32.totalorder %v510, 2
    %v516 = vxor.u32 %v506, 2147483648
    %v517 = vsel %vm515, %v516, %v507
    %v518 = vsel %vm511, %v514, %v517
    %v519 = vsel %vm508, nan, %v518
    %v520 = vld [vmem:[%s3] sm:$0xff]
    %v521 = vld [vmem:[%s3 + $0x8] sm:$0xff]
    %v522 = vld [vmem:[%s3 + $0x10] sm:$0xff]
    %v523 = vld [vmem:[%s3 + $0x18] sm:$0xff]
    %v524 = vld [vmem:[%s3 + $0x20] sm:$0xff]
    %v525 = vld [vmem:[%s3 + $0x28] sm:$0xff]
    %v526 = vld [vmem:[%s3 + $0x30] sm:$0xff]
    %v527 = vld [vmem:[%s3 + $0x38] sm:$0xff]
    %v528 = vld [vmem:[%s3 + $0x40] sm:$0xff]
    %v529 = vld [vmem:[%s3 + $0x48] sm:$0xff]
    %v530 = vld [vmem:[%s3 + $0x50] sm:$0xff]
    %v531 = vld [vmem:[%s3 + $0x58] sm:$0xff]
    %v532 = vld [vmem:[%s3 + $0x60] sm:$0xff]
    %v533 = vld [vmem:[%s3 + $0x68] sm:$0xff]
    %v534 = vld [vmem:[%s3 + $0x70] sm:$0xff]
    %v535 = vld [vmem:[%s3 + $0x78] sm:$0xff]
    %v536 = vld [vmem:[%s5] sm:$0x1]
    %538 = vset.pattern.permute.xlu0 0
    %539 = vperm.xlu0 %538, %v520
    %v540 = vpop.permute.xlu0 %539
    %543 = vset.pattern.permute.xlu0 0
    %544 = vperm.xlu0 %543, %v521
    %v545 = vpop.permute.xlu0 %544
    %548 = vset.pattern.permute.xlu0 0
    %549 = vperm.xlu0 %548, %v522
    %v550 = vpop.permute.xlu0 %549
    %553 = vset.pattern.permute.xlu0 0
    %554 = vperm.xlu0 %553, %v523
    %v555 = vpop.permute.xlu0 %554
    %558 = vset.pattern.permute.xlu0 0
    %559 = vperm.xlu0 %558, %v524
    %v560 = vpop.permute.xlu0 %559
    %563 = vset.pattern.permute.xlu0 0
    %564 = vperm.xlu0 %563, %v525
    %v565 = vpop.permute.xlu0 %564
    %568 = vset.pattern.permute.xlu0 0
    %569 = vperm.xlu0 %568, %v526
    %v570 = vpop.permute.xlu0 %569
    %573 = vset.pattern.permute.xlu0 0
    %574 = vperm.xlu0 %573, %v527
    %v575 = vpop.permute.xlu0 %574
    %578 = vset.pattern.permute.xlu0 0
    %579 = vperm.xlu0 %578, %v528
    %v580 = vpop.permute.xlu0 %579
    %583 = vset.pattern.permute.xlu0 0
    %584 = vperm.xlu0 %583, %v529
    %v585 = vpop.permute.xlu0 %584
    %588 = vset.pattern.permute.xlu0 0
    %589 = vperm.xlu0 %588, %v530
    %v590 = vpop.permute.xlu0 %589
    %593 = vset.pattern.permute.xlu0 0
    %594 = vperm.xlu0 %593, %v531
    %v595 = vpop.permute.xlu0 %594
    %598 = vset.pattern.permute.xlu0 0
    %599 = vperm.xlu0 %598, %v532
    %v600 = vpop.permute.xlu0 %599
    %603 = vset.pattern.permute.xlu0 0
    %604 = vperm.xlu0 %603, %v533
    %v605 = vpop.permute.xlu0 %604
    %608 = vset.pattern.permute.xlu0 0
    %609 = vperm.xlu0 %608, %v534
    %v610 = vpop.permute.xlu0 %609
    %613 = vset.pattern.permute.xlu0 0
    %614 = vperm.xlu0 %613, %v535
    %v615 = vpop.permute.xlu0 %614
    %v618 = vlaneseq
    %v619 = vshrl.u32 %v618, 7
    %v620 = vsub.s32 0, %v619
    %v621 = vrot.slane %v536, %v620
    %v623 = vmul.f32 %v540, %v621
    %v624 = vmul.f32 %v545, %v621
    %v625 = vmul.f32 %v550, %v621
    %v626 = vmul.f32 %v555, %v621
    %v627 = vmul.f32 %v560, %v621
    %v628 = vmul.f32 %v565, %v621
    %v629 = vmul.f32 %v570, %v621
    %v630 = vmul.f32 %v575, %v621
    %v631 = vmul.f32 %v580, %v621
    %v632 = vmul.f32 %v585, %v621
    %v633 = vmul.f32 %v590, %v621
    %v634 = vmul.f32 %v595, %v621
    %v635 = vmul.f32 %v600, %v621
    %v636 = vmul.f32 %v605, %v621
    %v637 = vmul.f32 %v610, %v621
    %v638 = vmul.f32 %v615, %v621
    %v639 = vand.u32 2147483647, %v623
    %vm640 = vcmp.le.f32.partialorder %v639, 0.7853982
    %vm641 = vcmp.lt.s32.totalorder %v623, 0
    %v642 = vand.u32 %v623, 2139095040
    %v643 = vshrl.u32 %v642, 23
    %v644 = vsub.s32 %v643, 127
    %v645 = vand.u32 2147483647, %v623
    %v646 = vand.u32 %v645, 8388607
    %v647 = vor.u32 %v646, 8388608
    %v648 = vsub.s32 0, %v647
    %v649 = vadd.s32 %v644, 1
    %vm650 = vcmp.gt.s32.totalorder %v649, 0
    %v651 = vsel %vm650, %v649, 0
    %v652 = vshrl.u32 %v651, 5
    %v653 = vand.u32 %v651, 31
    %v654 = vsub.s32 32, %v653
    %v655 = vshrl.u32 683565275, %v654
    %v656 = vshll.u32 683565275, %v653
    %v657 = vshrl.u32 2475754826, %v654
    %v658 = vor.u32 %v656, %v657
    %v659 = vshll.u32 2475754826, %v653
    %v660 = vshrl.u32 2131351028, %v654
    %v661 = vor.u32 %v659, %v660
    %v662 = vshll.u32 2131351028, %v653
    %v663 = vshrl.u32 2102212464, %v654
    %v664 = vor.u32 %v662, %v663
    %v665 = vshll.u32 2102212464, %v653
    %v666 = vshrl.u32 920167782, %v654
    %v667 = vor.u32 %v665, %v666
    %v668 = vshll.u32 920167782, %v653
    %v669 = vshrl.u32 1326507024, %v654
    %v670 = vor.u32 %v668, %v669
    %vm671 = vcmp.lt.s32.totalorder %v652, 1
    %vm672 = vcmp.lt.s32.totalorder %v652, 2
    %vm673 = vcmp.lt.s32.totalorder %v652, 3
    %vm674 = vcmp.lt.s32.totalorder %v652, 4
    %v675 = vsel %vm671, %v655, %v658
    %v676 = vsel %vm674, %v664, 2102212464
    %v677 = vsel %vm673, %v661, %v676
    %v678 = vsel %vm672, %v675, %v677
    %v679 = vsel %vm671, %v658, %v661
    %v680 = vsel %vm674, %v667, 920167782
    %v681 = vsel %vm673, %v664, %v680
    %v682 = vsel %vm672, %v679, %v681
    %v683 = vsel %vm671, %v661, %v664
    %v684 = vsel %vm674, %v670, 1326507024
    %v685 = vsel %vm673, %v667, %v684
    %v686 = vsel %vm672, %v683, %v685
    %v687 = vshll.u32 %v647, 8
    %v688 = vmul.u32.u64.compose %v687, %v686
    %v689 = vextract.low.u32 %v688
    %v690 = vextract.high.u32 %v688
    %v691 = vmul.u32.u64.compose %v687, %v682
    %v692 = vextract.low.u32 %v691
    %v693 = vextract.high.u32 %v691
    %v694 = vmul.u32 %v687, %v678
    %v695 = vadd.s32 %v690, %v692
    %vm696 = vc.u32 %v690, %v692
    %v697 = vadd.s32 %v693, 1
    %v698 = vsel %vm696, %v697, %v693
    %v699 = vadd.s32 %v694, %v698
    %v700 = vadd.s32 %v699, 536870912
    %v701 = vshrl.u32 %v700, 30
    %v702 = vshll.u32 %v701, 30
    %v703 = vsub.s32 %v699, %v702
    %vm704 = vcmp.lt.s32.totalorder %v703, 0
    %v705 = vsub.s32 0, %v703
    %v706 = vsel %vm704, %v705, %v703
    %v707 = vclz %v706
    %v708 = vsub.s32 %v707, 2
    %vm709 = vcmp.gt.s32.totalorder 0, %v708
    %v710 = vsel %vm709, 0, %v708
    %v711 = vsub.s32 32, %v710
    %v712 = vshll.u32 %v703, %v710
    %v713 = vshrl.u32 %v695, %v711
    %v714 = vor.u32 %v712, %v713
    %v715 = vsub.s32 4294967266, %v710
    %v716 = vadd.s32 %v715, 127
    %v717 = vshll.u32 %v716, 23
    %v718 = vor.u32 4788187, %v717
    %v719 = vand.u32 2147483647, %v718
    %v721 = vcvt.s32.f32 %v714
    %v722 = vmul.f32 %v721, %v719
    %v723 = vxor.u32 %v722, 2147483648
    %v724 = vsel %vm641, %v723, %v722
    %v725 = vsub.s32 4, %v701
    %v726 = vsel %vm641, %v725, %v701
    %v727 = vsel %vm640, %v623, %v724
    %v728 = vsel %vm640, 0, %v726
    %v729 = vcosq.f32.pop %v727
    %v730 = vsinq.f32.pop %v727
    %vm731 = vweird.f32 %v623
    %v732 = vand.u32 %v728, 3
    %vm733 = vcmp.lt.s32.totalorder %v732, 2
    %vm734 = vcmp.eq.s32.totalorder %v732, 0
    %v735 = vxor.u32 %v730, 2147483648
    %v736 = vsel %vm734, %v729, %v735
    %vm737 = vcmp.eq.s32.totalorder %v732, 2
    %v738 = vxor.u32 %v729, 2147483648
    %v739 = vsel %vm737, %v738, %v730
    %v740 = vsel %vm733, %v736, %v739
    %v741 = vsel %vm731, nan, %v740
    %v742 = vand.u32 2147483647, %v624
    %vm743 = vcmp.le.f32.partialorder %v742, 0.7853982
    %vm744 = vcmp.lt.s32.totalorder %v624, 0
    %v745 = vand.u32 %v624, 2139095040
    %v746 = vshrl.u32 %v745, 23
    %v747 = vsub.s32 %v746, 127
    %v748 = vand.u32 2147483647, %v624
    %v749 = vand.u32 %v748, 8388607
    %v750 = vor.u32 %v749, 8388608
    %v751 = vsub.s32 0, %v750
    %v752 = vadd.s32 %v747, 1
    %vm753 = vcmp.gt.s32.totalorder %v752, 0
    %v754 = vsel %vm753, %v752, 0
    %v755 = vshrl.u32 %v754, 5
    %v756 = vand.u32 %v754, 31
    %v757 = vsub.s32 32, %v756
    %v758 = vshrl.u32 683565275, %v757
    %v759 = vshll.u32 683565275, %v756
    %v760 = vshrl.u32 2475754826, %v757
    %v761 = vor.u32 %v759, %v760
    %v762 = vshll.u32 2475754826, %v756
    %v763 = vshrl.u32 2131351028, %v757
    %v764 = vor.u32 %v762, %v763
    %v765 = vshll.u32 2131351028, %v756
    %v766 = vshrl.u32 2102212464, %v757
    %v767 = vor.u32 %v765, %v766
    %v768 = vshll.u32 2102212464, %v756
    %v769 = vshrl.u32 920167782, %v757
    %v770 = vor.u32 %v768, %v769
    %v771 = vshll.u32 920167782, %v756
    %v772 = vshrl.u32 1326507024, %v757
    %v773 = vor.u32 %v771, %v772
    %vm774 = vcmp.lt.s32.totalorder %v755, 1
    %vm775 = vcmp.lt.s32.totalorder %v755, 2
    %vm776 = vcmp.lt.s32.totalorder %v755, 3
    %vm777 = vcmp.lt.s32.totalorder %v755, 4
    %v778 = vsel %vm774, %v758, %v761
    %v779 = vsel %vm777, %v767, 2102212464
    %v780 = vsel %vm776, %v764, %v779
    %v781 = vsel %vm775, %v778, %v780
    %v782 = vsel %vm774, %v761, %v764
    %v783 = vsel %vm777, %v770, 920167782
    %v784 = vsel %vm776, %v767, %v783
    %v785 = vsel %vm775, %v782, %v784
    %v786 = vsel %vm774, %v764, %v767
    %v787 = vsel %vm777, %v773, 1326507024
    %v788 = vsel %vm776, %v770, %v787
    %v789 = vsel %vm775, %v786, %v788
    %v790 = vshll.u32 %v750, 8
    %v791 = vmul.u32.u64.compose %v790, %v789
    %v792 = vextract.low.u32 %v791
    %v793 = vextract.high.u32 %v791
    %v794 = vmul.u32.u64.compose %v790, %v785
    %v795 = vextract.low.u32 %v794
    %v796 = vextract.high.u32 %v794
    %v797 = vmul.u32 %v790, %v781
    %v798 = vadd.s32 %v793, %v795
    %vm799 = vc.u32 %v793, %v795
    %v800 = vadd.s32 %v796, 1
    %v801 = vsel %vm799, %v800, %v796
    %v802 = vadd.s32 %v797, %v801
    %v803 = vadd.s32 %v802, 536870912
    %v804 = vshrl.u32 %v803, 30
    %v805 = vshll.u32 %v804, 30
    %v806 = vsub.s32 %v802, %v805
    %vm807 = vcmp.lt.s32.totalorder %v806, 0
    %v808 = vsub.s32 0, %v806
    %v809 = vsel %vm807, %v808, %v806
    %v810 = vclz %v809
    %v811 = vsub.s32 %v810, 2
    %vm812 = vcmp.gt.s32.totalorder 0, %v811
    %v813 = vsel %vm812, 0, %v811
    %v814 = vsub.s32 32, %v813
    %v815 = vshll.u32 %v806, %v813
    %v816 = vshrl.u32 %v798, %v814
    %v817 = vor.u32 %v815, %v816
    %v818 = vsub.s32 4294967266, %v813
    %v819 = vadd.s32 %v818, 127
    %v820 = vshll.u32 %v819, 23
    %v821 = vor.u32 4788187, %v820
    %v822 = vand.u32 2147483647, %v821
    %v824 = vcvt.s32.f32 %v817
    %v825 = vmul.f32 %v824, %v822
    %v826 = vxor.u32 %v825, 2147483648
    %v827 = vsel %vm744, %v826, %v825
    %v828 = vsub.s32 4, %v804
    %v829 = vsel %vm744, %v828, %v804
    %v830 = vsel %vm743, %v624, %v827
    %v831 = vsel %vm743, 0, %v829
    %v832 = vcosq.f32.pop %v830
    %v833 = vsinq.f32.pop %v830
    %vm834 = vweird.f32 %v624
    %v835 = vand.u32 %v831, 3
    %vm836 = vcmp.lt.s32.totalorder %v835, 2
    %vm837 = vcmp.eq.s32.totalorder %v835, 0
    %v838 = vxor.u32 %v833, 2147483648
    %v839 = vsel %vm837, %v832, %v838
    %vm840 = vcmp.eq.s32.totalorder %v835, 2
    %v841 = vxor.u32 %v832, 2147483648
    %v842 = vsel %vm840, %v841, %v833
    %v843 = vsel %vm836, %v839, %v842
    %v844 = vsel %vm834, nan, %v843
    %v845 = vand.u32 2147483647, %v625
    %vm846 = vcmp.le.f32.partialorder %v845, 0.7853982
    %vm847 = vcmp.lt.s32.totalorder %v625, 0
    %v848 = vand.u32 %v625, 2139095040
    %v849 = vshrl.u32 %v848, 23
    %v850 = vsub.s32 %v849, 127
    %v851 = vand.u32 2147483647, %v625
    %v852 = vand.u32 %v851, 8388607
    %v853 = vor.u32 %v852, 8388608
    %v854 = vsub.s32 0, %v853
    %v855 = vadd.s32 %v850, 1
    %vm856 = vcmp.gt.s32.totalorder %v855, 0
    %v857 = vsel %vm856, %v855, 0
    %v858 = vshrl.u32 %v857, 5
    %v859 = vand.u32 %v857, 31
    %v860 = vsub.s32 32, %v859
    %v861 = vshrl.u32 683565275, %v860
    %v862 = vshll.u32 683565275, %v859
    %v863 = vshrl.u32 2475754826, %v860
    %v864 = vor.u32 %v862, %v863
    %v865 = vshll.u32 2475754826, %v859
    %v866 = vshrl.u32 2131351028, %v860
    %v867 = vor.u32 %v865, %v866
    %v868 = vshll.u32 2131351028, %v859
    %v869 = vshrl.u32 2102212464, %v860
    %v870 = vor.u32 %v868, %v869
    %v871 = vshll.u32 2102212464, %v859
    %v872 = vshrl.u32 920167782, %v860
    %v873 = vor.u32 %v871, %v872
    %v874 = vshll.u32 920167782, %v859
    %v875 = vshrl.u32 1326507024, %v860
    %v876 = vor.u32 %v874, %v875
    %vm877 = vcmp.lt.s32.totalorder %v858, 1
    %vm878 = vcmp.lt.s32.totalorder %v858, 2
    %vm879 = vcmp.lt.s32.totalorder %v858, 3
    %vm880 = vcmp.lt.s32.totalorder %v858, 4
    %v881 = vsel %vm877, %v861, %v864
    %v882 = vsel %vm880, %v870, 2102212464
    %v883 = vsel %vm879, %v867, %v882
    %v884 = vsel %vm878, %v881, %v883
    %v885 = vsel %vm877, %v864, %v867
    %v886 = vsel %vm880, %v873, 920167782
    %v887 = vsel %vm879, %v870, %v886
    %v888 = vsel %vm878, %v885, %v887
    %v889 = vsel %vm877, %v867, %v870
    %v890 = vsel %vm880, %v876, 1326507024
    %v891 = vsel %vm879, %v873, %v890
    %v892 = vsel %vm878, %v889, %v891
    %v893 = vshll.u32 %v853, 8
    %v894 = vmul.u32.u64.compose %v893, %v892
    %v895 = vextract.low.u32 %v894
    %v896 = vextract.high.u32 %v894
    %v897 = vmul.u32.u64.compose %v893, %v888
    %v898 = vextract.low.u32 %v897
    %v899 = vextract.high.u32 %v897
    %v900 = vmul.u32 %v893, %v884
    %v901 = vadd.s32 %v896, %v898
    %vm902 = vc.u32 %v896, %v898
    %v903 = vadd.s32 %v899, 1
    %v904 = vsel %vm902, %v903, %v899
    %v905 = vadd.s32 %v900, %v904
    %v906 = vadd.s32 %v905, 536870912
    %v907 = vshrl.u32 %v906, 30
    %v908 = vshll.u32 %v907, 30
    %v909 = vsub.s32 %v905, %v908
    %vm910 = vcmp.lt.s32.totalorder %v909, 0
    %v911 = vsub.s32 0, %v909
    %v912 = vsel %vm910, %v911, %v909
    %v913 = vclz %v912
    %v914 = vsub.s32 %v913, 2
    %vm915 = vcmp.gt.s32.totalorder 0, %v914
    %v916 = vsel %vm915, 0, %v914
    %v917 = vsub.s32 32, %v916
    %v918 = vshll.u32 %v909, %v916
    %v919 = vshrl.u32 %v901, %v917
    %v920 = vor.u32 %v918, %v919
    %v921 = vsub.s32 4294967266, %v916
    %v922 = vadd.s32 %v921, 127
    %v923 = vshll.u32 %v922, 23
    %v924 = vor.u32 4788187, %v923
    %v925 = vand.u32 2147483647, %v924
    %v927 = vcvt.s32.f32 %v920
    %v928 = vmul.f32 %v927, %v925
    %v929 = vxor.u32 %v928, 2147483648
    %v930 = vsel %vm847, %v929, %v928
    %v931 = vsub.s32 4, %v907
    %v932 = vsel %vm847, %v931, %v907
    %v933 = vsel %vm846, %v625, %v930
    %v934 = vsel %vm846, 0, %v932
    %v935 = vcosq.f32.pop %v933
    %v936 = vsinq.f32.pop %v933
    %vm937 = vweird.f32 %v625
    %v938 = vand.u32 %v934, 3
    %vm939 = vcmp.lt.s32.totalorder %v938, 2
    %vm940 = vcmp.eq.s32.totalorder %v938, 0
    %v941 = vxor.u32 %v936, 2147483648
    %v942 = vsel %vm940, %v935, %v941
    %vm943 = vcmp.eq.s32.totalorder %v938, 2
    %v944 = vxor.u32 %v935, 2147483648
    %v945 = vsel %vm943, %v944, %v936
    %v946 = vsel %vm939, %v942, %v945
    %v947 = vsel %vm937, nan, %v946
    %v948 = vand.u32 2147483647, %v626
    %vm949 = vcmp.le.f32.partialorder %v948, 0.7853982
    %vm950 = vcmp.lt.s32.totalorder %v626, 0
    %v951 = vand.u32 %v626, 2139095040
    %v952 = vshrl.u32 %v951, 23
    %v953 = vsub.s32 %v952, 127
    %v954 = vand.u32 2147483647, %v626
    %v955 = vand.u32 %v954, 8388607
    %v956 = vor.u32 %v955, 8388608
    %v957 = vsub.s32 0, %v956
    %v958 = vadd.s32 %v953, 1
    %vm959 = vcmp.gt.s32.totalorder %v958, 0
    %v960 = vsel %vm959, %v958, 0
    %v961 = vshrl.u32 %v960, 5
    %v962 = vand.u32 %v960, 31
    %v963 = vsub.s32 32, %v962
    %v964 = vshrl.u32 683565275, %v963
    %v965 = vshll.u32 683565275, %v962
    %v966 = vshrl.u32 2475754826, %v963
    %v967 = vor.u32 %v965, %v966
    %v968 = vshll.u32 2475754826, %v962
    %v969 = vshrl.u32 2131351028, %v963
    %v970 = vor.u32 %v968, %v969
    %v971 = vshll.u32 2131351028, %v962
    %v972 = vshrl.u32 2102212464, %v963
    %v973 = vor.u32 %v971, %v972
    %v974 = vshll.u32 2102212464, %v962
    %v975 = vshrl.u32 920167782, %v963
    %v976 = vor.u32 %v974, %v975
    %v977 = vshll.u32 920167782, %v962
    %v978 = vshrl.u32 1326507024, %v963
    %v979 = vor.u32 %v977, %v978
    %vm980 = vcmp.lt.s32.totalorder %v961, 1
    %vm981 = vcmp.lt.s32.totalorder %v961, 2
    %vm982 = vcmp.lt.s32.totalorder %v961, 3
    %vm983 = vcmp.lt.s32.totalorder %v961, 4
    %v984 = vsel %vm980, %v964, %v967
    %v985 = vsel %vm983, %v973, 2102212464
    %v986 = vsel %vm982, %v970, %v985
    %v987 = vsel %vm981, %v984, %v986
    %v988 = vsel %vm980, %v967, %v970
    %v989 = vsel %vm983, %v976, 920167782
    %v990 = vsel %vm982, %v973, %v989
    %v991 = vsel %vm981, %v988, %v990
    %v992 = vsel %vm980, %v970, %v973
    %v993 = vsel %vm983, %v979, 1326507024
    %v994 = vsel %vm982, %v976, %v993
    %v995 = vsel %vm981, %v992, %v994
    %v996 = vshll.u32 %v956, 8
    %v997 = vmul.u32.u64.compose %v996, %v995
    %v998 = vextract.low.u32 %v997
    %v999 = vextract.high.u32 %v997
    %v1000 = vmul.u32.u64.compose %v996, %v991
    %v1001 = vextract.low.u32 %v1000
    %v1002 = vextract.high.u32 %v1000
    %v1003 = vmul.u32 %v996, %v987
    %v1004 = vadd.s32 %v999, %v1001
    %vm1005 = vc.u32 %v999, %v1001
    %v1006 = vadd.s32 %v1002, 1
    %v1007 = vsel %vm1005, %v1006, %v1002
    %v1008 = vadd.s32 %v1003, %v1007
    %v1009 = vadd.s32 %v1008, 536870912
    %v1010 = vshrl.u32 %v1009, 30
    %v1011 = vshll.u32 %v1010, 30
    %v1012 = vsub.s32 %v1008, %v1011
    %vm1013 = vcmp.lt.s32.totalorder %v1012, 0
    %v1014 = vsub.s32 0, %v1012
    %v1015 = vsel %vm1013, %v1014, %v1012
    %v1016 = vclz %v1015
    %v1017 = vsub.s32 %v1016, 2
    %vm1018 = vcmp.gt.s32.totalorder 0, %v1017
    %v1019 = vsel %vm1018, 0, %v1017
    %v1020 = vsub.s32 32, %v1019
    %v1021 = vshll.u32 %v1012, %v1019
    %v1022 = vshrl.u32 %v1004, %v1020
    %v1023 = vor.u32 %v1021, %v1022
    %v1024 = vsub.s32 4294967266, %v1019
    %v1025 = vadd.s32 %v1024, 127
    %v1026 = vshll.u32 %v1025, 23
    %v1027 = vor.u32 4788187, %v1026
    %v1028 = vand.u32 2147483647, %v1027
    %v1030 = vcvt.s32.f32 %v1023
    %v1031 = vmul.f32 %v1030, %v1028
    %v1032 = vxor.u32 %v1031, 2147483648
    %v1033 = vsel %vm950, %v1032, %v1031
    %v1034 = vsub.s32 4, %v1010
    %v1035 = vsel %vm950, %v1034, %v1010
    %v1036 = vsel %vm949, %v626, %v1033
    %v1037 = vsel %vm949, 0, %v1035
    %v1038 = vcosq.f32.pop %v1036
    %v1039 = vsinq.f32.pop %v1036
    %vm1040 = vweird.f32 %v626
    %v1041 = vand.u32 %v1037, 3
    %vm1042 = vcmp.lt.s32.totalorder %v1041, 2
    %vm1043 = vcmp.eq.s32.totalorder %v1041, 0
    %v1044 = vxor.u32 %v1039, 2147483648
    %v1045 = vsel %vm1043, %v1038, %v1044
    %vm1046 = vcmp.eq.s32.totalorder %v1041, 2
    %v1047 = vxor.u32 %v1038, 2147483648
    %v1048 = vsel %vm1046, %v1047, %v1039
    %v1049 = vsel %vm1042, %v1045, %v1048
    %v1050 = vsel %vm1040, nan, %v1049
    %v1051 = vand.u32 2147483647, %v627
    %vm1052 = vcmp.le.f32.partialorder %v1051, 0.7853982
    %vm1053 = vcmp.lt.s32.totalorder %v627, 0
    %v1054 = vand.u32 %v627, 2139095040
    %v1055 = vshrl.u32 %v1054, 23
    %v1056 = vsub.s32 %v1055, 127
    %v1057 = vand.u32 2147483647, %v627
    %v1058 = vand.u32 %v1057, 8388607
    %v1059 = vor.u32 %v1058, 8388608
    %v1060 = vsub.s32 0, %v1059
    %v1061 = vadd.s32 %v1056, 1
    %vm1062 = vcmp.gt.s32.totalorder %v1061, 0
    %v1063 = vsel %vm1062, %v1061, 0
    %v1064 = vshrl.u32 %v1063, 5
    %v1065 = vand.u32 %v1063, 31
    %v1066 = vsub.s32 32, %v1065
    %v1067 = vshrl.u32 683565275, %v1066
    %v1068 = vshll.u32 683565275, %v1065
    %v1069 = vshrl.u32 2475754826, %v1066
    %v1070 = vor.u32 %v1068, %v1069
    %v1071 = vshll.u32 2475754826, %v1065
    %v1072 = vshrl.u32 2131351028, %v1066
    %v1073 = vor.u32 %v1071, %v1072
    %v1074 = vshll.u32 2131351028, %v1065
    %v1075 = vshrl.u32 2102212464, %v1066
    %v1076 = vor.u32 %v1074, %v1075
    %v1077 = vshll.u32 2102212464, %v1065
    %v1078 = vshrl.u32 920167782, %v1066
    %v1079 = vor.u32 %v1077, %v1078
    %v1080 = vshll.u32 920167782, %v1065
    %v1081 = vshrl.u32 1326507024, %v1066
    %v1082 = vor.u32 %v1080, %v1081
    %vm1083 = vcmp.lt.s32.totalorder %v1064, 1
    %vm1084 = vcmp.lt.s32.totalorder %v1064, 2
    %vm1085 = vcmp.lt.s32.totalorder %v1064, 3
    %vm1086 = vcmp.lt.s32.totalorder %v1064, 4
    %v1087 = vsel %vm1083, %v1067, %v1070
    %v1088 = vsel %vm1086, %v1076, 2102212464
    %v1089 = vsel %vm1085, %v1073, %v1088
    %v1090 = vsel %vm1084, %v1087, %v1089
    %v1091 = vsel %vm1083, %v1070, %v1073
    %v1092 = vsel %vm1086, %v1079, 920167782
    %v1093 = vsel %vm1085, %v1076, %v1092
    %v1094 = vsel %vm1084, %v1091, %v1093
    %v1095 = vsel %vm1083, %v1073, %v1076
    %v1096 = vsel %vm1086, %v1082, 1326507024
    %v1097 = vsel %vm1085, %v1079, %v1096
    %v1098 = vsel %vm1084, %v1095, %v1097
    %v1099 = vshll.u32 %v1059, 8
    %v1100 = vmul.u32.u64.compose %v1099, %v1098
    %v1101 = vextract.low.u32 %v1100
    %v1102 = vextract.high.u32 %v1100
    %v1103 = vmul.u32.u64.compose %v1099, %v1094
    %v1104 = vextract.low.u32 %v1103
    %v1105 = vextract.high.u32 %v1103
    %v1106 = vmul.u32 %v1099, %v1090
    %v1107 = vadd.s32 %v1102, %v1104
    %vm1108 = vc.u32 %v1102, %v1104
    %v1109 = vadd.s32 %v1105, 1
    %v1110 = vsel %vm1108, %v1109, %v1105
    %v1111 = vadd.s32 %v1106, %v1110
    %v1112 = vadd.s32 %v1111, 536870912
    %v1113 = vshrl.u32 %v1112, 30
    %v1114 = vshll.u32 %v1113, 30
    %v1115 = vsub.s32 %v1111, %v1114
    %vm1116 = vcmp.lt.s32.totalorder %v1115, 0
    %v1117 = vsub.s32 0, %v1115
    %v1118 = vsel %vm1116, %v1117, %v1115
    %v1119 = vclz %v1118
    %v1120 = vsub.s32 %v1119, 2
    %vm1121 = vcmp.gt.s32.totalorder 0, %v1120
    %v1122 = vsel %vm1121, 0, %v1120
    %v1123 = vsub.s32 32, %v1122
    %v1124 = vshll.u32 %v1115, %v1122
    %v1125 = vshrl.u32 %v1107, %v1123
    %v1126 = vor.u32 %v1124, %v1125
    %v1127 = vsub.s32 4294967266, %v1122
    %v1128 = vadd.s32 %v1127, 127
    %v1129 = vshll.u32 %v1128, 23
    %v1130 = vor.u32 4788187, %v1129
    %v1131 = vand.u32 2147483647, %v1130
    %v1133 = vcvt.s32.f32 %v1126
    %v1134 = vmul.f32 %v1133, %v1131
    %v1135 = vxor.u32 %v1134, 2147483648
    %v1136 = vsel %vm1053, %v1135, %v1134
    %v1137 = vsub.s32 4, %v1113
    %v1138 = vsel %vm1053, %v1137, %v1113
    %v1139 = vsel %vm1052, %v627, %v1136
    %v1140 = vsel %vm1052, 0, %v1138
    %v1141 = vcosq.f32.pop %v1139
    %v1142 = vsinq.f32.pop %v1139
    %vm1143 = vweird.f32 %v627
    %v1144 = vand.u32 %v1140, 3
    %vm1145 = vcmp.lt.s32.totalorder %v1144, 2
    %vm1146 = vcmp.eq.s32.totalorder %v1144, 0
    %v1147 = vxor.u32 %v1142, 2147483648
    %v1148 = vsel %vm1146, %v1141, %v1147
    %vm1149 = vcmp.eq.s32.totalorder %v1144, 2
    %v1150 = vxor.u32 %v1141, 2147483648
    %v1151 = vsel %vm1149, %v1150, %v1142
    %v1152 = vsel %vm1145, %v1148, %v1151
    %v1153 = vsel %vm1143, nan, %v1152
    %v1154 = vand.u32 2147483647, %v628
    %vm1155 = vcmp.le.f32.partialorder %v1154, 0.7853982
    %vm1156 = vcmp.lt.s32.totalorder %v628, 0
    %v1157 = vand.u32 %v628, 2139095040
    %v1158 = vshrl.u32 %v1157, 23
    %v1159 = vsub.s32 %v1158, 127
    %v1160 = vand.u32 2147483647, %v628
    %v1161 = vand.u32 %v1160, 8388607
    %v1162 = vor.u32 %v1161, 8388608
    %v1163 = vsub.s32 0, %v1162
    %v1164 = vadd.s32 %v1159, 1
    %vm1165 = vcmp.gt.s32.totalorder %v1164, 0
    %v1166 = vsel %vm1165, %v1164, 0
    %v1167 = vshrl.u32 %v1166, 5
    %v1168 = vand.u32 %v1166, 31
    %v1169 = vsub.s32 32, %v1168
    %v1170 = vshrl.u32 683565275, %v1169
    %v1171 = vshll.u32 683565275, %v1168
    %v1172 = vshrl.u32 2475754826, %v1169
    %v1173 = vor.u32 %v1171, %v1172
    %v1174 = vshll.u32 2475754826, %v1168
    %v1175 = vshrl.u32 2131351028, %v1169
    %v1176 = vor.u32 %v1174, %v1175
    %v1177 = vshll.u32 2131351028, %v1168
    %v1178 = vshrl.u32 2102212464, %v1169
    %v1179 = vor.u32 %v1177, %v1178
    %v1180 = vshll.u32 2102212464, %v1168
    %v1181 = vshrl.u32 920167782, %v1169
    %v1182 = vor.u32 %v1180, %v1181
    %v1183 = vshll.u32 920167782, %v1168
    %v1184 = vshrl.u32 1326507024, %v1169
    %v1185 = vor.u32 %v1183, %v1184
    %vm1186 = vcmp.lt.s32.totalorder %v1167, 1
    %vm1187 = vcmp.lt.s32.totalorder %v1167, 2
    %vm1188 = vcmp.lt.s32.totalorder %v1167, 3
    %vm1189 = vcmp.lt.s32.totalorder %v1167, 4
    %v1190 = vsel %vm1186, %v1170, %v1173
    %v1191 = vsel %vm1189, %v1179, 2102212464
    %v1192 = vsel %vm1188, %v1176, %v1191
    %v1193 = vsel %vm1187, %v1190, %v1192
    %v1194 = vsel %vm1186, %v1173, %v1176
    %v1195 = vsel %vm1189, %v1182, 920167782
    %v1196 = vsel %vm1188, %v1179, %v1195
    %v1197 = vsel %vm1187, %v1194, %v1196
    %v1198 = vsel %vm1186, %v1176, %v1179
    %v1199 = vsel %vm1189, %v1185, 1326507024
    %v1200 = vsel %vm1188, %v1182, %v1199
    %v1201 = vsel %vm1187, %v1198, %v1200
    %v1202 = vshll.u32 %v1162, 8
    %v1203 = vmul.u32.u64.compose %v1202, %v1201
    %v1204 = vextract.low.u32 %v1203
    %v1205 = vextract.high.u32 %v1203
    %v1206 = vmul.u32.u64.compose %v1202, %v1197
    %v1207 = vextract.low.u32 %v1206
    %v1208 = vextract.high.u32 %v1206
    %v1209 = vmul.u32 %v1202, %v1193
    %v1210 = vadd.s32 %v1205, %v1207
    %vm1211 = vc.u32 %v1205, %v1207
    %v1212 = vadd.s32 %v1208, 1
    %v1213 = vsel %vm1211, %v1212, %v1208
    %v1214 = vadd.s32 %v1209, %v1213
    %v1215 = vadd.s32 %v1214, 536870912
    %v1216 = vshrl.u32 %v1215, 30
    %v1217 = vshll.u32 %v1216, 30
    %v1218 = vsub.s32 %v1214, %v1217
    %vm1219 = vcmp.lt.s32.totalorder %v1218, 0
    %v1220 = vsub.s32 0, %v1218
    %v1221 = vsel %vm1219, %v1220, %v1218
    %v1222 = vclz %v1221
    %v1223 = vsub.s32 %v1222, 2
    %vm1224 = vcmp.gt.s32.totalorder 0, %v1223
    %v1225 = vsel %vm1224, 0, %v1223
    %v1226 = vsub.s32 32, %v1225
    %v1227 = vshll.u32 %v1218, %v1225
    %v1228 = vshrl.u32 %v1210, %v1226
    %v1229 = vor.u32 %v1227, %v1228
    %v1230 = vsub.s32 4294967266, %v1225
    %v1231 = vadd.s32 %v1230, 127
    %v1232 = vshll.u32 %v1231, 23
    %v1233 = vor.u32 4788187, %v1232
    %v1234 = vand.u32 2147483647, %v1233
    %v1236 = vcvt.s32.f32 %v1229
    %v1237 = vmul.f32 %v1236, %v1234
    %v1238 = vxor.u32 %v1237, 2147483648
    %v1239 = vsel %vm1156, %v1238, %v1237
    %v1240 = vsub.s32 4, %v1216
    %v1241 = vsel %vm1156, %v1240, %v1216
    %v1242 = vsel %vm1155, %v628, %v1239
    %v1243 = vsel %vm1155, 0, %v1241
    %v1244 = vcosq.f32.pop %v1242
    %v1245 = vsinq.f32.pop %v1242
    %vm1246 = vweird.f32 %v628
    %v1247 = vand.u32 %v1243, 3
    %vm1248 = vcmp.lt.s32.totalorder %v1247, 2
    %vm1249 = vcmp.eq.s32.totalorder %v1247, 0
    %v1250 = vxor.u32 %v1245, 2147483648
    %v1251 = vsel %vm1249, %v1244, %v1250
    %vm1252 = vcmp.eq.s32.totalorder %v1247, 2
    %v1253 = vxor.u32 %v1244, 2147483648
    %v1254 = vsel %vm1252, %v1253, %v1245
    %v1255 = vsel %vm1248, %v1251, %v1254
    %v1256 = vsel %vm1246, nan, %v1255
    %v1257 = vand.u32 2147483647, %v629
    %vm1258 = vcmp.le.f32.partialorder %v1257, 0.7853982
    %vm1259 = vcmp.lt.s32.totalorder %v629, 0
    %v1260 = vand.u32 %v629, 2139095040
    %v1261 = vshrl.u32 %v1260, 23
    %v1262 = vsub.s32 %v1261, 127
    %v1263 = vand.u32 2147483647, %v629
    %v1264 = vand.u32 %v1263, 8388607
    %v1265 = vor.u32 %v1264, 8388608
    %v1266 = vsub.s32 0, %v1265
    %v1267 = vadd.s32 %v1262, 1
    %vm1268 = vcmp.gt.s32.totalorder %v1267, 0
    %v1269 = vsel %vm1268, %v1267, 0
    %v1270 = vshrl.u32 %v1269, 5
    %v1271 = vand.u32 %v1269, 31
    %v1272 = vsub.s32 32, %v1271
    %v1273 = vshrl.u32 683565275, %v1272
    %v1274 = vshll.u32 683565275, %v1271
    %v1275 = vshrl.u32 2475754826, %v1272
    %v1276 = vor.u32 %v1274, %v1275
    %v1277 = vshll.u32 2475754826, %v1271
    %v1278 = vshrl.u32 2131351028, %v1272
    %v1279 = vor.u32 %v1277, %v1278
    %v1280 = vshll.u32 2131351028, %v1271
    %v1281 = vshrl.u32 2102212464, %v1272
    %v1282 = vor.u32 %v1280, %v1281
    %v1283 = vshll.u32 2102212464, %v1271
    %v1284 = vshrl.u32 920167782, %v1272
    %v1285 = vor.u32 %v1283, %v1284
    %v1286 = vshll.u32 920167782, %v1271
    %v1287 = vshrl.u32 1326507024, %v1272
    %v1288 = vor.u32 %v1286, %v1287
    %vm1289 = vcmp.lt.s32.totalorder %v1270, 1
    %vm1290 = vcmp.lt.s32.totalorder %v1270, 2
    %vm1291 = vcmp.lt.s32.totalorder %v1270, 3
    %vm1292 = vcmp.lt.s32.totalorder %v1270, 4
    %v1293 = vsel %vm1289, %v1273, %v1276
    %v1294 = vsel %vm1292, %v1282, 2102212464
    %v1295 = vsel %vm1291, %v1279, %v1294
    %v1296 = vsel %vm1290, %v1293, %v1295
    %v1297 = vsel %vm1289, %v1276, %v1279
    %v1298 = vsel %vm1292, %v1285, 920167782
    %v1299 = vsel %vm1291, %v1282, %v1298
    %v1300 = vsel %vm1290, %v1297, %v1299
    %v1301 = vsel %vm1289, %v1279, %v1282
    %v1302 = vsel %vm1292, %v1288, 1326507024
    %v1303 = vsel %vm1291, %v1285, %v1302
    %v1304 = vsel %vm1290, %v1301, %v1303
    %v1305 = vshll.u32 %v1265, 8
    %v1306 = vmul.u32.u64.compose %v1305, %v1304
    %v1307 = vextract.low.u32 %v1306
    %v1308 = vextract.high.u32 %v1306
    %v1309 = vmul.u32.u64.compose %v1305, %v1300
    %v1310 = vextract.low.u32 %v1309
    %v1311 = vextract.high.u32 %v1309
    %v1312 = vmul.u32 %v1305, %v1296
    %v1313 = vadd.s32 %v1308, %v1310
    %vm1314 = vc.u32 %v1308, %v1310
    %v1315 = vadd.s32 %v1311, 1
    %v1316 = vsel %vm1314, %v1315, %v1311
    %v1317 = vadd.s32 %v1312, %v1316
    %v1318 = vadd.s32 %v1317, 536870912
    %v1319 = vshrl.u32 %v1318, 30
    %v1320 = vshll.u32 %v1319, 30
    %v1321 = vsub.s32 %v1317, %v1320
    %vm1322 = vcmp.lt.s32.totalorder %v1321, 0
    %v1323 = vsub.s32 0, %v1321
    %v1324 = vsel %vm1322, %v1323, %v1321
    %v1325 = vclz %v1324
    %v1326 = vsub.s32 %v1325, 2
    %vm1327 = vcmp.gt.s32.totalorder 0, %v1326
    %v1328 = vsel %vm1327, 0, %v1326
    %v1329 = vsub.s32 32, %v1328
    %v1330 = vshll.u32 %v1321, %v1328
    %v1331 = vshrl.u32 %v1313, %v1329
    %v1332 = vor.u32 %v1330, %v1331
    %v1333 = vsub.s32 4294967266, %v1328
    %v1334 = vadd.s32 %v1333, 127
    %v1335 = vshll.u32 %v1334, 23
    %v1336 = vor.u32 4788187, %v1335
    %v1337 = vand.u32 2147483647, %v1336
    %v1339 = vcvt.s32.f32 %v1332
    %v1340 = vmul.f32 %v1339, %v1337
    %v1341 = vxor.u32 %v1340, 2147483648
    %v1342 = vsel %vm1259, %v1341, %v1340
    %v1343 = vsub.s32 4, %v1319
    %v1344 = vsel %vm1259, %v1343, %v1319
    %v1345 = vsel %vm1258, %v629, %v1342
    %v1346 = vsel %vm1258, 0, %v1344
    %v1347 = vcosq.f32.pop %v1345
    %v1348 = vsinq.f32.pop %v1345
    %vm1349 = vweird.f32 %v629
    %v1350 = vand.u32 %v1346, 3
    %vm1351 = vcmp.lt.s32.totalorder %v1350, 2
    %vm1352 = vcmp.eq.s32.totalorder %v1350, 0
    %v1353 = vxor.u32 %v1348, 2147483648
    %v1354 = vsel %vm1352, %v1347, %v1353
    %vm1355 = vcmp.eq.s32.totalorder %v1350, 2
    %v1356 = vxor.u32 %v1347, 2147483648
    %v1357 = vsel %vm1355, %v1356, %v1348
    %v1358 = vsel %vm1351, %v1354, %v1357
    %v1359 = vsel %vm1349, nan, %v1358
    %v1360 = vand.u32 2147483647, %v630
    %vm1361 = vcmp.le.f32.partialorder %v1360, 0.7853982
    %vm1362 = vcmp.lt.s32.totalorder %v630, 0
    %v1363 = vand.u32 %v630, 2139095040
    %v1364 = vshrl.u32 %v1363, 23
    %v1365 = vsub.s32 %v1364, 127
    %v1366 = vand.u32 2147483647, %v630
    %v1367 = vand.u32 %v1366, 8388607
    %v1368 = vor.u32 %v1367, 8388608
    %v1369 = vsub.s32 0, %v1368
    %v1370 = vadd.s32 %v1365, 1
    %vm1371 = vcmp.gt.s32.totalorder %v1370, 0
    %v1372 = vsel %vm1371, %v1370, 0
    %v1373 = vshrl.u32 %v1372, 5
    %v1374 = vand.u32 %v1372, 31
    %v1375 = vsub.s32 32, %v1374
    %v1376 = vshrl.u32 683565275, %v1375
    %v1377 = vshll.u32 683565275, %v1374
    %v1378 = vshrl.u32 2475754826, %v1375
    %v1379 = vor.u32 %v1377, %v1378
    %v1380 = vshll.u32 2475754826, %v1374
    %v1381 = vshrl.u32 2131351028, %v1375
    %v1382 = vor.u32 %v1380, %v1381
    %v1383 = vshll.u32 2131351028, %v1374
    %v1384 = vshrl.u32 2102212464, %v1375
    %v1385 = vor.u32 %v1383, %v1384
    %v1386 = vshll.u32 2102212464, %v1374
    %v1387 = vshrl.u32 920167782, %v1375
    %v1388 = vor.u32 %v1386, %v1387
    %v1389 = vshll.u32 920167782, %v1374
    %v1390 = vshrl.u32 1326507024, %v1375
    %v1391 = vor.u32 %v1389, %v1390
    %vm1392 = vcmp.lt.s32.totalorder %v1373, 1
    %vm1393 = vcmp.lt.s32.totalorder %v1373, 2
    %vm1394 = vcmp.lt.s32.totalorder %v1373, 3
    %vm1395 = vcmp.lt.s32.totalorder %v1373, 4
    %v1396 = vsel %vm1392, %v1376, %v1379
    %v1397 = vsel %vm1395, %v1385, 2102212464
    %v1398 = vsel %vm1394, %v1382, %v1397
    %v1399 = vsel %vm1393, %v1396, %v1398
    %v1400 = vsel %vm1392, %v1379, %v1382
    %v1401 = vsel %vm1395, %v1388, 920167782
    %v1402 = vsel %vm1394, %v1385, %v1401
    %v1403 = vsel %vm1393, %v1400, %v1402
    %v1404 = vsel %vm1392, %v1382, %v1385
    %v1405 = vsel %vm1395, %v1391, 1326507024
    %v1406 = vsel %vm1394, %v1388, %v1405
    %v1407 = vsel %vm1393, %v1404, %v1406
    %v1408 = vshll.u32 %v1368, 8
    %v1409 = vmul.u32.u64.compose %v1408, %v1407
    %v1410 = vextract.low.u32 %v1409
    %v1411 = vextract.high.u32 %v1409
    %v1412 = vmul.u32.u64.compose %v1408, %v1403
    %v1413 = vextract.low.u32 %v1412
    %v1414 = vextract.high.u32 %v1412
    %v1415 = vmul.u32 %v1408, %v1399
    %v1416 = vadd.s32 %v1411, %v1413
    %vm1417 = vc.u32 %v1411, %v1413
    %v1418 = vadd.s32 %v1414, 1
    %v1419 = vsel %vm1417, %v1418, %v1414
    %v1420 = vadd.s32 %v1415, %v1419
    %v1421 = vadd.s32 %v1420, 536870912
    %v1422 = vshrl.u32 %v1421, 30
    %v1423 = vshll.u32 %v1422, 30
    %v1424 = vsub.s32 %v1420, %v1423
    %vm1425 = vcmp.lt.s32.totalorder %v1424, 0
    %v1426 = vsub.s32 0, %v1424
    %v1427 = vsel %vm1425, %v1426, %v1424
    %v1428 = vclz %v1427
    %v1429 = vsub.s32 %v1428, 2
    %vm1430 = vcmp.gt.s32.totalorder 0, %v1429
    %v1431 = vsel %vm1430, 0, %v1429
    %v1432 = vsub.s32 32, %v1431
    %v1433 = vshll.u32 %v1424, %v1431
    %v1434 = vshrl.u32 %v1416, %v1432
    %v1435 = vor.u32 %v1433, %v1434
    %v1436 = vsub.s32 4294967266, %v1431
    %v1437 = vadd.s32 %v1436, 127
    %v1438 = vshll.u32 %v1437, 23
    %v1439 = vor.u32 4788187, %v1438
    %v1440 = vand.u32 2147483647, %v1439
    %v1442 = vcvt.s32.f32 %v1435
    %v1443 = vmul.f32 %v1442, %v1440
    %v1444 = vxor.u32 %v1443, 2147483648
    %v1445 = vsel %vm1362, %v1444, %v1443
    %v1446 = vsub.s32 4, %v1422
    %v1447 = vsel %vm1362, %v1446, %v1422
    %v1448 = vsel %vm1361, %v630, %v1445
    %v1449 = vsel %vm1361, 0, %v1447
    %v1450 = vcosq.f32.pop %v1448
    %v1451 = vsinq.f32.pop %v1448
    %vm1452 = vweird.f32 %v630
    %v1453 = vand.u32 %v1449, 3
    %vm1454 = vcmp.lt.s32.totalorder %v1453, 2
    %vm1455 = vcmp.eq.s32.totalorder %v1453, 0
    %v1456 = vxor.u32 %v1451, 2147483648
    %v1457 = vsel %vm1455, %v1450, %v1456
    %vm1458 = vcmp.eq.s32.totalorder %v1453, 2
    %v1459 = vxor.u32 %v1450, 2147483648
    %v1460 = vsel %vm1458, %v1459, %v1451
    %v1461 = vsel %vm1454, %v1457, %v1460
    %v1462 = vsel %vm1452, nan, %v1461
    %v1463 = vand.u32 2147483647, %v631
    %vm1464 = vcmp.le.f32.partialorder %v1463, 0.7853982
    %vm1465 = vcmp.lt.s32.totalorder %v631, 0
    %v1466 = vand.u32 %v631, 2139095040
    %v1467 = vshrl.u32 %v1466, 23
    %v1468 = vsub.s32 %v1467, 127
    %v1469 = vand.u32 2147483647, %v631
    %v1470 = vand.u32 %v1469, 8388607
    %v1471 = vor.u32 %v1470, 8388608
    %v1472 = vsub.s32 0, %v1471
    %v1473 = vadd.s32 %v1468, 1
    %vm1474 = vcmp.gt.s32.totalorder %v1473, 0
    %v1475 = vsel %vm1474, %v1473, 0
    %v1476 = vshrl.u32 %v1475, 5
    %v1477 = vand.u32 %v1475, 31
    %v1478 = vsub.s32 32, %v1477
    %v1479 = vshrl.u32 683565275, %v1478
    %v1480 = vshll.u32 683565275, %v1477
    %v1481 = vshrl.u32 2475754826, %v1478
    %v1482 = vor.u32 %v1480, %v1481
    %v1483 = vshll.u32 2475754826, %v1477
    %v1484 = vshrl.u32 2131351028, %v1478
    %v1485 = vor.u32 %v1483, %v1484
    %v1486 = vshll.u32 2131351028, %v1477
    %v1487 = vshrl.u32 2102212464, %v1478
    %v1488 = vor.u32 %v1486, %v1487
    %v1489 = vshll.u32 2102212464, %v1477
    %v1490 = vshrl.u32 920167782, %v1478
    %v1491 = vor.u32 %v1489, %v1490
    %v1492 = vshll.u32 920167782, %v1477
    %v1493 = vshrl.u32 1326507024, %v1478
    %v1494 = vor.u32 %v1492, %v1493
    %vm1495 = vcmp.lt.s32.totalorder %v1476, 1
    %vm1496 = vcmp.lt.s32.totalorder %v1476, 2
    %vm1497 = vcmp.lt.s32.totalorder %v1476, 3
    %vm1498 = vcmp.lt.s32.totalorder %v1476, 4
    %v1499 = vsel %vm1495, %v1479, %v1482
    %v1500 = vsel %vm1498, %v1488, 2102212464
    %v1501 = vsel %vm1497, %v1485, %v1500
    %v1502 = vsel %vm1496, %v1499, %v1501
    %v1503 = vsel %vm1495, %v1482, %v1485
    %v1504 = vsel %vm1498, %v1491, 920167782
    %v1505 = vsel %vm1497, %v1488, %v1504
    %v1506 = vsel %vm1496, %v1503, %v1505
    %v1507 = vsel %vm1495, %v1485, %v1488
    %v1508 = vsel %vm1498, %v1494, 1326507024
    %v1509 = vsel %vm1497, %v1491, %v1508
    %v1510 = vsel %vm1496, %v1507, %v1509
    %v1511 = vshll.u32 %v1471, 8
    %v1512 = vmul.u32.u64.compose %v1511, %v1510
    %v1513 = vextract.low.u32 %v1512
    %v1514 = vextract.high.u32 %v1512
    %v1515 = vmul.u32.u64.compose %v1511, %v1506
    %v1516 = vextract.low.u32 %v1515
    %v1517 = vextract.high.u32 %v1515
    %v1518 = vmul.u32 %v1511, %v1502
    %v1519 = vadd.s32 %v1514, %v1516
    %vm1520 = vc.u32 %v1514, %v1516
    %v1521 = vadd.s32 %v1517, 1
    %v1522 = vsel %vm1520, %v1521, %v1517
    %v1523 = vadd.s32 %v1518, %v1522
    %v1524 = vadd.s32 %v1523, 536870912
    %v1525 = vshrl.u32 %v1524, 30
    %v1526 = vshll.u32 %v1525, 30
    %v1527 = vsub.s32 %v1523, %v1526
    %vm1528 = vcmp.lt.s32.totalorder %v1527, 0
    %v1529 = vsub.s32 0, %v1527
    %v1530 = vsel %vm1528, %v1529, %v1527
    %v1531 = vclz %v1530
    %v1532 = vsub.s32 %v1531, 2
    %vm1533 = vcmp.gt.s32.totalorder 0, %v1532
    %v1534 = vsel %vm1533, 0, %v1532
    %v1535 = vsub.s32 32, %v1534
    %v1536 = vshll.u32 %v1527, %v1534
    %v1537 = vshrl.u32 %v1519, %v1535
    %v1538 = vor.u32 %v1536, %v1537
    %v1539 = vsub.s32 4294967266, %v1534
    %v1540 = vadd.s32 %v1539, 127
    %v1541 = vshll.u32 %v1540, 23
    %v1542 = vor.u32 4788187, %v1541
    %v1543 = vand.u32 2147483647, %v1542
    %v1545 = vcvt.s32.f32 %v1538
    %v1546 = vmul.f32 %v1545, %v1543
    %v1547 = vxor.u32 %v1546, 2147483648
    %v1548 = vsel %vm1465, %v1547, %v1546
    %v1549 = vsub.s32 4, %v1525
    %v1550 = vsel %vm1465, %v1549, %v1525
    %v1551 = vsel %vm1464, %v631, %v1548
    %v1552 = vsel %vm1464, 0, %v1550
    %v1553 = vcosq.f32.pop %v1551
    %v1554 = vsinq.f32.pop %v1551
    %vm1555 = vweird.f32 %v631
    %v1556 = vand.u32 %v1552, 3
    %vm1557 = vcmp.lt.s32.totalorder %v1556, 2
    %vm1558 = vcmp.eq.s32.totalorder %v1556, 0
    %v1559 = vxor.u32 %v1554, 2147483648
    %v1560 = vsel %vm1558, %v1553, %v1559
    %vm1561 = vcmp.eq.s32.totalorder %v1556, 2
    %v1562 = vxor.u32 %v1553, 2147483648
    %v1563 = vsel %vm1561, %v1562, %v1554
    %v1564 = vsel %vm1557, %v1560, %v1563
    %v1565 = vsel %vm1555, nan, %v1564
    %v1566 = vand.u32 2147483647, %v632
    %vm1567 = vcmp.le.f32.partialorder %v1566, 0.7853982
    %vm1568 = vcmp.lt.s32.totalorder %v632, 0
    %v1569 = vand.u32 %v632, 2139095040
    %v1570 = vshrl.u32 %v1569, 23
    %v1571 = vsub.s32 %v1570, 127
    %v1572 = vand.u32 2147483647, %v632
    %v1573 = vand.u32 %v1572, 8388607
    %v1574 = vor.u32 %v1573, 8388608
    %v1575 = vsub.s32 0, %v1574
    %v1576 = vadd.s32 %v1571, 1
    %vm1577 = vcmp.gt.s32.totalorder %v1576, 0
    %v1578 = vsel %vm1577, %v1576, 0
    %v1579 = vshrl.u32 %v1578, 5
    %v1580 = vand.u32 %v1578, 31
    %v1581 = vsub.s32 32, %v1580
    %v1582 = vshrl.u32 683565275, %v1581
    %v1583 = vshll.u32 683565275, %v1580
    %v1584 = vshrl.u32 2475754826, %v1581
    %v1585 = vor.u32 %v1583, %v1584
    %v1586 = vshll.u32 2475754826, %v1580
    %v1587 = vshrl.u32 2131351028, %v1581
    %v1588 = vor.u32 %v1586, %v1587
    %v1589 = vshll.u32 2131351028, %v1580
    %v1590 = vshrl.u32 2102212464, %v1581
    %v1591 = vor.u32 %v1589, %v1590
    %v1592 = vshll.u32 2102212464, %v1580
    %v1593 = vshrl.u32 920167782, %v1581
    %v1594 = vor.u32 %v1592, %v1593
    %v1595 = vshll.u32 920167782, %v1580
    %v1596 = vshrl.u32 1326507024, %v1581
    %v1597 = vor.u32 %v1595, %v1596
    %vm1598 = vcmp.lt.s32.totalorder %v1579, 1
    %vm1599 = vcmp.lt.s32.totalorder %v1579, 2
    %vm1600 = vcmp.lt.s32.totalorder %v1579, 3
    %vm1601 = vcmp.lt.s32.totalorder %v1579, 4
    %v1602 = vsel %vm1598, %v1582, %v1585
    %v1603 = vsel %vm1601, %v1591, 2102212464
    %v1604 = vsel %vm1600, %v1588, %v1603
    %v1605 = vsel %vm1599, %v1602, %v1604
    %v1606 = vsel %vm1598, %v1585, %v1588
    %v1607 = vsel %vm1601, %v1594, 920167782
    %v1608 = vsel %vm1600, %v1591, %v1607
    %v1609 = vsel %vm1599, %v1606, %v1608
    %v1610 = vsel %vm1598, %v1588, %v1591
    %v1611 = vsel %vm1601, %v1597, 1326507024
    %v1612 = vsel %vm1600, %v1594, %v1611
    %v1613 = vsel %vm1599, %v1610, %v1612
    %v1614 = vshll.u32 %v1574, 8
    %v1615 = vmul.u32.u64.compose %v1614, %v1613
    %v1616 = vextract.low.u32 %v1615
    %v1617 = vextract.high.u32 %v1615
    %v1618 = vmul.u32.u64.compose %v1614, %v1609
    %v1619 = vextract.low.u32 %v1618
    %v1620 = vextract.high.u32 %v1618
    %v1621 = vmul.u32 %v1614, %v1605
    %v1622 = vadd.s32 %v1617, %v1619
    %vm1623 = vc.u32 %v1617, %v1619
    %v1624 = vadd.s32 %v1620, 1
    %v1625 = vsel %vm1623, %v1624, %v1620
    %v1626 = vadd.s32 %v1621, %v1625
    %v1627 = vadd.s32 %v1626, 536870912
    %v1628 = vshrl.u32 %v1627, 30
    %v1629 = vshll.u32 %v1628, 30
    %v1630 = vsub.s32 %v1626, %v1629
    %vm1631 = vcmp.lt.s32.totalorder %v1630, 0
    %v1632 = vsub.s32 0, %v1630
    %v1633 = vsel %vm1631, %v1632, %v1630
    %v1634 = vclz %v1633
    %v1635 = vsub.s32 %v1634, 2
    %vm1636 = vcmp.gt.s32.totalorder 0, %v1635
    %v1637 = vsel %vm1636, 0, %v1635
    %v1638 = vsub.s32 32, %v1637
    %v1639 = vshll.u32 %v1630, %v1637
    %v1640 = vshrl.u32 %v1622, %v1638
    %v1641 = vor.u32 %v1639, %v1640
    %v1642 = vsub.s32 4294967266, %v1637
    %v1643 = vadd.s32 %v1642, 127
    %v1644 = vshll.u32 %v1643, 23
    %v1645 = vor.u32 4788187, %v1644
    %v1646 = vand.u32 2147483647, %v1645
    %v1648 = vcvt.s32.f32 %v1641
    %v1649 = vmul.f32 %v1648, %v1646
    %v1650 = vxor.u32 %v1649, 2147483648
    %v1651 = vsel %vm1568, %v1650, %v1649
    %v1652 = vsub.s32 4, %v1628
    %v1653 = vsel %vm1568, %v1652, %v1628
    %v1654 = vsel %vm1567, %v632, %v1651
    %v1655 = vsel %vm1567, 0, %v1653
    %v1656 = vcosq.f32.pop %v1654
    %v1657 = vsinq.f32.pop %v1654
    %vm1658 = vweird.f32 %v632
    %v1659 = vand.u32 %v1655, 3
    %vm1660 = vcmp.lt.s32.totalorder %v1659, 2
    %vm1661 = vcmp.eq.s32.totalorder %v1659, 0
    %v1662 = vxor.u32 %v1657, 2147483648
    %v1663 = vsel %vm1661, %v1656, %v1662
    %vm1664 = vcmp.eq.s32.totalorder %v1659, 2
    %v1665 = vxor.u32 %v1656, 2147483648
    %v1666 = vsel %vm1664, %v1665, %v1657
    %v1667 = vsel %vm1660, %v1663, %v1666
    %v1668 = vsel %vm1658, nan, %v1667
    %v1669 = vand.u32 2147483647, %v633
    %vm1670 = vcmp.le.f32.partialorder %v1669, 0.7853982
    %vm1671 = vcmp.lt.s32.totalorder %v633, 0
    %v1672 = vand.u32 %v633, 2139095040
    %v1673 = vshrl.u32 %v1672, 23
    %v1674 = vsub.s32 %v1673, 127
    %v1675 = vand.u32 2147483647, %v633
    %v1676 = vand.u32 %v1675, 8388607
    %v1677 = vor.u32 %v1676, 8388608
    %v1678 = vsub.s32 0, %v1677
    %v1679 = vadd.s32 %v1674, 1
    %vm1680 = vcmp.gt.s32.totalorder %v1679, 0
    %v1681 = vsel %vm1680, %v1679, 0
    %v1682 = vshrl.u32 %v1681, 5
    %v1683 = vand.u32 %v1681, 31
    %v1684 = vsub.s32 32, %v1683
    %v1685 = vshrl.u32 683565275, %v1684
    %v1686 = vshll.u32 683565275, %v1683
    %v1687 = vshrl.u32 2475754826, %v1684
    %v1688 = vor.u32 %v1686, %v1687
    %v1689 = vshll.u32 2475754826, %v1683
    %v1690 = vshrl.u32 2131351028, %v1684
    %v1691 = vor.u32 %v1689, %v1690
    %v1692 = vshll.u32 2131351028, %v1683
    %v1693 = vshrl.u32 2102212464, %v1684
    %v1694 = vor.u32 %v1692, %v1693
    %v1695 = vshll.u32 2102212464, %v1683
    %v1696 = vshrl.u32 920167782, %v1684
    %v1697 = vor.u32 %v1695, %v1696
    %v1698 = vshll.u32 920167782, %v1683
    %v1699 = vshrl.u32 1326507024, %v1684
    %v1700 = vor.u32 %v1698, %v1699
    %vm1701 = vcmp.lt.s32.totalorder %v1682, 1
    %vm1702 = vcmp.lt.s32.totalorder %v1682, 2
    %vm1703 = vcmp.lt.s32.totalorder %v1682, 3
    %vm1704 = vcmp.lt.s32.totalorder %v1682, 4
    %v1705 = vsel %vm1701, %v1685, %v1688
    %v1706 = vsel %vm1704, %v1694, 2102212464
    %v1707 = vsel %vm1703, %v1691, %v1706
    %v1708 = vsel %vm1702, %v1705, %v1707
    %v1709 = vsel %vm1701, %v1688, %v1691
    %v1710 = vsel %vm1704, %v1697, 920167782
    %v1711 = vsel %vm1703, %v1694, %v1710
    %v1712 = vsel %vm1702, %v1709, %v1711
    %v1713 = vsel %vm1701, %v1691, %v1694
    %v1714 = vsel %vm1704, %v1700, 1326507024
    %v1715 = vsel %vm1703, %v1697, %v1714
    %v1716 = vsel %vm1702, %v1713, %v1715
    %v1717 = vshll.u32 %v1677, 8
    %v1718 = vmul.u32.u64.compose %v1717, %v1716
    %v1719 = vextract.low.u32 %v1718
    %v1720 = vextract.high.u32 %v1718
    %v1721 = vmul.u32.u64.compose %v1717, %v1712
    %v1722 = vextract.low.u32 %v1721
    %v1723 = vextract.high.u32 %v1721
    %v1724 = vmul.u32 %v1717, %v1708
    %v1725 = vadd.s32 %v1720, %v1722
    %vm1726 = vc.u32 %v1720, %v1722
    %v1727 = vadd.s32 %v1723, 1
    %v1728 = vsel %vm1726, %v1727, %v1723
    %v1729 = vadd.s32 %v1724, %v1728
    %v1730 = vadd.s32 %v1729, 536870912
    %v1731 = vshrl.u32 %v1730, 30
    %v1732 = vshll.u32 %v1731, 30
    %v1733 = vsub.s32 %v1729, %v1732
    %vm1734 = vcmp.lt.s32.totalorder %v1733, 0
    %v1735 = vsub.s32 0, %v1733
    %v1736 = vsel %vm1734, %v1735, %v1733
    %v1737 = vclz %v1736
    %v1738 = vsub.s32 %v1737, 2
    %vm1739 = vcmp.gt.s32.totalorder 0, %v1738
    %v1740 = vsel %vm1739, 0, %v1738
    %v1741 = vsub.s32 32, %v1740
    %v1742 = vshll.u32 %v1733, %v1740
    %v1743 = vshrl.u32 %v1725, %v1741
    %v1744 = vor.u32 %v1742, %v1743
    %v1745 = vsub.s32 4294967266, %v1740
    %v1746 = vadd.s32 %v1745, 127
    %v1747 = vshll.u32 %v1746, 23
    %v1748 = vor.u32 4788187, %v1747
    %v1749 = vand.u32 2147483647, %v1748
    %v1751 = vcvt.s32.f32 %v1744
    %v1752 = vmul.f32 %v1751, %v1749
    %v1753 = vxor.u32 %v1752, 2147483648
    %v1754 = vsel %vm1671, %v1753, %v1752
    %v1755 = vsub.s32 4, %v1731
    %v1756 = vsel %vm1671, %v1755, %v1731
    %v1757 = vsel %vm1670, %v633, %v1754
    %v1758 = vsel %vm1670, 0, %v1756
    %v1759 = vcosq.f32.pop %v1757
    %v1760 = vsinq.f32.pop %v1757
    %vm1761 = vweird.f32 %v633
    %v1762 = vand.u32 %v1758, 3
    %vm1763 = vcmp.lt.s32.totalorder %v1762, 2
    %vm1764 = vcmp.eq.s32.totalorder %v1762, 0
    %v1765 = vxor.u32 %v1760, 2147483648
    %v1766 = vsel %vm1764, %v1759, %v1765
    %vm1767 = vcmp.eq.s32.totalorder %v1762, 2
    %v1768 = vxor.u32 %v1759, 2147483648
    %v1769 = vsel %vm1767, %v1768, %v1760
    %v1770 = vsel %vm1763, %v1766, %v1769
    %v1771 = vsel %vm1761, nan, %v1770
    %v1772 = vand.u32 2147483647, %v634
    %vm1773 = vcmp.le.f32.partialorder %v1772, 0.7853982
    %vm1774 = vcmp.lt.s32.totalorder %v634, 0
    %v1775 = vand.u32 %v634, 2139095040
    %v1776 = vshrl.u32 %v1775, 23
    %v1777 = vsub.s32 %v1776, 127
    %v1778 = vand.u32 2147483647, %v634
    %v1779 = vand.u32 %v1778, 8388607
    %v1780 = vor.u32 %v1779, 8388608
    %v1781 = vsub.s32 0, %v1780
    %v1782 = vadd.s32 %v1777, 1
    %vm1783 = vcmp.gt.s32.totalorder %v1782, 0
    %v1784 = vsel %vm1783, %v1782, 0
    %v1785 = vshrl.u32 %v1784, 5
    %v1786 = vand.u32 %v1784, 31
    %v1787 = vsub.s32 32, %v1786
    %v1788 = vshrl.u32 683565275, %v1787
    %v1789 = vshll.u32 683565275, %v1786
    %v1790 = vshrl.u32 2475754826, %v1787
    %v1791 = vor.u32 %v1789, %v1790
    %v1792 = vshll.u32 2475754826, %v1786
    %v1793 = vshrl.u32 2131351028, %v1787
    %v1794 = vor.u32 %v1792, %v1793
    %v1795 = vshll.u32 2131351028, %v1786
    %v1796 = vshrl.u32 2102212464, %v1787
    %v1797 = vor.u32 %v1795, %v1796
    %v1798 = vshll.u32 2102212464, %v1786
    %v1799 = vshrl.u32 920167782, %v1787
    %v1800 = vor.u32 %v1798, %v1799
    %v1801 = vshll.u32 920167782, %v1786
    %v1802 = vshrl.u32 1326507024, %v1787
    %v1803 = vor.u32 %v1801, %v1802
    %vm1804 = vcmp.lt.s32.totalorder %v1785, 1
    %vm1805 = vcmp.lt.s32.totalorder %v1785, 2
    %vm1806 = vcmp.lt.s32.totalorder %v1785, 3
    %vm1807 = vcmp.lt.s32.totalorder %v1785, 4
    %v1808 = vsel %vm1804, %v1788, %v1791
    %v1809 = vsel %vm1807, %v1797, 2102212464
    %v1810 = vsel %vm1806, %v1794, %v1809
    %v1811 = vsel %vm1805, %v1808, %v1810
    %v1812 = vsel %vm1804, %v1791, %v1794
    %v1813 = vsel %vm1807, %v1800, 920167782
    %v1814 = vsel %vm1806, %v1797, %v1813
    %v1815 = vsel %vm1805, %v1812, %v1814
    %v1816 = vsel %vm1804, %v1794, %v1797
    %v1817 = vsel %vm1807, %v1803, 1326507024
    %v1818 = vsel %vm1806, %v1800, %v1817
    %v1819 = vsel %vm1805, %v1816, %v1818
    %v1820 = vshll.u32 %v1780, 8
    %v1821 = vmul.u32.u64.compose %v1820, %v1819
    %v1822 = vextract.low.u32 %v1821
    %v1823 = vextract.high.u32 %v1821
    %v1824 = vmul.u32.u64.compose %v1820, %v1815
    %v1825 = vextract.low.u32 %v1824
    %v1826 = vextract.high.u32 %v1824
    %v1827 = vmul.u32 %v1820, %v1811
    %v1828 = vadd.s32 %v1823, %v1825
    %vm1829 = vc.u32 %v1823, %v1825
    %v1830 = vadd.s32 %v1826, 1
    %v1831 = vsel %vm1829, %v1830, %v1826
    %v1832 = vadd.s32 %v1827, %v1831
    %v1833 = vadd.s32 %v1832, 536870912
    %v1834 = vshrl.u32 %v1833, 30
    %v1835 = vshll.u32 %v1834, 30
    %v1836 = vsub.s32 %v1832, %v1835
    %vm1837 = vcmp.lt.s32.totalorder %v1836, 0
    %v1838 = vsub.s32 0, %v1836
    %v1839 = vsel %vm1837, %v1838, %v1836
    %v1840 = vclz %v1839
    %v1841 = vsub.s32 %v1840, 2
    %vm1842 = vcmp.gt.s32.totalorder 0, %v1841
    %v1843 = vsel %vm1842, 0, %v1841
    %v1844 = vsub.s32 32, %v1843
    %v1845 = vshll.u32 %v1836, %v1843
    %v1846 = vshrl.u32 %v1828, %v1844
    %v1847 = vor.u32 %v1845, %v1846
    %v1848 = vsub.s32 4294967266, %v1843
    %v1849 = vadd.s32 %v1848, 127
    %v1850 = vshll.u32 %v1849, 23
    %v1851 = vor.u32 4788187, %v1850
    %v1852 = vand.u32 2147483647, %v1851
    %v1854 = vcvt.s32.f32 %v1847
    %v1855 = vmul.f32 %v1854, %v1852
    %v1856 = vxor.u32 %v1855, 2147483648
    %v1857 = vsel %vm1774, %v1856, %v1855
    %v1858 = vsub.s32 4, %v1834
    %v1859 = vsel %vm1774, %v1858, %v1834
    %v1860 = vsel %vm1773, %v634, %v1857
    %v1861 = vsel %vm1773, 0, %v1859
    %v1862 = vcosq.f32.pop %v1860
    %v1863 = vsinq.f32.pop %v1860
    %vm1864 = vweird.f32 %v634
    %v1865 = vand.u32 %v1861, 3
    %vm1866 = vcmp.lt.s32.totalorder %v1865, 2
    %vm1867 = vcmp.eq.s32.totalorder %v1865, 0
    %v1868 = vxor.u32 %v1863, 2147483648
    %v1869 = vsel %vm1867, %v1862, %v1868
    %vm1870 = vcmp.eq.s32.totalorder %v1865, 2
    %v1871 = vxor.u32 %v1862, 2147483648
    %v1872 = vsel %vm1870, %v1871, %v1863
    %v1873 = vsel %vm1866, %v1869, %v1872
    %v1874 = vsel %vm1864, nan, %v1873
    %v1875 = vand.u32 2147483647, %v635
    %vm1876 = vcmp.le.f32.partialorder %v1875, 0.7853982
    %vm1877 = vcmp.lt.s32.totalorder %v635, 0
    %v1878 = vand.u32 %v635, 2139095040
    %v1879 = vshrl.u32 %v1878, 23
    %v1880 = vsub.s32 %v1879, 127
    %v1881 = vand.u32 2147483647, %v635
    %v1882 = vand.u32 %v1881, 8388607
    %v1883 = vor.u32 %v1882, 8388608
    %v1884 = vsub.s32 0, %v1883
    %v1885 = vadd.s32 %v1880, 1
    %vm1886 = vcmp.gt.s32.totalorder %v1885, 0
    %v1887 = vsel %vm1886, %v1885, 0
    %v1888 = vshrl.u32 %v1887, 5
    %v1889 = vand.u32 %v1887, 31
    %v1890 = vsub.s32 32, %v1889
    %v1891 = vshrl.u32 683565275, %v1890
    %v1892 = vshll.u32 683565275, %v1889
    %v1893 = vshrl.u32 2475754826, %v1890
    %v1894 = vor.u32 %v1892, %v1893
    %v1895 = vshll.u32 2475754826, %v1889
    %v1896 = vshrl.u32 2131351028, %v1890
    %v1897 = vor.u32 %v1895, %v1896
    %v1898 = vshll.u32 2131351028, %v1889
    %v1899 = vshrl.u32 2102212464, %v1890
    %v1900 = vor.u32 %v1898, %v1899
    %v1901 = vshll.u32 2102212464, %v1889
    %v1902 = vshrl.u32 920167782, %v1890
    %v1903 = vor.u32 %v1901, %v1902
    %v1904 = vshll.u32 920167782, %v1889
    %v1905 = vshrl.u32 1326507024, %v1890
    %v1906 = vor.u32 %v1904, %v1905
    %vm1907 = vcmp.lt.s32.totalorder %v1888, 1
    %vm1908 = vcmp.lt.s32.totalorder %v1888, 2
    %vm1909 = vcmp.lt.s32.totalorder %v1888, 3
    %vm1910 = vcmp.lt.s32.totalorder %v1888, 4
    %v1911 = vsel %vm1907, %v1891, %v1894
    %v1912 = vsel %vm1910, %v1900, 2102212464
    %v1913 = vsel %vm1909, %v1897, %v1912
    %v1914 = vsel %vm1908, %v1911, %v1913
    %v1915 = vsel %vm1907, %v1894, %v1897
    %v1916 = vsel %vm1910, %v1903, 920167782
    %v1917 = vsel %vm1909, %v1900, %v1916
    %v1918 = vsel %vm1908, %v1915, %v1917
    %v1919 = vsel %vm1907, %v1897, %v1900
    %v1920 = vsel %vm1910, %v1906, 1326507024
    %v1921 = vsel %vm1909, %v1903, %v1920
    %v1922 = vsel %vm1908, %v1919, %v1921
    %v1923 = vshll.u32 %v1883, 8
    %v1924 = vmul.u32.u64.compose %v1923, %v1922
    %v1925 = vextract.low.u32 %v1924
    %v1926 = vextract.high.u32 %v1924
    %v1927 = vmul.u32.u64.compose %v1923, %v1918
    %v1928 = vextract.low.u32 %v1927
    %v1929 = vextract.high.u32 %v1927
    %v1930 = vmul.u32 %v1923, %v1914
    %v1931 = vadd.s32 %v1926, %v1928
    %vm1932 = vc.u32 %v1926, %v1928
    %v1933 = vadd.s32 %v1929, 1
    %v1934 = vsel %vm1932, %v1933, %v1929
    %v1935 = vadd.s32 %v1930, %v1934
    %v1936 = vadd.s32 %v1935, 536870912
    %v1937 = vshrl.u32 %v1936, 30
    %v1938 = vshll.u32 %v1937, 30
    %v1939 = vsub.s32 %v1935, %v1938
    %vm1940 = vcmp.lt.s32.totalorder %v1939, 0
    %v1941 = vsub.s32 0, %v1939
    %v1942 = vsel %vm1940, %v1941, %v1939
    %v1943 = vclz %v1942
    %v1944 = vsub.s32 %v1943, 2
    %vm1945 = vcmp.gt.s32.totalorder 0, %v1944
    %v1946 = vsel %vm1945, 0, %v1944
    %v1947 = vsub.s32 32, %v1946
    %v1948 = vshll.u32 %v1939, %v1946
    %v1949 = vshrl.u32 %v1931, %v1947
    %v1950 = vor.u32 %v1948, %v1949
    %v1951 = vsub.s32 4294967266, %v1946
    %v1952 = vadd.s32 %v1951, 127
    %v1953 = vshll.u32 %v1952, 23
    %v1954 = vor.u32 4788187, %v1953
    %v1955 = vand.u32 2147483647, %v1954
    %v1957 = vcvt.s32.f32 %v1950
    %v1958 = vmul.f32 %v1957, %v1955
    %v1959 = vxor.u32 %v1958, 2147483648
    %v1960 = vsel %vm1877, %v1959, %v1958
    %v1961 = vsub.s32 4, %v1937
    %v1962 = vsel %vm1877, %v1961, %v1937
    %v1963 = vsel %vm1876, %v635, %v1960
    %v1964 = vsel %vm1876, 0, %v1962
    %v1965 = vcosq.f32.pop %v1963
    %v1966 = vsinq.f32.pop %v1963
    %vm1967 = vweird.f32 %v635
    %v1968 = vand.u32 %v1964, 3
    %vm1969 = vcmp.lt.s32.totalorder %v1968, 2
    %vm1970 = vcmp.eq.s32.totalorder %v1968, 0
    %v1971 = vxor.u32 %v1966, 2147483648
    %v1972 = vsel %vm1970, %v1965, %v1971
    %vm1973 = vcmp.eq.s32.totalorder %v1968, 2
    %v1974 = vxor.u32 %v1965, 2147483648
    %v1975 = vsel %vm1973, %v1974, %v1966
    %v1976 = vsel %vm1969, %v1972, %v1975
    %v1977 = vsel %vm1967, nan, %v1976
    %v1978 = vand.u32 2147483647, %v636
    %vm1979 = vcmp.le.f32.partialorder %v1978, 0.7853982
    %vm1980 = vcmp.lt.s32.totalorder %v636, 0
    %v1981 = vand.u32 %v636, 2139095040
    %v1982 = vshrl.u32 %v1981, 23
    %v1983 = vsub.s32 %v1982, 127
    %v1984 = vand.u32 2147483647, %v636
    %v1985 = vand.u32 %v1984, 8388607
    %v1986 = vor.u32 %v1985, 8388608
    %v1987 = vsub.s32 0, %v1986
    %v1988 = vadd.s32 %v1983, 1
    %vm1989 = vcmp.gt.s32.totalorder %v1988, 0
    %v1990 = vsel %vm1989, %v1988, 0
    %v1991 = vshrl.u32 %v1990, 5
    %v1992 = vand.u32 %v1990, 31
    %v1993 = vsub.s32 32, %v1992
    %v1994 = vshrl.u32 683565275, %v1993
    %v1995 = vshll.u32 683565275, %v1992
    %v1996 = vshrl.u32 2475754826, %v1993
    %v1997 = vor.u32 %v1995, %v1996
    %v1998 = vshll.u32 2475754826, %v1992
    %v1999 = vshrl.u32 2131351028, %v1993
    %v2000 = vor.u32 %v1998, %v1999
    %v2001 = vshll.u32 2131351028, %v1992
    %v2002 = vshrl.u32 2102212464, %v1993
    %v2003 = vor.u32 %v2001, %v2002
    %v2004 = vshll.u32 2102212464, %v1992
    %v2005 = vshrl.u32 920167782, %v1993
    %v2006 = vor.u32 %v2004, %v2005
    %v2007 = vshll.u32 920167782, %v1992
    %v2008 = vshrl.u32 1326507024, %v1993
    %v2009 = vor.u32 %v2007, %v2008
    %vm2010 = vcmp.lt.s32.totalorder %v1991, 1
    %vm2011 = vcmp.lt.s32.totalorder %v1991, 2
    %vm2012 = vcmp.lt.s32.totalorder %v1991, 3
    %vm2013 = vcmp.lt.s32.totalorder %v1991, 4
    %v2014 = vsel %vm2010, %v1994, %v1997
    %v2015 = vsel %vm2013, %v2003, 2102212464
    %v2016 = vsel %vm2012, %v2000, %v2015
    %v2017 = vsel %vm2011, %v2014, %v2016
    %v2018 = vsel %vm2010, %v1997, %v2000
    %v2019 = vsel %vm2013, %v2006, 920167782
    %v2020 = vsel %vm2012, %v2003, %v2019
    %v2021 = vsel %vm2011, %v2018, %v2020
    %v2022 = vsel %vm2010, %v2000, %v2003
    %v2023 = vsel %vm2013, %v2009, 1326507024
    %v2024 = vsel %vm2012, %v2006, %v2023
    %v2025 = vsel %vm2011, %v2022, %v2024
    %v2026 = vshll.u32 %v1986, 8
    %v2027 = vmul.u32.u64.compose %v2026, %v2025
    %v2028 = vextract.low.u32 %v2027
    %v2029 = vextract.high.u32 %v2027
    %v2030 = vmul.u32.u64.compose %v2026, %v2021
    %v2031 = vextract.low.u32 %v2030
    %v2032 = vextract.high.u32 %v2030
    %v2033 = vmul.u32 %v2026, %v2017
    %v2034 = vadd.s32 %v2029, %v2031
    %vm2035 = vc.u32 %v2029, %v2031
    %v2036 = vadd.s32 %v2032, 1
    %v2037 = vsel %vm2035, %v2036, %v2032
    %v2038 = vadd.s32 %v2033, %v2037
    %v2039 = vadd.s32 %v2038, 536870912
    %v2040 = vshrl.u32 %v2039, 30
    %v2041 = vshll.u32 %v2040, 30
    %v2042 = vsub.s32 %v2038, %v2041
    %vm2043 = vcmp.lt.s32.totalorder %v2042, 0
    %v2044 = vsub.s32 0, %v2042
    %v2045 = vsel %vm2043, %v2044, %v2042
    %v2046 = vclz %v2045
    %v2047 = vsub.s32 %v2046, 2
    %vm2048 = vcmp.gt.s32.totalorder 0, %v2047
    %v2049 = vsel %vm2048, 0, %v2047
    %v2050 = vsub.s32 32, %v2049
    %v2051 = vshll.u32 %v2042, %v2049
    %v2052 = vshrl.u32 %v2034, %v2050
    %v2053 = vor.u32 %v2051, %v2052
    %v2054 = vsub.s32 4294967266, %v2049
    %v2055 = vadd.s32 %v2054, 127
    %v2056 = vshll.u32 %v2055, 23
    %v2057 = vor.u32 4788187, %v2056
    %v2058 = vand.u32 2147483647, %v2057
    %v2060 = vcvt.s32.f32 %v2053
    %v2061 = vmul.f32 %v2060, %v2058
    %v2062 = vxor.u32 %v2061, 2147483648
    %v2063 = vsel %vm1980, %v2062, %v2061
    %v2064 = vsub.s32 4, %v2040
    %v2065 = vsel %vm1980, %v2064, %v2040
    %v2066 = vsel %vm1979, %v636, %v2063
    %v2067 = vsel %vm1979, 0, %v2065
    %v2068 = vcosq.f32.pop %v2066
    %v2069 = vsinq.f32.pop %v2066
    %vm2070 = vweird.f32 %v636
    %v2071 = vand.u32 %v2067, 3
    %vm2072 = vcmp.lt.s32.totalorder %v2071, 2
    %vm2073 = vcmp.eq.s32.totalorder %v2071, 0
    %v2074 = vxor.u32 %v2069, 2147483648
    %v2075 = vsel %vm2073, %v2068, %v2074
    %vm2076 = vcmp.eq.s32.totalorder %v2071, 2
    %v2077 = vxor.u32 %v2068, 2147483648
    %v2078 = vsel %vm2076, %v2077, %v2069
    %v2079 = vsel %vm2072, %v2075, %v2078
    %v2080 = vsel %vm2070, nan, %v2079
    %v2081 = vand.u32 2147483647, %v637
    %vm2082 = vcmp.le.f32.partialorder %v2081, 0.7853982
    %vm2083 = vcmp.lt.s32.totalorder %v637, 0
    %v2084 = vand.u32 %v637, 2139095040
    %v2085 = vshrl.u32 %v2084, 23
    %v2086 = vsub.s32 %v2085, 127
    %v2087 = vand.u32 2147483647, %v637
    %v2088 = vand.u32 %v2087, 8388607
    %v2089 = vor.u32 %v2088, 8388608
    %v2090 = vsub.s32 0, %v2089
    %v2091 = vadd.s32 %v2086, 1
    %vm2092 = vcmp.gt.s32.totalorder %v2091, 0
    %v2093 = vsel %vm2092, %v2091, 0
    %v2094 = vshrl.u32 %v2093, 5
    %v2095 = vand.u32 %v2093, 31
    %v2096 = vsub.s32 32, %v2095
    %v2097 = vshrl.u32 683565275, %v2096
    %v2098 = vshll.u32 683565275, %v2095
    %v2099 = vshrl.u32 2475754826, %v2096
    %v2100 = vor.u32 %v2098, %v2099
    %v2101 = vshll.u32 2475754826, %v2095
    %v2102 = vshrl.u32 2131351028, %v2096
    %v2103 = vor.u32 %v2101, %v2102
    %v2104 = vshll.u32 2131351028, %v2095
    %v2105 = vshrl.u32 2102212464, %v2096
    %v2106 = vor.u32 %v2104, %v2105
    %v2107 = vshll.u32 2102212464, %v2095
    %v2108 = vshrl.u32 920167782, %v2096
    %v2109 = vor.u32 %v2107, %v2108
    %v2110 = vshll.u32 920167782, %v2095
    %v2111 = vshrl.u32 1326507024, %v2096
    %v2112 = vor.u32 %v2110, %v2111
    %vm2113 = vcmp.lt.s32.totalorder %v2094, 1
    %vm2114 = vcmp.lt.s32.totalorder %v2094, 2
    %vm2115 = vcmp.lt.s32.totalorder %v2094, 3
    %vm2116 = vcmp.lt.s32.totalorder %v2094, 4
    %v2117 = vsel %vm2113, %v2097, %v2100
    %v2118 = vsel %vm2116, %v2106, 2102212464
    %v2119 = vsel %vm2115, %v2103, %v2118
    %v2120 = vsel %vm2114, %v2117, %v2119
    %v2121 = vsel %vm2113, %v2100, %v2103
    %v2122 = vsel %vm2116, %v2109, 920167782
    %v2123 = vsel %vm2115, %v2106, %v2122
    %v2124 = vsel %vm2114, %v2121, %v2123
    %v2125 = vsel %vm2113, %v2103, %v2106
    %v2126 = vsel %vm2116, %v2112, 1326507024
    %v2127 = vsel %vm2115, %v2109, %v2126
    %v2128 = vsel %vm2114, %v2125, %v2127
    %v2129 = vshll.u32 %v2089, 8
    %v2130 = vmul.u32.u64.compose %v2129, %v2128
    %v2131 = vextract.low.u32 %v2130
    %v2132 = vextract.high.u32 %v2130
    %v2133 = vmul.u32.u64.compose %v2129, %v2124
    %v2134 = vextract.low.u32 %v2133
    %v2135 = vextract.high.u32 %v2133
    %v2136 = vmul.u32 %v2129, %v2120
    %v2137 = vadd.s32 %v2132, %v2134
    %vm2138 = vc.u32 %v2132, %v2134
    %v2139 = vadd.s32 %v2135, 1
    %v2140 = vsel %vm2138, %v2139, %v2135
    %v2141 = vadd.s32 %v2136, %v2140
    %v2142 = vadd.s32 %v2141, 536870912
    %v2143 = vshrl.u32 %v2142, 30
    %v2144 = vshll.u32 %v2143, 30
    %v2145 = vsub.s32 %v2141, %v2144
    %vm2146 = vcmp.lt.s32.totalorder %v2145, 0
    %v2147 = vsub.s32 0, %v2145
    %v2148 = vsel %vm2146, %v2147, %v2145
    %v2149 = vclz %v2148
    %v2150 = vsub.s32 %v2149, 2
    %vm2151 = vcmp.gt.s32.totalorder 0, %v2150
    %v2152 = vsel %vm2151, 0, %v2150
    %v2153 = vsub.s32 32, %v2152
    %v2154 = vshll.u32 %v2145, %v2152
    %v2155 = vshrl.u32 %v2137, %v2153
    %v2156 = vor.u32 %v2154, %v2155
    %v2157 = vsub.s32 4294967266, %v2152
    %v2158 = vadd.s32 %v2157, 127
    %v2159 = vshll.u32 %v2158, 23
    %v2160 = vor.u32 4788187, %v2159
    %v2161 = vand.u32 2147483647, %v2160
    %v2163 = vcvt.s32.f32 %v2156
    %v2164 = vmul.f32 %v2163, %v2161
    %v2165 = vxor.u32 %v2164, 2147483648
    %v2166 = vsel %vm2083, %v2165, %v2164
    %v2167 = vsub.s32 4, %v2143
    %v2168 = vsel %vm2083, %v2167, %v2143
    %v2169 = vsel %vm2082, %v637, %v2166
    %v2170 = vsel %vm2082, 0, %v2168
    %v2171 = vcosq.f32.pop %v2169
    %v2172 = vsinq.f32.pop %v2169
    %vm2173 = vweird.f32 %v637
    %v2174 = vand.u32 %v2170, 3
    %vm2175 = vcmp.lt.s32.totalorder %v2174, 2
    %vm2176 = vcmp.eq.s32.totalorder %v2174, 0
    %v2177 = vxor.u32 %v2172, 2147483648
    %v2178 = vsel %vm2176, %v2171, %v2177
    %vm2179 = vcmp.eq.s32.totalorder %v2174, 2
    %v2180 = vxor.u32 %v2171, 2147483648
    %v2181 = vsel %vm2179, %v2180, %v2172
    %v2182 = vsel %vm2175, %v2178, %v2181
    %v2183 = vsel %vm2173, nan, %v2182
    %v2184 = vand.u32 2147483647, %v638
    %vm2185 = vcmp.le.f32.partialorder %v2184, 0.7853982
    %vm2186 = vcmp.lt.s32.totalorder %v638, 0
    %v2187 = vand.u32 %v638, 2139095040
    %v2188 = vshrl.u32 %v2187, 23
    %v2189 = vsub.s32 %v2188, 127
    %v2190 = vand.u32 2147483647, %v638
    %v2191 = vand.u32 %v2190, 8388607
    %v2192 = vor.u32 %v2191, 8388608
    %v2193 = vsub.s32 0, %v2192
    %v2194 = vadd.s32 %v2189, 1
    %vm2195 = vcmp.gt.s32.totalorder %v2194, 0
    %v2196 = vsel %vm2195, %v2194, 0
    %v2197 = vshrl.u32 %v2196, 5
    %v2198 = vand.u32 %v2196, 31
    %v2199 = vsub.s32 32, %v2198
    %v2200 = vshrl.u32 683565275, %v2199
    %v2201 = vshll.u32 683565275, %v2198
    %v2202 = vshrl.u32 2475754826, %v2199
    %v2203 = vor.u32 %v2201, %v2202
    %v2204 = vshll.u32 2475754826, %v2198
    %v2205 = vshrl.u32 2131351028, %v2199
    %v2206 = vor.u32 %v2204, %v2205
    %v2207 = vshll.u32 2131351028, %v2198
    %v2208 = vshrl.u32 2102212464, %v2199
    %v2209 = vor.u32 %v2207, %v2208
    %v2210 = vshll.u32 2102212464, %v2198
    %v2211 = vshrl.u32 920167782, %v2199
    %v2212 = vor.u32 %v2210, %v2211
    %v2213 = vshll.u32 920167782, %v2198
    %v2214 = vshrl.u32 1326507024, %v2199
    %v2215 = vor.u32 %v2213, %v2214
    %vm2216 = vcmp.lt.s32.totalorder %v2197, 1
    %vm2217 = vcmp.lt.s32.totalorder %v2197, 2
    %vm2218 = vcmp.lt.s32.totalorder %v2197, 3
    %vm2219 = vcmp.lt.s32.totalorder %v2197, 4
    %v2220 = vsel %vm2216, %v2200, %v2203
    %v2221 = vsel %vm2219, %v2209, 2102212464
    %v2222 = vsel %vm2218, %v2206, %v2221
    %v2223 = vsel %vm2217, %v2220, %v2222
    %v2224 = vsel %vm2216, %v2203, %v2206
    %v2225 = vsel %vm2219, %v2212, 920167782
    %v2226 = vsel %vm2218, %v2209, %v2225
    %v2227 = vsel %vm2217, %v2224, %v2226
    %v2228 = vsel %vm2216, %v2206, %v2209
    %v2229 = vsel %vm2219, %v2215, 1326507024
    %v2230 = vsel %vm2218, %v2212, %v2229
    %v2231 = vsel %vm2217, %v2228, %v2230
    %v2232 = vshll.u32 %v2192, 8
    %v2233 = vmul.u32.u64.compose %v2232, %v2231
    %v2234 = vextract.low.u32 %v2233
    %v2235 = vextract.high.u32 %v2233
    %v2236 = vmul.u32.u64.compose %v2232, %v2227
    %v2237 = vextract.low.u32 %v2236
    %v2238 = vextract.high.u32 %v2236
    %v2239 = vmul.u32 %v2232, %v2223
    %v2240 = vadd.s32 %v2235, %v2237
    %vm2241 = vc.u32 %v2235, %v2237
    %v2242 = vadd.s32 %v2238, 1
    %v2243 = vsel %vm2241, %v2242, %v2238
    %v2244 = vadd.s32 %v2239, %v2243
    %v2245 = vadd.s32 %v2244, 536870912
    %v2246 = vshrl.u32 %v2245, 30
    %v2247 = vshll.u32 %v2246, 30
    %v2248 = vsub.s32 %v2244, %v2247
    %vm2249 = vcmp.lt.s32.totalorder %v2248, 0
    %v2250 = vsub.s32 0, %v2248
    %v2251 = vsel %vm2249, %v2250, %v2248
    %v2252 = vclz %v2251
    %v2253 = vsub.s32 %v2252, 2
    %vm2254 = vcmp.gt.s32.totalorder 0, %v2253
    %v2255 = vsel %vm2254, 0, %v2253
    %v2256 = vsub.s32 32, %v2255
    %v2257 = vshll.u32 %v2248, %v2255
    %v2258 = vshrl.u32 %v2240, %v2256
    %v2259 = vor.u32 %v2257, %v2258
    %v2260 = vsub.s32 4294967266, %v2255
    %v2261 = vadd.s32 %v2260, 127
    %v2262 = vshll.u32 %v2261, 23
    %v2263 = vor.u32 4788187, %v2262
    %v2264 = vand.u32 2147483647, %v2263
    %v2266 = vcvt.s32.f32 %v2259
    %v2267 = vmul.f32 %v2266, %v2264
    %v2268 = vxor.u32 %v2267, 2147483648
    %v2269 = vsel %vm2186, %v2268, %v2267
    %v2270 = vsub.s32 4, %v2246
    %v2271 = vsel %vm2186, %v2270, %v2246
    %v2272 = vsel %vm2185, %v638, %v2269
    %v2273 = vsel %vm2185, 0, %v2271
    %v2274 = vcosq.f32.pop %v2272
    %v2275 = vsinq.f32.pop %v2272
    %vm2276 = vweird.f32 %v638
    %v2277 = vand.u32 %v2273, 3
    %vm2278 = vcmp.lt.s32.totalorder %v2277, 2
    %vm2279 = vcmp.eq.s32.totalorder %v2277, 0
    %v2280 = vxor.u32 %v2275, 2147483648
    %v2281 = vsel %vm2279, %v2274, %v2280
    %vm2282 = vcmp.eq.s32.totalorder %v2277, 2
    %v2283 = vxor.u32 %v2274, 2147483648
    %v2284 = vsel %vm2282, %v2283, %v2275
    %v2285 = vsel %vm2278, %v2281, %v2284
    %v2286 = vsel %vm2276, nan, %v2285
    %v2287 = vpack.c.bf16 %v844, %v741
    %v2288 = vpack.c.bf16 %v1050, %v947
    %v2289 = vpack.c.bf16 %v1256, %v1153
    %v2290 = vpack.c.bf16 %v1462, %v1359
    %v2291 = vpack.c.bf16 %v1668, %v1565
    %v2292 = vpack.c.bf16 %v1874, %v1771
    %v2293 = vpack.c.bf16 %v2080, %v1977
    %v2294 = vpack.c.bf16 %v2286, %v2183
    %v2295 = vand.u32 2147483647, %v623
    %vm2296 = vcmp.le.f32.partialorder %v2295, 0.7853982
    %vm2297 = vcmp.lt.s32.totalorder %v623, 0
    %v2298 = vand.u32 %v623, 2139095040
    %v2299 = vshrl.u32 %v2298, 23
    %v2300 = vsub.s32 %v2299, 127
    %v2301 = vand.u32 2147483647, %v623
    %v2302 = vand.u32 %v2301, 8388607
    %v2303 = vor.u32 %v2302, 8388608
    %v2304 = vsub.s32 0, %v2303
    %v2305 = vadd.s32 %v2300, 1
    %vm2306 = vcmp.gt.s32.totalorder %v2305, 0
    %v2307 = vsel %vm2306, %v2305, 0
    %v2308 = vshrl.u32 %v2307, 5
    %v2309 = vand.u32 %v2307, 31
    %v2310 = vsub.s32 32, %v2309
    %v2311 = vshrl.u32 683565275, %v2310
    %v2312 = vshll.u32 683565275, %v2309
    %v2313 = vshrl.u32 2475754826, %v2310
    %v2314 = vor.u32 %v2312, %v2313
    %v2315 = vshll.u32 2475754826, %v2309
    %v2316 = vshrl.u32 2131351028, %v2310
    %v2317 = vor.u32 %v2315, %v2316
    %v2318 = vshll.u32 2131351028, %v2309
    %v2319 = vshrl.u32 2102212464, %v2310
    %v2320 = vor.u32 %v2318, %v2319
    %v2321 = vshll.u32 2102212464, %v2309
    %v2322 = vshrl.u32 920167782, %v2310
    %v2323 = vor.u32 %v2321, %v2322
    %v2324 = vshll.u32 920167782, %v2309
    %v2325 = vshrl.u32 1326507024, %v2310
    %v2326 = vor.u32 %v2324, %v2325
    %vm2327 = vcmp.lt.s32.totalorder %v2308, 1
    %vm2328 = vcmp.lt.s32.totalorder %v2308, 2
    %vm2329 = vcmp.lt.s32.totalorder %v2308, 3
    %vm2330 = vcmp.lt.s32.totalorder %v2308, 4
    %v2331 = vsel %vm2327, %v2311, %v2314
    %v2332 = vsel %vm2330, %v2320, 2102212464
    %v2333 = vsel %vm2329, %v2317, %v2332
    %v2334 = vsel %vm2328, %v2331, %v2333
    %v2335 = vsel %vm2327, %v2314, %v2317
    %v2336 = vsel %vm2330, %v2323, 920167782
    %v2337 = vsel %vm2329, %v2320, %v2336
    %v2338 = vsel %vm2328, %v2335, %v2337
    %v2339 = vsel %vm2327, %v2317, %v2320
    %v2340 = vsel %vm2330, %v2326, 1326507024
    %v2341 = vsel %vm2329, %v2323, %v2340
    %v2342 = vsel %vm2328, %v2339, %v2341
    %v2343 = vshll.u32 %v2303, 8
    %v2344 = vmul.u32.u64.compose %v2343, %v2342
    %v2345 = vextract.low.u32 %v2344
    %v2346 = vextract.high.u32 %v2344
    %v2347 = vmul.u32.u64.compose %v2343, %v2338
    %v2348 = vextract.low.u32 %v2347
    %v2349 = vextract.high.u32 %v2347
    %v2350 = vmul.u32 %v2343, %v2334
    %v2351 = vadd.s32 %v2346, %v2348
    %vm2352 = vc.u32 %v2346, %v2348
    %v2353 = vadd.s32 %v2349, 1
    %v2354 = vsel %vm2352, %v2353, %v2349
    %v2355 = vadd.s32 %v2350, %v2354
    %v2356 = vadd.s32 %v2355, 536870912
    %v2357 = vshrl.u32 %v2356, 30
    %v2358 = vshll.u32 %v2357, 30
    %v2359 = vsub.s32 %v2355, %v2358
    %vm2360 = vcmp.lt.s32.totalorder %v2359, 0
    %v2361 = vsub.s32 0, %v2359
    %v2362 = vsel %vm2360, %v2361, %v2359
    %v2363 = vclz %v2362
    %v2364 = vsub.s32 %v2363, 2
    %vm2365 = vcmp.gt.s32.totalorder 0, %v2364
    %v2366 = vsel %vm2365, 0, %v2364
    %v2367 = vsub.s32 32, %v2366
    %v2368 = vshll.u32 %v2359, %v2366
    %v2369 = vshrl.u32 %v2351, %v2367
    %v2370 = vor.u32 %v2368, %v2369
    %v2371 = vsub.s32 4294967266, %v2366
    %v2372 = vadd.s32 %v2371, 127
    %v2373 = vshll.u32 %v2372, 23
    %v2374 = vor.u32 4788187, %v2373
    %v2375 = vand.u32 2147483647, %v2374
    %v2377 = vcvt.s32.f32 %v2370
    %v2378 = vmul.f32 %v2377, %v2375
    %v2379 = vxor.u32 %v2378, 2147483648
    %v2380 = vsel %vm2297, %v2379, %v2378
    %v2381 = vsub.s32 4, %v2357
    %v2382 = vsel %vm2297, %v2381, %v2357
    %v2383 = vsel %vm2296, %v623, %v2380
    %v2384 = vsel %vm2296, 0, %v2382
    %v2385 = vcosq.f32.pop %v2383
    %v2386 = vsinq.f32.pop %v2383
    %vm2387 = vweird.f32 %v623
    %v2388 = vadd.s32 %v2384, 3
    %v2389 = vand.u32 %v2388, 3
    %vm2390 = vcmp.lt.s32.totalorder %v2389, 2
    %vm2391 = vcmp.eq.s32.totalorder %v2389, 0
    %v2392 = vxor.u32 %v2386, 2147483648
    %v2393 = vsel %vm2391, %v2385, %v2392
    %vm2394 = vcmp.eq.s32.totalorder %v2389, 2
    %v2395 = vxor.u32 %v2385, 2147483648
    %v2396 = vsel %vm2394, %v2395, %v2386
    %v2397 = vsel %vm2390, %v2393, %v2396
    %v2398 = vsel %vm2387, nan, %v2397
    %v2399 = vand.u32 2147483647, %v624
    %vm2400 = vcmp.le.f32.partialorder %v2399, 0.7853982
    %vm2401 = vcmp.lt.s32.totalorder %v624, 0
    %v2402 = vand.u32 %v624, 2139095040
    %v2403 = vshrl.u32 %v2402, 23
    %v2404 = vsub.s32 %v2403, 127
    %v2405 = vand.u32 2147483647, %v624
    %v2406 = vand.u32 %v2405, 8388607
    %v2407 = vor.u32 %v2406, 8388608
    %v2408 = vsub.s32 0, %v2407
    %v2409 = vadd.s32 %v2404, 1
    %vm2410 = vcmp.gt.s32.totalorder %v2409, 0
    %v2411 = vsel %vm2410, %v2409, 0
    %v2412 = vshrl.u32 %v2411, 5
    %v2413 = vand.u32 %v2411, 31
    %v2414 = vsub.s32 32, %v2413
    %v2415 = vshrl.u32 683565275, %v2414
    %v2416 = vshll.u32 683565275, %v2413
    %v2417 = vshrl.u32 2475754826, %v2414
    %v2418 = vor.u32 %v2416, %v2417
    %v2419 = vshll.u32 2475754826, %v2413
    %v2420 = vshrl.u32 2131351028, %v2414
    %v2421 = vor.u32 %v2419, %v2420
    %v2422 = vshll.u32 2131351028, %v2413
    %v2423 = vshrl.u32 2102212464, %v2414
    %v2424 = vor.u32 %v2422, %v2423
    %v2425 = vshll.u32 2102212464, %v2413
    %v2426 = vshrl.u32 920167782, %v2414
    %v2427 = vor.u32 %v2425, %v2426
    %v2428 = vshll.u32 920167782, %v2413
    %v2429 = vshrl.u32 1326507024, %v2414
    %v2430 = vor.u32 %v2428, %v2429
    %vm2431 = vcmp.lt.s32.totalorder %v2412, 1
    %vm2432 = vcmp.lt.s32.totalorder %v2412, 2
    %vm2433 = vcmp.lt.s32.totalorder %v2412, 3
    %vm2434 = vcmp.lt.s32.totalorder %v2412, 4
    %v2435 = vsel %vm2431, %v2415, %v2418
    %v2436 = vsel %vm2434, %v2424, 2102212464
    %v2437 = vsel %vm2433, %v2421, %v2436
    %v2438 = vsel %vm2432, %v2435, %v2437
    %v2439 = vsel %vm2431, %v2418, %v2421
    %v2440 = vsel %vm2434, %v2427, 920167782
    %v2441 = vsel %vm2433, %v2424, %v2440
    %v2442 = vsel %vm2432, %v2439, %v2441
    %v2443 = vsel %vm2431, %v2421, %v2424
    %v2444 = vsel %vm2434, %v2430, 1326507024
    %v2445 = vsel %vm2433, %v2427, %v2444
    %v2446 = vsel %vm2432, %v2443, %v2445
    %v2447 = vshll.u32 %v2407, 8
    %v2448 = vmul.u32.u64.compose %v2447, %v2446
    %v2449 = vextract.low.u32 %v2448
    %v2450 = vextract.high.u32 %v2448
    %v2451 = vmul.u32.u64.compose %v2447, %v2442
    %v2452 = vextract.low.u32 %v2451
    %v2453 = vextract.high.u32 %v2451
    %v2454 = vmul.u32 %v2447, %v2438
    %v2455 = vadd.s32 %v2450, %v2452
    %vm2456 = vc.u32 %v2450, %v2452
    %v2457 = vadd.s32 %v2453, 1
    %v2458 = vsel %vm2456, %v2457, %v2453
    %v2459 = vadd.s32 %v2454, %v2458
    %v2460 = vadd.s32 %v2459, 536870912
    %v2461 = vshrl.u32 %v2460, 30
    %v2462 = vshll.u32 %v2461, 30
    %v2463 = vsub.s32 %v2459, %v2462
    %vm2464 = vcmp.lt.s32.totalorder %v2463, 0
    %v2465 = vsub.s32 0, %v2463
    %v2466 = vsel %vm2464, %v2465, %v2463
    %v2467 = vclz %v2466
    %v2468 = vsub.s32 %v2467, 2
    %vm2469 = vcmp.gt.s32.totalorder 0, %v2468
    %v2470 = vsel %vm2469, 0, %v2468
    %v2471 = vsub.s32 32, %v2470
    %v2472 = vshll.u32 %v2463, %v2470
    %v2473 = vshrl.u32 %v2455, %v2471
    %v2474 = vor.u32 %v2472, %v2473
    %v2475 = vsub.s32 4294967266, %v2470
    %v2476 = vadd.s32 %v2475, 127
    %v2477 = vshll.u32 %v2476, 23
    %v2478 = vor.u32 4788187, %v2477
    %v2479 = vand.u32 2147483647, %v2478
    %v2481 = vcvt.s32.f32 %v2474
    %v2482 = vmul.f32 %v2481, %v2479
    %v2483 = vxor.u32 %v2482, 2147483648
    %v2484 = vsel %vm2401, %v2483, %v2482
    %v2485 = vsub.s32 4, %v2461
    %v2486 = vsel %vm2401, %v2485, %v2461
    %v2487 = vsel %vm2400, %v624, %v2484
    %v2488 = vsel %vm2400, 0, %v2486
    %v2489 = vcosq.f32.pop %v2487
    %v2490 = vsinq.f32.pop %v2487
    %vm2491 = vweird.f32 %v624
    %v2492 = vadd.s32 %v2488, 3
    %v2493 = vand.u32 %v2492, 3
    %vm2494 = vcmp.lt.s32.totalorder %v2493, 2
    %vm2495 = vcmp.eq.s32.totalorder %v2493, 0
    %v2496 = vxor.u32 %v2490, 2147483648
    %v2497 = vsel %vm2495, %v2489, %v2496
    %vm2498 = vcmp.eq.s32.totalorder %v2493, 2
    %v2499 = vxor.u32 %v2489, 2147483648
    %v2500 = vsel %vm2498, %v2499, %v2490
    %v2501 = vsel %vm2494, %v2497, %v2500
    %v2502 = vsel %vm2491, nan, %v2501
    %v2503 = vand.u32 2147483647, %v625
    %vm2504 = vcmp.le.f32.partialorder %v2503, 0.7853982
    %vm2505 = vcmp.lt.s32.totalorder %v625, 0
    %v2506 = vand.u32 %v625, 2139095040
    %v2507 = vshrl.u32 %v2506, 23
    %v2508 = vsub.s32 %v2507, 127
    %v2509 = vand.u32 2147483647, %v625
    %v2510 = vand.u32 %v2509, 8388607
    %v2511 = vor.u32 %v2510, 8388608
    %v2512 = vsub.s32 0, %v2511
    %v2513 = vadd.s32 %v2508, 1
    %vm2514 = vcmp.gt.s32.totalorder %v2513, 0
    %v2515 = vsel %vm2514, %v2513, 0
    %v2516 = vshrl.u32 %v2515, 5
    %v2517 = vand.u32 %v2515, 31
    %v2518 = vsub.s32 32, %v2517
    %v2519 = vshrl.u32 683565275, %v2518
    %v2520 = vshll.u32 683565275, %v2517
    %v2521 = vshrl.u32 2475754826, %v2518
    %v2522 = vor.u32 %v2520, %v2521
    %v2523 = vshll.u32 2475754826, %v2517
    %v2524 = vshrl.u32 2131351028, %v2518
    %v2525 = vor.u32 %v2523, %v2524
    %v2526 = vshll.u32 2131351028, %v2517
    %v2527 = vshrl.u32 2102212464, %v2518
    %v2528 = vor.u32 %v2526, %v2527
    %v2529 = vshll.u32 2102212464, %v2517
    %v2530 = vshrl.u32 920167782, %v2518
    %v2531 = vor.u32 %v2529, %v2530
    %v2532 = vshll.u32 920167782, %v2517
    %v2533 = vshrl.u32 1326507024, %v2518
    %v2534 = vor.u32 %v2532, %v2533
    %vm2535 = vcmp.lt.s32.totalorder %v2516, 1
    %vm2536 = vcmp.lt.s32.totalorder %v2516, 2
    %vm2537 = vcmp.lt.s32.totalorder %v2516, 3
    %vm2538 = vcmp.lt.s32.totalorder %v2516, 4
    %v2539 = vsel %vm2535, %v2519, %v2522
    %v2540 = vsel %vm2538, %v2528, 2102212464
    %v2541 = vsel %vm2537, %v2525, %v2540
    %v2542 = vsel %vm2536, %v2539, %v2541
    %v2543 = vsel %vm2535, %v2522, %v2525
    %v2544 = vsel %vm2538, %v2531, 920167782
    %v2545 = vsel %vm2537, %v2528, %v2544
    %v2546 = vsel %vm2536, %v2543, %v2545
    %v2547 = vsel %vm2535, %v2525, %v2528
    %v2548 = vsel %vm2538, %v2534, 1326507024
    %v2549 = vsel %vm2537, %v2531, %v2548
    %v2550 = vsel %vm2536, %v2547, %v2549
    %v2551 = vshll.u32 %v2511, 8
    %v2552 = vmul.u32.u64.compose %v2551, %v2550
    %v2553 = vextract.low.u32 %v2552
    %v2554 = vextract.high.u32 %v2552
    %v2555 = vmul.u32.u64.compose %v2551, %v2546
    %v2556 = vextract.low.u32 %v2555
    %v2557 = vextract.high.u32 %v2555
    %v2558 = vmul.u32 %v2551, %v2542
    %v2559 = vadd.s32 %v2554, %v2556
    %vm2560 = vc.u32 %v2554, %v2556
    %v2561 = vadd.s32 %v2557, 1
    %v2562 = vsel %vm2560, %v2561, %v2557
    %v2563 = vadd.s32 %v2558, %v2562
    %v2564 = vadd.s32 %v2563, 536870912
    %v2565 = vshrl.u32 %v2564, 30
    %v2566 = vshll.u32 %v2565, 30
    %v2567 = vsub.s32 %v2563, %v2566
    %vm2568 = vcmp.lt.s32.totalorder %v2567, 0
    %v2569 = vsub.s32 0, %v2567
    %v2570 = vsel %vm2568, %v2569, %v2567
    %v2571 = vclz %v2570
    %v2572 = vsub.s32 %v2571, 2
    %vm2573 = vcmp.gt.s32.totalorder 0, %v2572
    %v2574 = vsel %vm2573, 0, %v2572
    %v2575 = vsub.s32 32, %v2574
    %v2576 = vshll.u32 %v2567, %v2574
    %v2577 = vshrl.u32 %v2559, %v2575
    %v2578 = vor.u32 %v2576, %v2577
    %v2579 = vsub.s32 4294967266, %v2574
    %v2580 = vadd.s32 %v2579, 127
    %v2581 = vshll.u32 %v2580, 23
    %v2582 = vor.u32 4788187, %v2581
    %v2583 = vand.u32 2147483647, %v2582
    %v2585 = vcvt.s32.f32 %v2578
    %v2586 = vmul.f32 %v2585, %v2583
    %v2587 = vxor.u32 %v2586, 2147483648
    %v2588 = vsel %vm2505, %v2587, %v2586
    %v2589 = vsub.s32 4, %v2565
    %v2590 = vsel %vm2505, %v2589, %v2565
    %v2591 = vsel %vm2504, %v625, %v2588
    %v2592 = vsel %vm2504, 0, %v2590
    %v2593 = vcosq.f32.pop %v2591
    %v2594 = vsinq.f32.pop %v2591
    %vm2595 = vweird.f32 %v625
    %v2596 = vadd.s32 %v2592, 3
    %v2597 = vand.u32 %v2596, 3
    %vm2598 = vcmp.lt.s32.totalorder %v2597, 2
    %vm2599 = vcmp.eq.s32.totalorder %v2597, 0
    %v2600 = vxor.u32 %v2594, 2147483648
    %v2601 = vsel %vm2599, %v2593, %v2600
    %vm2602 = vcmp.eq.s32.totalorder %v2597, 2
    %v2603 = vxor.u32 %v2593, 2147483648
    %v2604 = vsel %vm2602, %v2603, %v2594
    %v2605 = vsel %vm2598, %v2601, %v2604
    %v2606 = vsel %vm2595, nan, %v2605
    %v2607 = vand.u32 2147483647, %v626
    %vm2608 = vcmp.le.f32.partialorder %v2607, 0.7853982
    %vm2609 = vcmp.lt.s32.totalorder %v626, 0
    %v2610 = vand.u32 %v626, 2139095040
    %v2611 = vshrl.u32 %v2610, 23
    %v2612 = vsub.s32 %v2611, 127
    %v2613 = vand.u32 2147483647, %v626
    %v2614 = vand.u32 %v2613, 8388607
    %v2615 = vor.u32 %v2614, 8388608
    %v2616 = vsub.s32 0, %v2615
    %v2617 = vadd.s32 %v2612, 1
    %vm2618 = vcmp.gt.s32.totalorder %v2617, 0
    %v2619 = vsel %vm2618, %v2617, 0
    %v2620 = vshrl.u32 %v2619, 5
    %v2621 = vand.u32 %v2619, 31
    %v2622 = vsub.s32 32, %v2621
    %v2623 = vshrl.u32 683565275, %v2622
    %v2624 = vshll.u32 683565275, %v2621
    %v2625 = vshrl.u32 2475754826, %v2622
    %v2626 = vor.u32 %v2624, %v2625
    %v2627 = vshll.u32 2475754826, %v2621
    %v2628 = vshrl.u32 2131351028, %v2622
    %v2629 = vor.u32 %v2627, %v2628
    %v2630 = vshll.u32 2131351028, %v2621
    %v2631 = vshrl.u32 2102212464, %v2622
    %v2632 = vor.u32 %v2630, %v2631
    %v2633 = vshll.u32 2102212464, %v2621
    %v2634 = vshrl.u32 920167782, %v2622
    %v2635 = vor.u32 %v2633, %v2634
    %v2636 = vshll.u32 920167782, %v2621
    %v2637 = vshrl.u32 1326507024, %v2622
    %v2638 = vor.u32 %v2636, %v2637
    %vm2639 = vcmp.lt.s32.totalorder %v2620, 1
    %vm2640 = vcmp.lt.s32.totalorder %v2620, 2
    %vm2641 = vcmp.lt.s32.totalorder %v2620, 3
    %vm2642 = vcmp.lt.s32.totalorder %v2620, 4
    %v2643 = vsel %vm2639, %v2623, %v2626
    %v2644 = vsel %vm2642, %v2632, 2102212464
    %v2645 = vsel %vm2641, %v2629, %v2644
    %v2646 = vsel %vm2640, %v2643, %v2645
    %v2647 = vsel %vm2639, %v2626, %v2629
    %v2648 = vsel %vm2642, %v2635, 920167782
    %v2649 = vsel %vm2641, %v2632, %v2648
    %v2650 = vsel %vm2640, %v2647, %v2649
    %v2651 = vsel %vm2639, %v2629, %v2632
    %v2652 = vsel %vm2642, %v2638, 1326507024
    %v2653 = vsel %vm2641, %v2635, %v2652
    %v2654 = vsel %vm2640, %v2651, %v2653
    %v2655 = vshll.u32 %v2615, 8
    %v2656 = vmul.u32.u64.compose %v2655, %v2654
    %v2657 = vextract.low.u32 %v2656
    %v2658 = vextract.high.u32 %v2656
    %v2659 = vmul.u32.u64.compose %v2655, %v2650
    %v2660 = vextract.low.u32 %v2659
    %v2661 = vextract.high.u32 %v2659
    %v2662 = vmul.u32 %v2655, %v2646
    %v2663 = vadd.s32 %v2658, %v2660
    %vm2664 = vc.u32 %v2658, %v2660
    %v2665 = vadd.s32 %v2661, 1
    %v2666 = vsel %vm2664, %v2665, %v2661
    %v2667 = vadd.s32 %v2662, %v2666
    %v2668 = vadd.s32 %v2667, 536870912
    %v2669 = vshrl.u32 %v2668, 30
    %v2670 = vshll.u32 %v2669, 30
    %v2671 = vsub.s32 %v2667, %v2670
    %vm2672 = vcmp.lt.s32.totalorder %v2671, 0
    %v2673 = vsub.s32 0, %v2671
    %v2674 = vsel %vm2672, %v2673, %v2671
    %v2675 = vclz %v2674
    %v2676 = vsub.s32 %v2675, 2
    %vm2677 = vcmp.gt.s32.totalorder 0, %v2676
    %v2678 = vsel %vm2677, 0, %v2676
    %v2679 = vsub.s32 32, %v2678
    %v2680 = vshll.u32 %v2671, %v2678
    %v2681 = vshrl.u32 %v2663, %v2679
    %v2682 = vor.u32 %v2680, %v2681
    %v2683 = vsub.s32 4294967266, %v2678
    %v2684 = vadd.s32 %v2683, 127
    %v2685 = vshll.u32 %v2684, 23
    %v2686 = vor.u32 4788187, %v2685
    %v2687 = vand.u32 2147483647, %v2686
    %v2689 = vcvt.s32.f32 %v2682
    %v2690 = vmul.f32 %v2689, %v2687
    %v2691 = vxor.u32 %v2690, 2147483648
    %v2692 = vsel %vm2609, %v2691, %v2690
    %v2693 = vsub.s32 4, %v2669
    %v2694 = vsel %vm2609, %v2693, %v2669
    %v2695 = vsel %vm2608, %v626, %v2692
    %v2696 = vsel %vm2608, 0, %v2694
    %v2697 = vcosq.f32.pop %v2695
    %v2698 = vsinq.f32.pop %v2695
    %vm2699 = vweird.f32 %v626
    %v2700 = vadd.s32 %v2696, 3
    %v2701 = vand.u32 %v2700, 3
    %vm2702 = vcmp.lt.s32.totalorder %v2701, 2
    %vm2703 = vcmp.eq.s32.totalorder %v2701, 0
    %v2704 = vxor.u32 %v2698, 2147483648
    %v2705 = vsel %vm2703, %v2697, %v2704
    %vm2706 = vcmp.eq.s32.totalorder %v2701, 2
    %v2707 = vxor.u32 %v2697, 2147483648
    %v2708 = vsel %vm2706, %v2707, %v2698
    %v2709 = vsel %vm2702, %v2705, %v2708
    %v2710 = vsel %vm2699, nan, %v2709
    %v2711 = vand.u32 2147483647, %v627
    %vm2712 = vcmp.le.f32.partialorder %v2711, 0.7853982
    %vm2713 = vcmp.lt.s32.totalorder %v627, 0
    %v2714 = vand.u32 %v627, 2139095040
    %v2715 = vshrl.u32 %v2714, 23
    %v2716 = vsub.s32 %v2715, 127
    %v2717 = vand.u32 2147483647, %v627
    %v2718 = vand.u32 %v2717, 8388607
    %v2719 = vor.u32 %v2718, 8388608
    %v2720 = vsub.s32 0, %v2719
    %v2721 = vadd.s32 %v2716, 1
    %vm2722 = vcmp.gt.s32.totalorder %v2721, 0
    %v2723 = vsel %vm2722, %v2721, 0
    %v2724 = vshrl.u32 %v2723, 5
    %v2725 = vand.u32 %v2723, 31
    %v2726 = vsub.s32 32, %v2725
    %v2727 = vshrl.u32 683565275, %v2726
    %v2728 = vshll.u32 683565275, %v2725
    %v2729 = vshrl.u32 2475754826, %v2726
    %v2730 = vor.u32 %v2728, %v2729
    %v2731 = vshll.u32 2475754826, %v2725
    %v2732 = vshrl.u32 2131351028, %v2726
    %v2733 = vor.u32 %v2731, %v2732
    %v2734 = vshll.u32 2131351028, %v2725
    %v2735 = vshrl.u32 2102212464, %v2726
    %v2736 = vor.u32 %v2734, %v2735
    %v2737 = vshll.u32 2102212464, %v2725
    %v2738 = vshrl.u32 920167782, %v2726
    %v2739 = vor.u32 %v2737, %v2738
    %v2740 = vshll.u32 920167782, %v2725
    %v2741 = vshrl.u32 1326507024, %v2726
    %v2742 = vor.u32 %v2740, %v2741
    %vm2743 = vcmp.lt.s32.totalorder %v2724, 1
    %vm2744 = vcmp.lt.s32.totalorder %v2724, 2
    %vm2745 = vcmp.lt.s32.totalorder %v2724, 3
    %vm2746 = vcmp.lt.s32.totalorder %v2724, 4
    %v2747 = vsel %vm2743, %v2727, %v2730
    %v2748 = vsel %vm2746, %v2736, 2102212464
    %v2749 = vsel %vm2745, %v2733, %v2748
    %v2750 = vsel %vm2744, %v2747, %v2749
    %v2751 = vsel %vm2743, %v2730, %v2733
    %v2752 = vsel %vm2746, %v2739, 920167782
    %v2753 = vsel %vm2745, %v2736, %v2752
    %v2754 = vsel %vm2744, %v2751, %v2753
    %v2755 = vsel %vm2743, %v2733, %v2736
    %v2756 = vsel %vm2746, %v2742, 1326507024
    %v2757 = vsel %vm2745, %v2739, %v2756
    %v2758 = vsel %vm2744, %v2755, %v2757
    %v2759 = vshll.u32 %v2719, 8
    %v2760 = vmul.u32.u64.compose %v2759, %v2758
    %v2761 = vextract.low.u32 %v2760
    %v2762 = vextract.high.u32 %v2760
    %v2763 = vmul.u32.u64.compose %v2759, %v2754
    %v2764 = vextract.low.u32 %v2763
    %v2765 = vextract.high.u32 %v2763
    %v2766 = vmul.u32 %v2759, %v2750
    %v2767 = vadd.s32 %v2762, %v2764
    %vm2768 = vc.u32 %v2762, %v2764
    %v2769 = vadd.s32 %v2765, 1
    %v2770 = vsel %vm2768, %v2769, %v2765
    %v2771 = vadd.s32 %v2766, %v2770
    %v2772 = vadd.s32 %v2771, 536870912
    %v2773 = vshrl.u32 %v2772, 30
    %v2774 = vshll.u32 %v2773, 30
    %v2775 = vsub.s32 %v2771, %v2774
    %vm2776 = vcmp.lt.s32.totalorder %v2775, 0
    %v2777 = vsub.s32 0, %v2775
    %v2778 = vsel %vm2776, %v2777, %v2775
    %v2779 = vclz %v2778
    %v2780 = vsub.s32 %v2779, 2
    %vm2781 = vcmp.gt.s32.totalorder 0, %v2780
    %v2782 = vsel %vm2781, 0, %v2780
    %v2783 = vsub.s32 32, %v2782
    %v2784 = vshll.u32 %v2775, %v2782
    %v2785 = vshrl.u32 %v2767, %v2783
    %v2786 = vor.u32 %v2784, %v2785
    %v2787 = vsub.s32 4294967266, %v2782
    %v2788 = vadd.s32 %v2787, 127
    %v2789 = vshll.u32 %v2788, 23
    %v2790 = vor.u32 4788187, %v2789
    %v2791 = vand.u32 2147483647, %v2790
    %v2793 = vcvt.s32.f32 %v2786
    %v2794 = vmul.f32 %v2793, %v2791
    %v2795 = vxor.u32 %v2794, 2147483648
    %v2796 = vsel %vm2713, %v2795, %v2794
    %v2797 = vsub.s32 4, %v2773
    %v2798 = vsel %vm2713, %v2797, %v2773
    %v2799 = vsel %vm2712, %v627, %v2796
    %v2800 = vsel %vm2712, 0, %v2798
    %v2801 = vcosq.f32.pop %v2799
    %v2802 = vsinq.f32.pop %v2799
    %vm2803 = vweird.f32 %v627
    %v2804 = vadd.s32 %v2800, 3
    %v2805 = vand.u32 %v2804, 3
    %vm2806 = vcmp.lt.s32.totalorder %v2805, 2
    %vm2807 = vcmp.eq.s32.totalorder %v2805, 0
    %v2808 = vxor.u32 %v2802, 2147483648
    %v2809 = vsel %vm2807, %v2801, %v2808
    %vm2810 = vcmp.eq.s32.totalorder %v2805, 2
    %v2811 = vxor.u32 %v2801, 2147483648
    %v2812 = vsel %vm2810, %v2811, %v2802
    %v2813 = vsel %vm2806, %v2809, %v2812
    %v2814 = vsel %vm2803, nan, %v2813
    %v2815 = vand.u32 2147483647, %v628
    %vm2816 = vcmp.le.f32.partialorder %v2815, 0.7853982
    %vm2817 = vcmp.lt.s32.totalorder %v628, 0
    %v2818 = vand.u32 %v628, 2139095040
    %v2819 = vshrl.u32 %v2818, 23
    %v2820 = vsub.s32 %v2819, 127
    %v2821 = vand.u32 2147483647, %v628
    %v2822 = vand.u32 %v2821, 8388607
    %v2823 = vor.u32 %v2822, 8388608
    %v2824 = vsub.s32 0, %v2823
    %v2825 = vadd.s32 %v2820, 1
    %vm2826 = vcmp.gt.s32.totalorder %v2825, 0
    %v2827 = vsel %vm2826, %v2825, 0
    %v2828 = vshrl.u32 %v2827, 5
    %v2829 = vand.u32 %v2827, 31
    %v2830 = vsub.s32 32, %v2829
    %v2831 = vshrl.u32 683565275, %v2830
    %v2832 = vshll.u32 683565275, %v2829
    %v2833 = vshrl.u32 2475754826, %v2830
    %v2834 = vor.u32 %v2832, %v2833
    %v2835 = vshll.u32 2475754826, %v2829
    %v2836 = vshrl.u32 2131351028, %v2830
    %v2837 = vor.u32 %v2835, %v2836
    %v2838 = vshll.u32 2131351028, %v2829
    %v2839 = vshrl.u32 2102212464, %v2830
    %v2840 = vor.u32 %v2838, %v2839
    %v2841 = vshll.u32 2102212464, %v2829
    %v2842 = vshrl.u32 920167782, %v2830
    %v2843 = vor.u32 %v2841, %v2842
    %v2844 = vshll.u32 920167782, %v2829
    %v2845 = vshrl.u32 1326507024, %v2830
    %v2846 = vor.u32 %v2844, %v2845
    %vm2847 = vcmp.lt.s32.totalorder %v2828, 1
    %vm2848 = vcmp.lt.s32.totalorder %v2828, 2
    %vm2849 = vcmp.lt.s32.totalorder %v2828, 3
    %vm2850 = vcmp.lt.s32.totalorder %v2828, 4
    %v2851 = vsel %vm2847, %v2831, %v2834
    %v2852 = vsel %vm2850, %v2840, 2102212464
    %v2853 = vsel %vm2849, %v2837, %v2852
    %v2854 = vsel %vm2848, %v2851, %v2853
    %v2855 = vsel %vm2847, %v2834, %v2837
    %v2856 = vsel %vm2850, %v2843, 920167782
    %v2857 = vsel %vm2849, %v2840, %v2856
    %v2858 = vsel %vm2848, %v2855, %v2857
    %v2859 = vsel %vm2847, %v2837, %v2840
    %v2860 = vsel %vm2850, %v2846, 1326507024
    %v2861 = vsel %vm2849, %v2843, %v2860
    %v2862 = vsel %vm2848, %v2859, %v2861
    %v2863 = vshll.u32 %v2823, 8
    %v2864 = vmul.u32.u64.compose %v2863, %v2862
    %v2865 = vextract.low.u32 %v2864
    %v2866 = vextract.high.u32 %v2864
    %v2867 = vmul.u32.u64.compose %v2863, %v2858
    %v2868 = vextract.low.u32 %v2867
    %v2869 = vextract.high.u32 %v2867
    %v2870 = vmul.u32 %v2863, %v2854
    %v2871 = vadd.s32 %v2866, %v2868
    %vm2872 = vc.u32 %v2866, %v2868
    %v2873 = vadd.s32 %v2869, 1
    %v2874 = vsel %vm2872, %v2873, %v2869
    %v2875 = vadd.s32 %v2870, %v2874
    %v2876 = vadd.s32 %v2875, 536870912
    %v2877 = vshrl.u32 %v2876, 30
    %v2878 = vshll.u32 %v2877, 30
    %v2879 = vsub.s32 %v2875, %v2878
    %vm2880 = vcmp.lt.s32.totalorder %v2879, 0
    %v2881 = vsub.s32 0, %v2879
    %v2882 = vsel %vm2880, %v2881, %v2879
    %v2883 = vclz %v2882
    %v2884 = vsub.s32 %v2883, 2
    %vm2885 = vcmp.gt.s32.totalorder 0, %v2884
    %v2886 = vsel %vm2885, 0, %v2884
    %v2887 = vsub.s32 32, %v2886
    %v2888 = vshll.u32 %v2879, %v2886
    %v2889 = vshrl.u32 %v2871, %v2887
    %v2890 = vor.u32 %v2888, %v2889
    %v2891 = vsub.s32 4294967266, %v2886
    %v2892 = vadd.s32 %v2891, 127
    %v2893 = vshll.u32 %v2892, 23
    %v2894 = vor.u32 4788187, %v2893
    %v2895 = vand.u32 2147483647, %v2894
    %v2897 = vcvt.s32.f32 %v2890
    %v2898 = vmul.f32 %v2897, %v2895
    %v2899 = vxor.u32 %v2898, 2147483648
    %v2900 = vsel %vm2817, %v2899, %v2898
    %v2901 = vsub.s32 4, %v2877
    %v2902 = vsel %vm2817, %v2901, %v2877
    %v2903 = vsel %vm2816, %v628, %v2900
    %v2904 = vsel %vm2816, 0, %v2902
    %v2905 = vcosq.f32.pop %v2903
    %v2906 = vsinq.f32.pop %v2903
    %vm2907 = vweird.f32 %v628
    %v2908 = vadd.s32 %v2904, 3
    %v2909 = vand.u32 %v2908, 3
    %vm2910 = vcmp.lt.s32.totalorder %v2909, 2
    %vm2911 = vcmp.eq.s32.totalorder %v2909, 0
    %v2912 = vxor.u32 %v2906, 2147483648
    %v2913 = vsel %vm2911, %v2905, %v2912
    %vm2914 = vcmp.eq.s32.totalorder %v2909, 2
    %v2915 = vxor.u32 %v2905, 2147483648
    %v2916 = vsel %vm2914, %v2915, %v2906
    %v2917 = vsel %vm2910, %v2913, %v2916
    %v2918 = vsel %vm2907, nan, %v2917
    %v2919 = vand.u32 2147483647, %v629
    %vm2920 = vcmp.le.f32.partialorder %v2919, 0.7853982
    %vm2921 = vcmp.lt.s32.totalorder %v629, 0
    %v2922 = vand.u32 %v629, 2139095040
    %v2923 = vshrl.u32 %v2922, 23
    %v2924 = vsub.s32 %v2923, 127
    %v2925 = vand.u32 2147483647, %v629
    %v2926 = vand.u32 %v2925, 8388607
    %v2927 = vor.u32 %v2926, 8388608
    %v2928 = vsub.s32 0, %v2927
    %v2929 = vadd.s32 %v2924, 1
    %vm2930 = vcmp.gt.s32.totalorder %v2929, 0
    %v2931 = vsel %vm2930, %v2929, 0
    %v2932 = vshrl.u32 %v2931, 5
    %v2933 = vand.u32 %v2931, 31
    %v2934 = vsub.s32 32, %v2933
    %v2935 = vshrl.u32 683565275, %v2934
    %v2936 = vshll.u32 683565275, %v2933
    %v2937 = vshrl.u32 2475754826, %v2934
    %v2938 = vor.u32 %v2936, %v2937
    %v2939 = vshll.u32 2475754826, %v2933
    %v2940 = vshrl.u32 2131351028, %v2934
    %v2941 = vor.u32 %v2939, %v2940
    %v2942 = vshll.u32 2131351028, %v2933
    %v2943 = vshrl.u32 2102212464, %v2934
    %v2944 = vor.u32 %v2942, %v2943
    %v2945 = vshll.u32 2102212464, %v2933
    %v2946 = vshrl.u32 920167782, %v2934
    %v2947 = vor.u32 %v2945, %v2946
    %v2948 = vshll.u32 920167782, %v2933
    %v2949 = vshrl.u32 1326507024, %v2934
    %v2950 = vor.u32 %v2948, %v2949
    %vm2951 = vcmp.lt.s32.totalorder %v2932, 1
    %vm2952 = vcmp.lt.s32.totalorder %v2932, 2
    %vm2953 = vcmp.lt.s32.totalorder %v2932, 3
    %vm2954 = vcmp.lt.s32.totalorder %v2932, 4
    %v2955 = vsel %vm2951, %v2935, %v2938
    %v2956 = vsel %vm2954, %v2944, 2102212464
    %v2957 = vsel %vm2953, %v2941, %v2956
    %v2958 = vsel %vm2952, %v2955, %v2957
    %v2959 = vsel %vm2951, %v2938, %v2941
    %v2960 = vsel %vm2954, %v2947, 920167782
    %v2961 = vsel %vm2953, %v2944, %v2960
    %v2962 = vsel %vm2952, %v2959, %v2961
    %v2963 = vsel %vm2951, %v2941, %v2944
    %v2964 = vsel %vm2954, %v2950, 1326507024
    %v2965 = vsel %vm2953, %v2947, %v2964
    %v2966 = vsel %vm2952, %v2963, %v2965
    %v2967 = vshll.u32 %v2927, 8
    %v2968 = vmul.u32.u64.compose %v2967, %v2966
    %v2969 = vextract.low.u32 %v2968
    %v2970 = vextract.high.u32 %v2968
    %v2971 = vmul.u32.u64.compose %v2967, %v2962
    %v2972 = vextract.low.u32 %v2971
    %v2973 = vextract.high.u32 %v2971
    %v2974 = vmul.u32 %v2967, %v2958
    %v2975 = vadd.s32 %v2970, %v2972
    %vm2976 = vc.u32 %v2970, %v2972
    %v2977 = vadd.s32 %v2973, 1
    %v2978 = vsel %vm2976, %v2977, %v2973
    %v2979 = vadd.s32 %v2974, %v2978
    %v2980 = vadd.s32 %v2979, 536870912
    %v2981 = vshrl.u32 %v2980, 30
    %v2982 = vshll.u32 %v2981, 30
    %v2983 = vsub.s32 %v2979, %v2982
    %vm2984 = vcmp.lt.s32.totalorder %v2983, 0
    %v2985 = vsub.s32 0, %v2983
    %v2986 = vsel %vm2984, %v2985, %v2983
    %v2987 = vclz %v2986
    %v2988 = vsub.s32 %v2987, 2
    %vm2989 = vcmp.gt.s32.totalorder 0, %v2988
    %v2990 = vsel %vm2989, 0, %v2988
    %v2991 = vsub.s32 32, %v2990
    %v2992 = vshll.u32 %v2983, %v2990
    %v2993 = vshrl.u32 %v2975, %v2991
    %v2994 = vor.u32 %v2992, %v2993
    %v2995 = vsub.s32 4294967266, %v2990
    %v2996 = vadd.s32 %v2995, 127
    %v2997 = vshll.u32 %v2996, 23
    %v2998 = vor.u32 4788187, %v2997
    %v2999 = vand.u32 2147483647, %v2998
    %v3001 = vcvt.s32.f32 %v2994
    %v3002 = vmul.f32 %v3001, %v2999
    %v3003 = vxor.u32 %v3002, 2147483648
    %v3004 = vsel %vm2921, %v3003, %v3002
    %v3005 = vsub.s32 4, %v2981
    %v3006 = vsel %vm2921, %v3005, %v2981
    %v3007 = vsel %vm2920, %v629, %v3004
    %v3008 = vsel %vm2920, 0, %v3006
    %v3009 = vcosq.f32.pop %v3007
    %v3010 = vsinq.f32.pop %v3007
    %vm3011 = vweird.f32 %v629
    %v3012 = vadd.s32 %v3008, 3
    %v3013 = vand.u32 %v3012, 3
    %vm3014 = vcmp.lt.s32.totalorder %v3013, 2
    %vm3015 = vcmp.eq.s32.totalorder %v3013, 0
    %v3016 = vxor.u32 %v3010, 2147483648
    %v3017 = vsel %vm3015, %v3009, %v3016
    %vm3018 = vcmp.eq.s32.totalorder %v3013, 2
    %v3019 = vxor.u32 %v3009, 2147483648
    %v3020 = vsel %vm3018, %v3019, %v3010
    %v3021 = vsel %vm3014, %v3017, %v3020
    %v3022 = vsel %vm3011, nan, %v3021
    %v3023 = vand.u32 2147483647, %v630
    %vm3024 = vcmp.le.f32.partialorder %v3023, 0.7853982
    %vm3025 = vcmp.lt.s32.totalorder %v630, 0
    %v3026 = vand.u32 %v630, 2139095040
    %v3027 = vshrl.u32 %v3026, 23
    %v3028 = vsub.s32 %v3027, 127
    %v3029 = vand.u32 2147483647, %v630
    %v3030 = vand.u32 %v3029, 8388607
    %v3031 = vor.u32 %v3030, 8388608
    %v3032 = vsub.s32 0, %v3031
    %v3033 = vadd.s32 %v3028, 1
    %vm3034 = vcmp.gt.s32.totalorder %v3033, 0
    %v3035 = vsel %vm3034, %v3033, 0
    %v3036 = vshrl.u32 %v3035, 5
    %v3037 = vand.u32 %v3035, 31
    %v3038 = vsub.s32 32, %v3037
    %v3039 = vshrl.u32 683565275, %v3038
    %v3040 = vshll.u32 683565275, %v3037
    %v3041 = vshrl.u32 2475754826, %v3038
    %v3042 = vor.u32 %v3040, %v3041
    %v3043 = vshll.u32 2475754826, %v3037
    %v3044 = vshrl.u32 2131351028, %v3038
    %v3045 = vor.u32 %v3043, %v3044
    %v3046 = vshll.u32 2131351028, %v3037
    %v3047 = vshrl.u32 2102212464, %v3038
    %v3048 = vor.u32 %v3046, %v3047
    %v3049 = vshll.u32 2102212464, %v3037
    %v3050 = vshrl.u32 920167782, %v3038
    %v3051 = vor.u32 %v3049, %v3050
    %v3052 = vshll.u32 920167782, %v3037
    %v3053 = vshrl.u32 1326507024, %v3038
    %v3054 = vor.u32 %v3052, %v3053
    %vm3055 = vcmp.lt.s32.totalorder %v3036, 1
    %vm3056 = vcmp.lt.s32.totalorder %v3036, 2
    %vm3057 = vcmp.lt.s32.totalorder %v3036, 3
    %vm3058 = vcmp.lt.s32.totalorder %v3036, 4
    %v3059 = vsel %vm3055, %v3039, %v3042
    %v3060 = vsel %vm3058, %v3048, 2102212464
    %v3061 = vsel %vm3057, %v3045, %v3060
    %v3062 = vsel %vm3056, %v3059, %v3061
    %v3063 = vsel %vm3055, %v3042, %v3045
    %v3064 = vsel %vm3058, %v3051, 920167782
    %v3065 = vsel %vm3057, %v3048, %v3064
    %v3066 = vsel %vm3056, %v3063, %v3065
    %v3067 = vsel %vm3055, %v3045, %v3048
    %v3068 = vsel %vm3058, %v3054, 1326507024
    %v3069 = vsel %vm3057, %v3051, %v3068
    %v3070 = vsel %vm3056, %v3067, %v3069
    %v3071 = vshll.u32 %v3031, 8
    %v3072 = vmul.u32.u64.compose %v3071, %v3070
    %v3073 = vextract.low.u32 %v3072
    %v3074 = vextract.high.u32 %v3072
    %v3075 = vmul.u32.u64.compose %v3071, %v3066
    %v3076 = vextract.low.u32 %v3075
    %v3077 = vextract.high.u32 %v3075
    %v3078 = vmul.u32 %v3071, %v3062
    %v3079 = vadd.s32 %v3074, %v3076
    %vm3080 = vc.u32 %v3074, %v3076
    %v3081 = vadd.s32 %v3077, 1
    %v3082 = vsel %vm3080, %v3081, %v3077
    %v3083 = vadd.s32 %v3078, %v3082
    %v3084 = vadd.s32 %v3083, 536870912
    %v3085 = vshrl.u32 %v3084, 30
    %v3086 = vshll.u32 %v3085, 30
    %v3087 = vsub.s32 %v3083, %v3086
    %vm3088 = vcmp.lt.s32.totalorder %v3087, 0
    %v3089 = vsub.s32 0, %v3087
    %v3090 = vsel %vm3088, %v3089, %v3087
    %v3091 = vclz %v3090
    %v3092 = vsub.s32 %v3091, 2
    %vm3093 = vcmp.gt.s32.totalorder 0, %v3092
    %v3094 = vsel %vm3093, 0, %v3092
    %v3095 = vsub.s32 32, %v3094
    %v3096 = vshll.u32 %v3087, %v3094
    %v3097 = vshrl.u32 %v3079, %v3095
    %v3098 = vor.u32 %v3096, %v3097
    %v3099 = vsub.s32 4294967266, %v3094
    %v3100 = vadd.s32 %v3099, 127
    %v3101 = vshll.u32 %v3100, 23
    %v3102 = vor.u32 4788187, %v3101
    %v3103 = vand.u32 2147483647, %v3102
    %v3105 = vcvt.s32.f32 %v3098
    %v3106 = vmul.f32 %v3105, %v3103
    %v3107 = vxor.u32 %v3106, 2147483648
    %v3108 = vsel %vm3025, %v3107, %v3106
    %v3109 = vsub.s32 4, %v3085
    %v3110 = vsel %vm3025, %v3109, %v3085
    %v3111 = vsel %vm3024, %v630, %v3108
    %v3112 = vsel %vm3024, 0, %v3110
    %v3113 = vcosq.f32.pop %v3111
    %v3114 = vsinq.f32.pop %v3111
    %vm3115 = vweird.f32 %v630
    %v3116 = vadd.s32 %v3112, 3
    %v3117 = vand.u32 %v3116, 3
    %vm3118 = vcmp.lt.s32.totalorder %v3117, 2
    %vm3119 = vcmp.eq.s32.totalorder %v3117, 0
    %v3120 = vxor.u32 %v3114, 2147483648
    %v3121 = vsel %vm3119, %v3113, %v3120
    %vm3122 = vcmp.eq.s32.totalorder %v3117, 2
    %v3123 = vxor.u32 %v3113, 2147483648
    %v3124 = vsel %vm3122, %v3123, %v3114
    %v3125 = vsel %vm3118, %v3121, %v3124
    %v3126 = vsel %vm3115, nan, %v3125
    %v3127 = vand.u32 2147483647, %v631
    %vm3128 = vcmp.le.f32.partialorder %v3127, 0.7853982
    %vm3129 = vcmp.lt.s32.totalorder %v631, 0
    %v3130 = vand.u32 %v631, 2139095040
    %v3131 = vshrl.u32 %v3130, 23
    %v3132 = vsub.s32 %v3131, 127
    %v3133 = vand.u32 2147483647, %v631
    %v3134 = vand.u32 %v3133, 8388607
    %v3135 = vor.u32 %v3134, 8388608
    %v3136 = vsub.s32 0, %v3135
    %v3137 = vadd.s32 %v3132, 1
    %vm3138 = vcmp.gt.s32.totalorder %v3137, 0
    %v3139 = vsel %vm3138, %v3137, 0
    %v3140 = vshrl.u32 %v3139, 5
    %v3141 = vand.u32 %v3139, 31
    %v3142 = vsub.s32 32, %v3141
    %v3143 = vshrl.u32 683565275, %v3142
    %v3144 = vshll.u32 683565275, %v3141
    %v3145 = vshrl.u32 2475754826, %v3142
    %v3146 = vor.u32 %v3144, %v3145
    %v3147 = vshll.u32 2475754826, %v3141
    %v3148 = vshrl.u32 2131351028, %v3142
    %v3149 = vor.u32 %v3147, %v3148
    %v3150 = vshll.u32 2131351028, %v3141
    %v3151 = vshrl.u32 2102212464, %v3142
    %v3152 = vor.u32 %v3150, %v3151
    %v3153 = vshll.u32 2102212464, %v3141
    %v3154 = vshrl.u32 920167782, %v3142
    %v3155 = vor.u32 %v3153, %v3154
    %v3156 = vshll.u32 920167782, %v3141
    %v3157 = vshrl.u32 1326507024, %v3142
    %v3158 = vor.u32 %v3156, %v3157
    %vm3159 = vcmp.lt.s32.totalorder %v3140, 1
    %vm3160 = vcmp.lt.s32.totalorder %v3140, 2
    %vm3161 = vcmp.lt.s32.totalorder %v3140, 3
    %vm3162 = vcmp.lt.s32.totalorder %v3140, 4
    %v3163 = vsel %vm3159, %v3143, %v3146
    %v3164 = vsel %vm3162, %v3152, 2102212464
    %v3165 = vsel %vm3161, %v3149, %v3164
    %v3166 = vsel %vm3160, %v3163, %v3165
    %v3167 = vsel %vm3159, %v3146, %v3149
    %v3168 = vsel %vm3162, %v3155, 920167782
    %v3169 = vsel %vm3161, %v3152, %v3168
    %v3170 = vsel %vm3160, %v3167, %v3169
    %v3171 = vsel %vm3159, %v3149, %v3152
    %v3172 = vsel %vm3162, %v3158, 1326507024
    %v3173 = vsel %vm3161, %v3155, %v3172
    %v3174 = vsel %vm3160, %v3171, %v3173
    %v3175 = vshll.u32 %v3135, 8
    %v3176 = vmul.u32.u64.compose %v3175, %v3174
    %v3177 = vextract.low.u32 %v3176
    %v3178 = vextract.high.u32 %v3176
    %v3179 = vmul.u32.u64.compose %v3175, %v3170
    %v3180 = vextract.low.u32 %v3179
    %v3181 = vextract.high.u32 %v3179
    %v3182 = vmul.u32 %v3175, %v3166
    %v3183 = vadd.s32 %v3178, %v3180
    %vm3184 = vc.u32 %v3178, %v3180
    %v3185 = vadd.s32 %v3181, 1
    %v3186 = vsel %vm3184, %v3185, %v3181
    %v3187 = vadd.s32 %v3182, %v3186
    %v3188 = vadd.s32 %v3187, 536870912
    %v3189 = vshrl.u32 %v3188, 30
    %v3190 = vshll.u32 %v3189, 30
    %v3191 = vsub.s32 %v3187, %v3190
    %vm3192 = vcmp.lt.s32.totalorder %v3191, 0
    %v3193 = vsub.s32 0, %v3191
    %v3194 = vsel %vm3192, %v3193, %v3191
    %v3195 = vclz %v3194
    %v3196 = vsub.s32 %v3195, 2
    %vm3197 = vcmp.gt.s32.totalorder 0, %v3196
    %v3198 = vsel %vm3197, 0, %v3196
    %v3199 = vsub.s32 32, %v3198
    %v3200 = vshll.u32 %v3191, %v3198
    %v3201 = vshrl.u32 %v3183, %v3199
    %v3202 = vor.u32 %v3200, %v3201
    %v3203 = vsub.s32 4294967266, %v3198
    %v3204 = vadd.s32 %v3203, 127
    %v3205 = vshll.u32 %v3204, 23
    %v3206 = vor.u32 4788187, %v3205
    %v3207 = vand.u32 2147483647, %v3206
    %v3209 = vcvt.s32.f32 %v3202
    %v3210 = vmul.f32 %v3209, %v3207
    %v3211 = vxor.u32 %v3210, 2147483648
    %v3212 = vsel %vm3129, %v3211, %v3210
    %v3213 = vsub.s32 4, %v3189
    %v3214 = vsel %vm3129, %v3213, %v3189
    %v3215 = vsel %vm3128, %v631, %v3212
    %v3216 = vsel %vm3128, 0, %v3214
    %v3217 = vcosq.f32.pop %v3215
    %v3218 = vsinq.f32.pop %v3215
    %vm3219 = vweird.f32 %v631
    %v3220 = vadd.s32 %v3216, 3
    %v3221 = vand.u32 %v3220, 3
    %vm3222 = vcmp.lt.s32.totalorder %v3221, 2
    %vm3223 = vcmp.eq.s32.totalorder %v3221, 0
    %v3224 = vxor.u32 %v3218, 2147483648
    %v3225 = vsel %vm3223, %v3217, %v3224
    %vm3226 = vcmp.eq.s32.totalorder %v3221, 2
    %v3227 = vxor.u32 %v3217, 2147483648
    %v3228 = vsel %vm3226, %v3227, %v3218
    %v3229 = vsel %vm3222, %v3225, %v3228
    %v3230 = vsel %vm3219, nan, %v3229
    %v3231 = vand.u32 2147483647, %v632
    %vm3232 = vcmp.le.f32.partialorder %v3231, 0.7853982
    %vm3233 = vcmp.lt.s32.totalorder %v632, 0
    %v3234 = vand.u32 %v632, 2139095040
    %v3235 = vshrl.u32 %v3234, 23
    %v3236 = vsub.s32 %v3235, 127
    %v3237 = vand.u32 2147483647, %v632
    %v3238 = vand.u32 %v3237, 8388607
    %v3239 = vor.u32 %v3238, 8388608
    %v3240 = vsub.s32 0, %v3239
    %v3241 = vadd.s32 %v3236, 1
    %vm3242 = vcmp.gt.s32.totalorder %v3241, 0
    %v3243 = vsel %vm3242, %v3241, 0
    %v3244 = vshrl.u32 %v3243, 5
    %v3245 = vand.u32 %v3243, 31
    %v3246 = vsub.s32 32, %v3245
    %v3247 = vshrl.u32 683565275, %v3246
    %v3248 = vshll.u32 683565275, %v3245
    %v3249 = vshrl.u32 2475754826, %v3246
    %v3250 = vor.u32 %v3248, %v3249
    %v3251 = vshll.u32 2475754826, %v3245
    %v3252 = vshrl.u32 2131351028, %v3246
    %v3253 = vor.u32 %v3251, %v3252
    %v3254 = vshll.u32 2131351028, %v3245
    %v3255 = vshrl.u32 2102212464, %v3246
    %v3256 = vor.u32 %v3254, %v3255
    %v3257 = vshll.u32 2102212464, %v3245
    %v3258 = vshrl.u32 920167782, %v3246
    %v3259 = vor.u32 %v3257, %v3258
    %v3260 = vshll.u32 920167782, %v3245
    %v3261 = vshrl.u32 1326507024, %v3246
    %v3262 = vor.u32 %v3260, %v3261
    %vm3263 = vcmp.lt.s32.totalorder %v3244, 1
    %vm3264 = vcmp.lt.s32.totalorder %v3244, 2
    %vm3265 = vcmp.lt.s32.totalorder %v3244, 3
    %vm3266 = vcmp.lt.s32.totalorder %v3244, 4
    %v3267 = vsel %vm3263, %v3247, %v3250
    %v3268 = vsel %vm3266, %v3256, 2102212464
    %v3269 = vsel %vm3265, %v3253, %v3268
    %v3270 = vsel %vm3264, %v3267, %v3269
    %v3271 = vsel %vm3263, %v3250, %v3253
    %v3272 = vsel %vm3266, %v3259, 920167782
    %v3273 = vsel %vm3265, %v3256, %v3272
    %v3274 = vsel %vm3264, %v3271, %v3273
    %v3275 = vsel %vm3263, %v3253, %v3256
    %v3276 = vsel %vm3266, %v3262, 1326507024
    %v3277 = vsel %vm3265, %v3259, %v3276
    %v3278 = vsel %vm3264, %v3275, %v3277
    %v3279 = vshll.u32 %v3239, 8
    %v3280 = vmul.u32.u64.compose %v3279, %v3278
    %v3281 = vextract.low.u32 %v3280
    %v3282 = vextract.high.u32 %v3280
    %v3283 = vmul.u32.u64.compose %v3279, %v3274
    %v3284 = vextract.low.u32 %v3283
    %v3285 = vextract.high.u32 %v3283
    %v3286 = vmul.u32 %v3279, %v3270
    %v3287 = vadd.s32 %v3282, %v3284
    %vm3288 = vc.u32 %v3282, %v3284
    %v3289 = vadd.s32 %v3285, 1
    %v3290 = vsel %vm3288, %v3289, %v3285
    %v3291 = vadd.s32 %v3286, %v3290
    %v3292 = vadd.s32 %v3291, 536870912
    %v3293 = vshrl.u32 %v3292, 30
    %v3294 = vshll.u32 %v3293, 30
    %v3295 = vsub.s32 %v3291, %v3294
    %vm3296 = vcmp.lt.s32.totalorder %v3295, 0
    %v3297 = vsub.s32 0, %v3295
    %v3298 = vsel %vm3296, %v3297, %v3295
    %v3299 = vclz %v3298
    %v3300 = vsub.s32 %v3299, 2
    %vm3301 = vcmp.gt.s32.totalorder 0, %v3300
    %v3302 = vsel %vm3301, 0, %v3300
    %v3303 = vsub.s32 32, %v3302
    %v3304 = vshll.u32 %v3295, %v3302
    %v3305 = vshrl.u32 %v3287, %v3303
    %v3306 = vor.u32 %v3304, %v3305
    %v3307 = vsub.s32 4294967266, %v3302
    %v3308 = vadd.s32 %v3307, 127
    %v3309 = vshll.u32 %v3308, 23
    %v3310 = vor.u32 4788187, %v3309
    %v3311 = vand.u32 2147483647, %v3310
    %v3313 = vcvt.s32.f32 %v3306
    %v3314 = vmul.f32 %v3313, %v3311
    %v3315 = vxor.u32 %v3314, 2147483648
    %v3316 = vsel %vm3233, %v3315, %v3314
    %v3317 = vsub.s32 4, %v3293
    %v3318 = vsel %vm3233, %v3317, %v3293
    %v3319 = vsel %vm3232, %v632, %v3316
    %v3320 = vsel %vm3232, 0, %v3318
    %v3321 = vcosq.f32.pop %v3319
    %v3322 = vsinq.f32.pop %v3319
    %vm3323 = vweird.f32 %v632
    %v3324 = vadd.s32 %v3320, 3
    %v3325 = vand.u32 %v3324, 3
    %vm3326 = vcmp.lt.s32.totalorder %v3325, 2
    %vm3327 = vcmp.eq.s32.totalorder %v3325, 0
    %v3328 = vxor.u32 %v3322, 2147483648
    %v3329 = vsel %vm3327, %v3321, %v3328
    %vm3330 = vcmp.eq.s32.totalorder %v3325, 2
    %v3331 = vxor.u32 %v3321, 2147483648
    %v3332 = vsel %vm3330, %v3331, %v3322
    %v3333 = vsel %vm3326, %v3329, %v3332
    %v3334 = vsel %vm3323, nan, %v3333
    %v3335 = vand.u32 2147483647, %v633
    %vm3336 = vcmp.le.f32.partialorder %v3335, 0.7853982
    %vm3337 = vcmp.lt.s32.totalorder %v633, 0
    %v3338 = vand.u32 %v633, 2139095040
    %v3339 = vshrl.u32 %v3338, 23
    %v3340 = vsub.s32 %v3339, 127
    %v3341 = vand.u32 2147483647, %v633
    %v3342 = vand.u32 %v3341, 8388607
    %v3343 = vor.u32 %v3342, 8388608
    %v3344 = vsub.s32 0, %v3343
    %v3345 = vadd.s32 %v3340, 1
    %vm3346 = vcmp.gt.s32.totalorder %v3345, 0
    %v3347 = vsel %vm3346, %v3345, 0
    %v3348 = vshrl.u32 %v3347, 5
    %v3349 = vand.u32 %v3347, 31
    %v3350 = vsub.s32 32, %v3349
    %v3351 = vshrl.u32 683565275, %v3350
    %v3352 = vshll.u32 683565275, %v3349
    %v3353 = vshrl.u32 2475754826, %v3350
    %v3354 = vor.u32 %v3352, %v3353
    %v3355 = vshll.u32 2475754826, %v3349
    %v3356 = vshrl.u32 2131351028, %v3350
    %v3357 = vor.u32 %v3355, %v3356
    %v3358 = vshll.u32 2131351028, %v3349
    %v3359 = vshrl.u32 2102212464, %v3350
    %v3360 = vor.u32 %v3358, %v3359
    %v3361 = vshll.u32 2102212464, %v3349
    %v3362 = vshrl.u32 920167782, %v3350
    %v3363 = vor.u32 %v3361, %v3362
    %v3364 = vshll.u32 920167782, %v3349
    %v3365 = vshrl.u32 1326507024, %v3350
    %v3366 = vor.u32 %v3364, %v3365
    %vm3367 = vcmp.lt.s32.totalorder %v3348, 1
    %vm3368 = vcmp.lt.s32.totalorder %v3348, 2
    %vm3369 = vcmp.lt.s32.totalorder %v3348, 3
    %vm3370 = vcmp.lt.s32.totalorder %v3348, 4
    %v3371 = vsel %vm3367, %v3351, %v3354
    %v3372 = vsel %vm3370, %v3360, 2102212464
    %v3373 = vsel %vm3369, %v3357, %v3372
    %v3374 = vsel %vm3368, %v3371, %v3373
    %v3375 = vsel %vm3367, %v3354, %v3357
    %v3376 = vsel %vm3370, %v3363, 920167782
    %v3377 = vsel %vm3369, %v3360, %v3376
    %v3378 = vsel %vm3368, %v3375, %v3377
    %v3379 = vsel %vm3367, %v3357, %v3360
    %v3380 = vsel %vm3370, %v3366, 1326507024
    %v3381 = vsel %vm3369, %v3363, %v3380
    %v3382 = vsel %vm3368, %v3379, %v3381
    %v3383 = vshll.u32 %v3343, 8
    %v3384 = vmul.u32.u64.compose %v3383, %v3382
    %v3385 = vextract.low.u32 %v3384
    %v3386 = vextract.high.u32 %v3384
    %v3387 = vmul.u32.u64.compose %v3383, %v3378
    %v3388 = vextract.low.u32 %v3387
    %v3389 = vextract.high.u32 %v3387
    %v3390 = vmul.u32 %v3383, %v3374
    %v3391 = vadd.s32 %v3386, %v3388
    %vm3392 = vc.u32 %v3386, %v3388
    %v3393 = vadd.s32 %v3389, 1
    %v3394 = vsel %vm3392, %v3393, %v3389
    %v3395 = vadd.s32 %v3390, %v3394
    %v3396 = vadd.s32 %v3395, 536870912
    %v3397 = vshrl.u32 %v3396, 30
    %v3398 = vshll.u32 %v3397, 30
    %v3399 = vsub.s32 %v3395, %v3398
    %vm3400 = vcmp.lt.s32.totalorder %v3399, 0
    %v3401 = vsub.s32 0, %v3399
    %v3402 = vsel %vm3400, %v3401, %v3399
    %v3403 = vclz %v3402
    %v3404 = vsub.s32 %v3403, 2
    %vm3405 = vcmp.gt.s32.totalorder 0, %v3404
    %v3406 = vsel %vm3405, 0, %v3404
    %v3407 = vsub.s32 32, %v3406
    %v3408 = vshll.u32 %v3399, %v3406
    %v3409 = vshrl.u32 %v3391, %v3407
    %v3410 = vor.u32 %v3408, %v3409
    %v3411 = vsub.s32 4294967266, %v3406
    %v3412 = vadd.s32 %v3411, 127
    %v3413 = vshll.u32 %v3412, 23
    %v3414 = vor.u32 4788187, %v3413
    %v3415 = vand.u32 2147483647, %v3414
    %v3417 = vcvt.s32.f32 %v3410
    %v3418 = vmul.f32 %v3417, %v3415
    %v3419 = vxor.u32 %v3418, 2147483648
    %v3420 = vsel %vm3337, %v3419, %v3418
    %v3421 = vsub.s32 4, %v3397
    %v3422 = vsel %vm3337, %v3421, %v3397
    %v3423 = vsel %vm3336, %v633, %v3420
    %v3424 = vsel %vm3336, 0, %v3422
    %v3425 = vcosq.f32.pop %v3423
    %v3426 = vsinq.f32.pop %v3423
    %vm3427 = vweird.f32 %v633
    %v3428 = vadd.s32 %v3424, 3
    %v3429 = vand.u32 %v3428, 3
    %vm3430 = vcmp.lt.s32.totalorder %v3429, 2
    %vm3431 = vcmp.eq.s32.totalorder %v3429, 0
    %v3432 = vxor.u32 %v3426, 2147483648
    %v3433 = vsel %vm3431, %v3425, %v3432
    %vm3434 = vcmp.eq.s32.totalorder %v3429, 2
    %v3435 = vxor.u32 %v3425, 2147483648
    %v3436 = vsel %vm3434, %v3435, %v3426
    %v3437 = vsel %vm3430, %v3433, %v3436
    %v3438 = vsel %vm3427, nan, %v3437
    %v3439 = vand.u32 2147483647, %v634
    %vm3440 = vcmp.le.f32.partialorder %v3439, 0.7853982
    %vm3441 = vcmp.lt.s32.totalorder %v634, 0
    %v3442 = vand.u32 %v634, 2139095040
    %v3443 = vshrl.u32 %v3442, 23
    %v3444 = vsub.s32 %v3443, 127
    %v3445 = vand.u32 2147483647, %v634
    %v3446 = vand.u32 %v3445, 8388607
    %v3447 = vor.u32 %v3446, 8388608
    %v3448 = vsub.s32 0, %v3447
    %v3449 = vadd.s32 %v3444, 1
    %vm3450 = vcmp.gt.s32.totalorder %v3449, 0
    %v3451 = vsel %vm3450, %v3449, 0
    %v3452 = vshrl.u32 %v3451, 5
    %v3453 = vand.u32 %v3451, 31
    %v3454 = vsub.s32 32, %v3453
    %v3455 = vshrl.u32 683565275, %v3454
    %v3456 = vshll.u32 683565275, %v3453
    %v3457 = vshrl.u32 2475754826, %v3454
    %v3458 = vor.u32 %v3456, %v3457
    %v3459 = vshll.u32 2475754826, %v3453
    %v3460 = vshrl.u32 2131351028, %v3454
    %v3461 = vor.u32 %v3459, %v3460
    %v3462 = vshll.u32 2131351028, %v3453
    %v3463 = vshrl.u32 2102212464, %v3454
    %v3464 = vor.u32 %v3462, %v3463
    %v3465 = vshll.u32 2102212464, %v3453
    %v3466 = vshrl.u32 920167782, %v3454
    %v3467 = vor.u32 %v3465, %v3466
    %v3468 = vshll.u32 920167782, %v3453
    %v3469 = vshrl.u32 1326507024, %v3454
    %v3470 = vor.u32 %v3468, %v3469
    %vm3471 = vcmp.lt.s32.totalorder %v3452, 1
    %vm3472 = vcmp.lt.s32.totalorder %v3452, 2
    %vm3473 = vcmp.lt.s32.totalorder %v3452, 3
    %vm3474 = vcmp.lt.s32.totalorder %v3452, 4
    %v3475 = vsel %vm3471, %v3455, %v3458
    %v3476 = vsel %vm3474, %v3464, 2102212464
    %v3477 = vsel %vm3473, %v3461, %v3476
    %v3478 = vsel %vm3472, %v3475, %v3477
    %v3479 = vsel %vm3471, %v3458, %v3461
    %v3480 = vsel %vm3474, %v3467, 920167782
    %v3481 = vsel %vm3473, %v3464, %v3480
    %v3482 = vsel %vm3472, %v3479, %v3481
    %v3483 = vsel %vm3471, %v3461, %v3464
    %v3484 = vsel %vm3474, %v3470, 1326507024
    %v3485 = vsel %vm3473, %v3467, %v3484
    %v3486 = vsel %vm3472, %v3483, %v3485
    %v3487 = vshll.u32 %v3447, 8
    %v3488 = vmul.u32.u64.compose %v3487, %v3486
    %v3489 = vextract.low.u32 %v3488
    %v3490 = vextract.high.u32 %v3488
    %v3491 = vmul.u32.u64.compose %v3487, %v3482
    %v3492 = vextract.low.u32 %v3491
    %v3493 = vextract.high.u32 %v3491
    %v3494 = vmul.u32 %v3487, %v3478
    %v3495 = vadd.s32 %v3490, %v3492
    %vm3496 = vc.u32 %v3490, %v3492
    %v3497 = vadd.s32 %v3493, 1
    %v3498 = vsel %vm3496, %v3497, %v3493
    %v3499 = vadd.s32 %v3494, %v3498
    %v3500 = vadd.s32 %v3499, 536870912
    %v3501 = vshrl.u32 %v3500, 30
    %v3502 = vshll.u32 %v3501, 30
    %v3503 = vsub.s32 %v3499, %v3502
    %vm3504 = vcmp.lt.s32.totalorder %v3503, 0
    %v3505 = vsub.s32 0, %v3503
    %v3506 = vsel %vm3504, %v3505, %v3503
    %v3507 = vclz %v3506
    %v3508 = vsub.s32 %v3507, 2
    %vm3509 = vcmp.gt.s32.totalorder 0, %v3508
    %v3510 = vsel %vm3509, 0, %v3508
    %v3511 = vsub.s32 32, %v3510
    %v3512 = vshll.u32 %v3503, %v3510
    %v3513 = vshrl.u32 %v3495, %v3511
    %v3514 = vor.u32 %v3512, %v3513
    %v3515 = vsub.s32 4294967266, %v3510
    %v3516 = vadd.s32 %v3515, 127
    %v3517 = vshll.u32 %v3516, 23
    %v3518 = vor.u32 4788187, %v3517
    %v3519 = vand.u32 2147483647, %v3518
    %v3521 = vcvt.s32.f32 %v3514
    %v3522 = vmul.f32 %v3521, %v3519
    %v3523 = vxor.u32 %v3522, 2147483648
    %v3524 = vsel %vm3441, %v3523, %v3522
    %v3525 = vsub.s32 4, %v3501
    %v3526 = vsel %vm3441, %v3525, %v3501
    %v3527 = vsel %vm3440, %v634, %v3524
    %v3528 = vsel %vm3440, 0, %v3526
    %v3529 = vcosq.f32.pop %v3527
    %v3530 = vsinq.f32.pop %v3527
    %vm3531 = vweird.f32 %v634
    %v3532 = vadd.s32 %v3528, 3
    %v3533 = vand.u32 %v3532, 3
    %vm3534 = vcmp.lt.s32.totalorder %v3533, 2
    %vm3535 = vcmp.eq.s32.totalorder %v3533, 0
    %v3536 = vxor.u32 %v3530, 2147483648
    %v3537 = vsel %vm3535, %v3529, %v3536
    %vm3538 = vcmp.eq.s32.totalorder %v3533, 2
    %v3539 = vxor.u32 %v3529, 2147483648
    %v3540 = vsel %vm3538, %v3539, %v3530
    %v3541 = vsel %vm3534, %v3537, %v3540
    %v3542 = vsel %vm3531, nan, %v3541
    %v3543 = vand.u32 2147483647, %v635
    %vm3544 = vcmp.le.f32.partialorder %v3543, 0.7853982
    %vm3545 = vcmp.lt.s32.totalorder %v635, 0
    %v3546 = vand.u32 %v635, 2139095040
    %v3547 = vshrl.u32 %v3546, 23
    %v3548 = vsub.s32 %v3547, 127
    %v3549 = vand.u32 2147483647, %v635
    %v3550 = vand.u32 %v3549, 8388607
    %v3551 = vor.u32 %v3550, 8388608
    %v3552 = vsub.s32 0, %v3551
    %v3553 = vadd.s32 %v3548, 1
    %vm3554 = vcmp.gt.s32.totalorder %v3553, 0
    %v3555 = vsel %vm3554, %v3553, 0
    %v3556 = vshrl.u32 %v3555, 5
    %v3557 = vand.u32 %v3555, 31
    %v3558 = vsub.s32 32, %v3557
    %v3559 = vshrl.u32 683565275, %v3558
    %v3560 = vshll.u32 683565275, %v3557
    %v3561 = vshrl.u32 2475754826, %v3558
    %v3562 = vor.u32 %v3560, %v3561
    %v3563 = vshll.u32 2475754826, %v3557
    %v3564 = vshrl.u32 2131351028, %v3558
    %v3565 = vor.u32 %v3563, %v3564
    %v3566 = vshll.u32 2131351028, %v3557
    %v3567 = vshrl.u32 2102212464, %v3558
    %v3568 = vor.u32 %v3566, %v3567
    %v3569 = vshll.u32 2102212464, %v3557
    %v3570 = vshrl.u32 920167782, %v3558
    %v3571 = vor.u32 %v3569, %v3570
    %v3572 = vshll.u32 920167782, %v3557
    %v3573 = vshrl.u32 1326507024, %v3558
    %v3574 = vor.u32 %v3572, %v3573
    %vm3575 = vcmp.lt.s32.totalorder %v3556, 1
    %vm3576 = vcmp.lt.s32.totalorder %v3556, 2
    %vm3577 = vcmp.lt.s32.totalorder %v3556, 3
    %vm3578 = vcmp.lt.s32.totalorder %v3556, 4
    %v3579 = vsel %vm3575, %v3559, %v3562
    %v3580 = vsel %vm3578, %v3568, 2102212464
    %v3581 = vsel %vm3577, %v3565, %v3580
    %v3582 = vsel %vm3576, %v3579, %v3581
    %v3583 = vsel %vm3575, %v3562, %v3565
    %v3584 = vsel %vm3578, %v3571, 920167782
    %v3585 = vsel %vm3577, %v3568, %v3584
    %v3586 = vsel %vm3576, %v3583, %v3585
    %v3587 = vsel %vm3575, %v3565, %v3568
    %v3588 = vsel %vm3578, %v3574, 1326507024
    %v3589 = vsel %vm3577, %v3571, %v3588
    %v3590 = vsel %vm3576, %v3587, %v3589
    %v3591 = vshll.u32 %v3551, 8
    %v3592 = vmul.u32.u64.compose %v3591, %v3590
    %v3593 = vextract.low.u32 %v3592
    %v3594 = vextract.high.u32 %v3592
    %v3595 = vmul.u32.u64.compose %v3591, %v3586
    %v3596 = vextract.low.u32 %v3595
    %v3597 = vextract.high.u32 %v3595
    %v3598 = vmul.u32 %v3591, %v3582
    %v3599 = vadd.s32 %v3594, %v3596
    %vm3600 = vc.u32 %v3594, %v3596
    %v3601 = vadd.s32 %v3597, 1
    %v3602 = vsel %vm3600, %v3601, %v3597
    %v3603 = vadd.s32 %v3598, %v3602
    %v3604 = vadd.s32 %v3603, 536870912
    %v3605 = vshrl.u32 %v3604, 30
    %v3606 = vshll.u32 %v3605, 30
    %v3607 = vsub.s32 %v3603, %v3606
    %vm3608 = vcmp.lt.s32.totalorder %v3607, 0
    %v3609 = vsub.s32 0, %v3607
    %v3610 = vsel %vm3608, %v3609, %v3607
    %v3611 = vclz %v3610
    %v3612 = vsub.s32 %v3611, 2
    %vm3613 = vcmp.gt.s32.totalorder 0, %v3612
    %v3614 = vsel %vm3613, 0, %v3612
    %v3615 = vsub.s32 32, %v3614
    %v3616 = vshll.u32 %v3607, %v3614
    %v3617 = vshrl.u32 %v3599, %v3615
    %v3618 = vor.u32 %v3616, %v3617
    %v3619 = vsub.s32 4294967266, %v3614
    %v3620 = vadd.s32 %v3619, 127
    %v3621 = vshll.u32 %v3620, 23
    %v3622 = vor.u32 4788187, %v3621
    %v3623 = vand.u32 2147483647, %v3622
    %v3625 = vcvt.s32.f32 %v3618
    %v3626 = vmul.f32 %v3625, %v3623
    %v3627 = vxor.u32 %v3626, 2147483648
    %v3628 = vsel %vm3545, %v3627, %v3626
    %v3629 = vsub.s32 4, %v3605
    %v3630 = vsel %vm3545, %v3629, %v3605
    %v3631 = vsel %vm3544, %v635, %v3628
    %v3632 = vsel %vm3544, 0, %v3630
    %v3633 = vcosq.f32.pop %v3631
    %v3634 = vsinq.f32.pop %v3631
    %vm3635 = vweird.f32 %v635
    %v3636 = vadd.s32 %v3632, 3
    %v3637 = vand.u32 %v3636, 3
    %vm3638 = vcmp.lt.s32.totalorder %v3637, 2
    %vm3639 = vcmp.eq.s32.totalorder %v3637, 0
    %v3640 = vxor.u32 %v3634, 2147483648
    %v3641 = vsel %vm3639, %v3633, %v3640
    %vm3642 = vcmp.eq.s32.totalorder %v3637, 2
    %v3643 = vxor.u32 %v3633, 2147483648
    %v3644 = vsel %vm3642, %v3643, %v3634
    %v3645 = vsel %vm3638, %v3641, %v3644
    %v3646 = vsel %vm3635, nan, %v3645
    %v3647 = vand.u32 2147483647, %v636
    %vm3648 = vcmp.le.f32.partialorder %v3647, 0.7853982
    %vm3649 = vcmp.lt.s32.totalorder %v636, 0
    %v3650 = vand.u32 %v636, 2139095040
    %v3651 = vshrl.u32 %v3650, 23
    %v3652 = vsub.s32 %v3651, 127
    %v3653 = vand.u32 2147483647, %v636
    %v3654 = vand.u32 %v3653, 8388607
    %v3655 = vor.u32 %v3654, 8388608
    %v3656 = vsub.s32 0, %v3655
    %v3657 = vadd.s32 %v3652, 1
    %vm3658 = vcmp.gt.s32.totalorder %v3657, 0
    %v3659 = vsel %vm3658, %v3657, 0
    %v3660 = vshrl.u32 %v3659, 5
    %v3661 = vand.u32 %v3659, 31
    %v3662 = vsub.s32 32, %v3661
    %v3663 = vshrl.u32 683565275, %v3662
    %v3664 = vshll.u32 683565275, %v3661
    %v3665 = vshrl.u32 2475754826, %v3662
    %v3666 = vor.u32 %v3664, %v3665
    %v3667 = vshll.u32 2475754826, %v3661
    %v3668 = vshrl.u32 2131351028, %v3662
    %v3669 = vor.u32 %v3667, %v3668
    %v3670 = vshll.u32 2131351028, %v3661
    %v3671 = vshrl.u32 2102212464, %v3662
    %v3672 = vor.u32 %v3670, %v3671
    %v3673 = vshll.u32 2102212464, %v3661
    %v3674 = vshrl.u32 920167782, %v3662
    %v3675 = vor.u32 %v3673, %v3674
    %v3676 = vshll.u32 920167782, %v3661
    %v3677 = vshrl.u32 1326507024, %v3662
    %v3678 = vor.u32 %v3676, %v3677
    %vm3679 = vcmp.lt.s32.totalorder %v3660, 1
    %vm3680 = vcmp.lt.s32.totalorder %v3660, 2
    %vm3681 = vcmp.lt.s32.totalorder %v3660, 3
    %vm3682 = vcmp.lt.s32.totalorder %v3660, 4
    %v3683 = vsel %vm3679, %v3663, %v3666
    %v3684 = vsel %vm3682, %v3672, 2102212464
    %v3685 = vsel %vm3681, %v3669, %v3684
    %v3686 = vsel %vm3680, %v3683, %v3685
    %v3687 = vsel %vm3679, %v3666, %v3669
    %v3688 = vsel %vm3682, %v3675, 920167782
    %v3689 = vsel %vm3681, %v3672, %v3688
    %v3690 = vsel %vm3680, %v3687, %v3689
    %v3691 = vsel %vm3679, %v3669, %v3672
    %v3692 = vsel %vm3682, %v3678, 1326507024
    %v3693 = vsel %vm3681, %v3675, %v3692
    %v3694 = vsel %vm3680, %v3691, %v3693
    %v3695 = vshll.u32 %v3655, 8
    %v3696 = vmul.u32.u64.compose %v3695, %v3694
    %v3697 = vextract.low.u32 %v3696
    %v3698 = vextract.high.u32 %v3696
    %v3699 = vmul.u32.u64.compose %v3695, %v3690
    %v3700 = vextract.low.u32 %v3699
    %v3701 = vextract.high.u32 %v3699
    %v3702 = vmul.u32 %v3695, %v3686
    %v3703 = vadd.s32 %v3698, %v3700
    %vm3704 = vc.u32 %v3698, %v3700
    %v3705 = vadd.s32 %v3701, 1
    %v3706 = vsel %vm3704, %v3705, %v3701
    %v3707 = vadd.s32 %v3702, %v3706
    %v3708 = vadd.s32 %v3707, 536870912
    %v3709 = vshrl.u32 %v3708, 30
    %v3710 = vshll.u32 %v3709, 30
    %v3711 = vsub.s32 %v3707, %v3710
    %vm3712 = vcmp.lt.s32.totalorder %v3711, 0
    %v3713 = vsub.s32 0, %v3711
    %v3714 = vsel %vm3712, %v3713, %v3711
    %v3715 = vclz %v3714
    %v3716 = vsub.s32 %v3715, 2
    %vm3717 = vcmp.gt.s32.totalorder 0, %v3716
    %v3718 = vsel %vm3717, 0, %v3716
    %v3719 = vsub.s32 32, %v3718
    %v3720 = vshll.u32 %v3711, %v3718
    %v3721 = vshrl.u32 %v3703, %v3719
    %v3722 = vor.u32 %v3720, %v3721
    %v3723 = vsub.s32 4294967266, %v3718
    %v3724 = vadd.s32 %v3723, 127
    %v3725 = vshll.u32 %v3724, 23
    %v3726 = vor.u32 4788187, %v3725
    %v3727 = vand.u32 2147483647, %v3726
    %v3729 = vcvt.s32.f32 %v3722
    %v3730 = vmul.f32 %v3729, %v3727
    %v3731 = vxor.u32 %v3730, 2147483648
    %v3732 = vsel %vm3649, %v3731, %v3730
    %v3733 = vsub.s32 4, %v3709
    %v3734 = vsel %vm3649, %v3733, %v3709
    %v3735 = vsel %vm3648, %v636, %v3732
    %v3736 = vsel %vm3648, 0, %v3734
    %v3737 = vcosq.f32.pop %v3735
    %v3738 = vsinq.f32.pop %v3735
    %vm3739 = vweird.f32 %v636
    %v3740 = vadd.s32 %v3736, 3
    %v3741 = vand.u32 %v3740, 3
    %vm3742 = vcmp.lt.s32.totalorder %v3741, 2
    %vm3743 = vcmp.eq.s32.totalorder %v3741, 0
    %v3744 = vxor.u32 %v3738, 2147483648
    %v3745 = vsel %vm3743, %v3737, %v3744
    %vm3746 = vcmp.eq.s32.totalorder %v3741, 2
    %v3747 = vxor.u32 %v3737, 2147483648
    %v3748 = vsel %vm3746, %v3747, %v3738
    %v3749 = vsel %vm3742, %v3745, %v3748
    %v3750 = vsel %vm3739, nan, %v3749
    %v3751 = vand.u32 2147483647, %v637
    %vm3752 = vcmp.le.f32.partialorder %v3751, 0.7853982
    %vm3753 = vcmp.lt.s32.totalorder %v637, 0
    %v3754 = vand.u32 %v637, 2139095040
    %v3755 = vshrl.u32 %v3754, 23
    %v3756 = vsub.s32 %v3755, 127
    %v3757 = vand.u32 2147483647, %v637
    %v3758 = vand.u32 %v3757, 8388607
    %v3759 = vor.u32 %v3758, 8388608
    %v3760 = vsub.s32 0, %v3759
    %v3761 = vadd.s32 %v3756, 1
    %vm3762 = vcmp.gt.s32.totalorder %v3761, 0
    %v3763 = vsel %vm3762, %v3761, 0
    %v3764 = vshrl.u32 %v3763, 5
    %v3765 = vand.u32 %v3763, 31
    %v3766 = vsub.s32 32, %v3765
    %v3767 = vshrl.u32 683565275, %v3766
    %v3768 = vshll.u32 683565275, %v3765
    %v3769 = vshrl.u32 2475754826, %v3766
    %v3770 = vor.u32 %v3768, %v3769
    %v3771 = vshll.u32 2475754826, %v3765
    %v3772 = vshrl.u32 2131351028, %v3766
    %v3773 = vor.u32 %v3771, %v3772
    %v3774 = vshll.u32 2131351028, %v3765
    %v3775 = vshrl.u32 2102212464, %v3766
    %v3776 = vor.u32 %v3774, %v3775
    %v3777 = vshll.u32 2102212464, %v3765
    %v3778 = vshrl.u32 920167782, %v3766
    %v3779 = vor.u32 %v3777, %v3778
    %v3780 = vshll.u32 920167782, %v3765
    %v3781 = vshrl.u32 1326507024, %v3766
    %v3782 = vor.u32 %v3780, %v3781
    %vm3783 = vcmp.lt.s32.totalorder %v3764, 1
    %vm3784 = vcmp.lt.s32.totalorder %v3764, 2
    %vm3785 = vcmp.lt.s32.totalorder %v3764, 3
    %vm3786 = vcmp.lt.s32.totalorder %v3764, 4
    %v3787 = vsel %vm3783, %v3767, %v3770
    %v3788 = vsel %vm3786, %v3776, 2102212464
    %v3789 = vsel %vm3785, %v3773, %v3788
    %v3790 = vsel %vm3784, %v3787, %v3789
    %v3791 = vsel %vm3783, %v3770, %v3773
    %v3792 = vsel %vm3786, %v3779, 920167782
    %v3793 = vsel %vm3785, %v3776, %v3792
    %v3794 = vsel %vm3784, %v3791, %v3793
    %v3795 = vsel %vm3783, %v3773, %v3776
    %v3796 = vsel %vm3786, %v3782, 1326507024
    %v3797 = vsel %vm3785, %v3779, %v3796
    %v3798 = vsel %vm3784, %v3795, %v3797
    %v3799 = vshll.u32 %v3759, 8
    %v3800 = vmul.u32.u64.compose %v3799, %v3798
    %v3801 = vextract.low.u32 %v3800
    %v3802 = vextract.high.u32 %v3800
    %v3803 = vmul.u32.u64.compose %v3799, %v3794
    %v3804 = vextract.low.u32 %v3803
    %v3805 = vextract.high.u32 %v3803
    %v3806 = vmul.u32 %v3799, %v3790
    %v3807 = vadd.s32 %v3802, %v3804
    %vm3808 = vc.u32 %v3802, %v3804
    %v3809 = vadd.s32 %v3805, 1
    %v3810 = vsel %vm3808, %v3809, %v3805
    %v3811 = vadd.s32 %v3806, %v3810
    %v3812 = vadd.s32 %v3811, 536870912
    %v3813 = vshrl.u32 %v3812, 30
    %v3814 = vshll.u32 %v3813, 30
    %v3815 = vsub.s32 %v3811, %v3814
    %vm3816 = vcmp.lt.s32.totalorder %v3815, 0
    %v3817 = vsub.s32 0, %v3815
    %v3818 = vsel %vm3816, %v3817, %v3815
    %v3819 = vclz %v3818
    %v3820 = vsub.s32 %v3819, 2
    %vm3821 = vcmp.gt.s32.totalorder 0, %v3820
    %v3822 = vsel %vm3821, 0, %v3820
    %v3823 = vsub.s32 32, %v3822
    %v3824 = vshll.u32 %v3815, %v3822
    %v3825 = vshrl.u32 %v3807, %v3823
    %v3826 = vor.u32 %v3824, %v3825
    %v3827 = vsub.s32 4294967266, %v3822
    %v3828 = vadd.s32 %v3827, 127
    %v3829 = vshll.u32 %v3828, 23
    %v3830 = vor.u32 4788187, %v3829
    %v3831 = vand.u32 2147483647, %v3830
    %v3833 = vcvt.s32.f32 %v3826
    %v3834 = vmul.f32 %v3833, %v3831
    %v3835 = vxor.u32 %v3834, 2147483648
    %v3836 = vsel %vm3753, %v3835, %v3834
    %v3837 = vsub.s32 4, %v3813
    %v3838 = vsel %vm3753, %v3837, %v3813
    %v3839 = vsel %vm3752, %v637, %v3836
    %v3840 = vsel %vm3752, 0, %v3838
    %v3841 = vcosq.f32.pop %v3839
    %v3842 = vsinq.f32.pop %v3839
    %vm3843 = vweird.f32 %v637
    %v3844 = vadd.s32 %v3840, 3
    %v3845 = vand.u32 %v3844, 3
    %vm3846 = vcmp.lt.s32.totalorder %v3845, 2
    %vm3847 = vcmp.eq.s32.totalorder %v3845, 0
    %v3848 = vxor.u32 %v3842, 2147483648
    %v3849 = vsel %vm3847, %v3841, %v3848
    %vm3850 = vcmp.eq.s32.totalorder %v3845, 2
    %v3851 = vxor.u32 %v3841, 2147483648
    %v3852 = vsel %vm3850, %v3851, %v3842
    %v3853 = vsel %vm3846, %v3849, %v3852
    %v3854 = vsel %vm3843, nan, %v3853
    %v3855 = vand.u32 2147483647, %v638
    %vm3856 = vcmp.le.f32.partialorder %v3855, 0.7853982
    %vm3857 = vcmp.lt.s32.totalorder %v638, 0
    %v3858 = vand.u32 %v638, 2139095040
    %v3859 = vshrl.u32 %v3858, 23
    %v3860 = vsub.s32 %v3859, 127
    %v3861 = vand.u32 2147483647, %v638
    %v3862 = vand.u32 %v3861, 8388607
    %v3863 = vor.u32 %v3862, 8388608
    %v3864 = vsub.s32 0, %v3863
    %v3865 = vadd.s32 %v3860, 1
    %vm3866 = vcmp.gt.s32.totalorder %v3865, 0
    %v3867 = vsel %vm3866, %v3865, 0
    %v3868 = vshrl.u32 %v3867, 5
    %v3869 = vand.u32 %v3867, 31
    %v3870 = vsub.s32 32, %v3869
    %v3871 = vshrl.u32 683565275, %v3870
    %v3872 = vshll.u32 683565275, %v3869
    %v3873 = vshrl.u32 2475754826, %v3870
    %v3874 = vor.u32 %v3872, %v3873
    %v3875 = vshll.u32 2475754826, %v3869
    %v3876 = vshrl.u32 2131351028, %v3870
    %v3877 = vor.u32 %v3875, %v3876
    %v3878 = vshll.u32 2131351028, %v3869
    %v3879 = vshrl.u32 2102212464, %v3870
    %v3880 = vor.u32 %v3878, %v3879
    %v3881 = vshll.u32 2102212464, %v3869
    %v3882 = vshrl.u32 920167782, %v3870
    %v3883 = vor.u32 %v3881, %v3882
    %v3884 = vshll.u32 920167782, %v3869
    %v3885 = vshrl.u32 1326507024, %v3870
    %v3886 = vor.u32 %v3884, %v3885
    %vm3887 = vcmp.lt.s32.totalorder %v3868, 1
    %vm3888 = vcmp.lt.s32.totalorder %v3868, 2
    %vm3889 = vcmp.lt.s32.totalorder %v3868, 3
    %vm3890 = vcmp.lt.s32.totalorder %v3868, 4
    %v3891 = vsel %vm3887, %v3871, %v3874
    %v3892 = vsel %vm3890, %v3880, 2102212464
    %v3893 = vsel %vm3889, %v3877, %v3892
    %v3894 = vsel %vm3888, %v3891, %v3893
    %v3895 = vsel %vm3887, %v3874, %v3877
    %v3896 = vsel %vm3890, %v3883, 920167782
    %v3897 = vsel %vm3889, %v3880, %v3896
    %v3898 = vsel %vm3888, %v3895, %v3897
    %v3899 = vsel %vm3887, %v3877, %v3880
    %v3900 = vsel %vm3890, %v3886, 1326507024
    %v3901 = vsel %vm3889, %v3883, %v3900
    %v3902 = vsel %vm3888, %v3899, %v3901
    %v3903 = vshll.u32 %v3863, 8
    %v3904 = vmul.u32.u64.compose %v3903, %v3902
    %v3905 = vextract.low.u32 %v3904
    %v3906 = vextract.high.u32 %v3904
    %v3907 = vmul.u32.u64.compose %v3903, %v3898
    %v3908 = vextract.low.u32 %v3907
    %v3909 = vextract.high.u32 %v3907
    %v3910 = vmul.u32 %v3903, %v3894
    %v3911 = vadd.s32 %v3906, %v3908
    %vm3912 = vc.u32 %v3906, %v3908
    %v3913 = vadd.s32 %v3909, 1
    %v3914 = vsel %vm3912, %v3913, %v3909
    %v3915 = vadd.s32 %v3910, %v3914
    %v3916 = vadd.s32 %v3915, 536870912
    %v3917 = vshrl.u32 %v3916, 30
    %v3918 = vshll.u32 %v3917, 30
    %v3919 = vsub.s32 %v3915, %v3918
    %vm3920 = vcmp.lt.s32.totalorder %v3919, 0
    %v3921 = vsub.s32 0, %v3919
    %v3922 = vsel %vm3920, %v3921, %v3919
    %v3923 = vclz %v3922
    %v3924 = vsub.s32 %v3923, 2
    %vm3925 = vcmp.gt.s32.totalorder 0, %v3924
    %v3926 = vsel %vm3925, 0, %v3924
    %v3927 = vsub.s32 32, %v3926
    %v3928 = vshll.u32 %v3919, %v3926
    %v3929 = vshrl.u32 %v3911, %v3927
    %v3930 = vor.u32 %v3928, %v3929
    %v3931 = vsub.s32 4294967266, %v3926
    %v3932 = vadd.s32 %v3931, 127
    %v3933 = vshll.u32 %v3932, 23
    %v3934 = vor.u32 4788187, %v3933
    %v3935 = vand.u32 2147483647, %v3934
    %v3937 = vcvt.s32.f32 %v3930
    %v3938 = vmul.f32 %v3937, %v3935
    %v3939 = vxor.u32 %v3938, 2147483648
    %v3940 = vsel %vm3857, %v3939, %v3938
    %v3941 = vsub.s32 4, %v3917
    %v3942 = vsel %vm3857, %v3941, %v3917
    %v3943 = vsel %vm3856, %v638, %v3940
    %v3944 = vsel %vm3856, 0, %v3942
    %v3945 = vcosq.f32.pop %v3943
    %v3946 = vsinq.f32.pop %v3943
    %vm3947 = vweird.f32 %v638
    %v3948 = vadd.s32 %v3944, 3
    %v3949 = vand.u32 %v3948, 3
    %vm3950 = vcmp.lt.s32.totalorder %v3949, 2
    %vm3951 = vcmp.eq.s32.totalorder %v3949, 0
    %v3952 = vxor.u32 %v3946, 2147483648
    %v3953 = vsel %vm3951, %v3945, %v3952
    %vm3954 = vcmp.eq.s32.totalorder %v3949, 2
    %v3955 = vxor.u32 %v3945, 2147483648
    %v3956 = vsel %vm3954, %v3955, %v3946
    %v3957 = vsel %vm3950, %v3953, %v3956
    %v3958 = vsel %vm3947, nan, %v3957
    %v3959 = vpack.c.bf16 %v2502, %v2398
    %v3960 = vpack.c.bf16 %v2710, %v2606
    %v3961 = vpack.c.bf16 %v2918, %v2814
    %v3962 = vpack.c.bf16 %v3126, %v3022
    %v3963 = vpack.c.bf16 %v3334, %v3230
    %v3964 = vpack.c.bf16 %v3542, %v3438
    %v3965 = vpack.c.bf16 %v3750, %v3646
    %v3966 = vpack.c.bf16 %v3958, %v3854
    %v3967 = vld [vmem:[%s0] sm:$0xff]
    %v3969 = vcombine.high %v3967, %v3967
    %v3971 = vunpack.c.l.s4 1966171168
    %v3972 = vunpack.c.0.s8 %v3971
    %v3973 = vlaneseq
    %v3974 = vshrl.u32 %v3973, 7
    %v3975 = vsub.s32 %v3972, %v3974
    %v3976 = vrot.slane %v3967, %v3975
    %v3978 = vunpack.c.l.s4 1966171168
    %v3979 = vunpack.c.0.s8 %v3978
    %v3980 = vlaneseq
    %v3981 = vshrl.u32 %v3980, 7
    %v3982 = vsub.s32 %v3979, %v3981
    %v3983 = vrot.slane %v3969, %v3982
    %v3984 = vcombine.high %v3976, %v3976
    %v3985 = vcombine.high %v3983, %v3983
    %v3987 = vunpack.c.l.s4 1966171168
    %v3988 = vunpack.c.0.s8 %v3987
    %v3989 = vlaneseq
    %v3990 = vshrl.u32 %v3989, 7
    %v3991 = vsub.s32 %v3988, %v3990
    %v3992 = vrot.slane %v3976, %v3991
    %v3994 = vunpack.c.l.s4 1966171168
    %v3995 = vunpack.c.0.s8 %v3994
    %v3996 = vlaneseq
    %v3997 = vshrl.u32 %v3996, 7
    %v3998 = vsub.s32 %v3995, %v3997
    %v3999 = vrot.slane %v3983, %v3998
    %v4001 = vunpack.c.l.s4 1966171168
    %v4002 = vunpack.c.0.s8 %v4001
    %v4003 = vlaneseq
    %v4004 = vshrl.u32 %v4003, 7
    %v4005 = vsub.s32 %v4002, %v4004
    %v4006 = vrot.slane %v3984, %v4005
    %v4008 = vunpack.c.l.s4 1966171168
    %v4009 = vunpack.c.0.s8 %v4008
    %v4010 = vlaneseq
    %v4011 = vshrl.u32 %v4010, 7
    %v4012 = vsub.s32 %v4009, %v4011
    %v4013 = vrot.slane %v3985, %v4012
    %v4014 = vcombine.high %v3992, %v3992
    %v4015 = vcombine.high %v3999, %v3999
    %v4016 = vcombine.high %v4006, %v4006
    %v4017 = vcombine.high %v4013, %v4013
    %v4018 = vld [vmem:[%s1] sm:$0xff]
    %v4020 = vcombine.high %v4018, %v4018
    %v4022 = vunpack.c.l.s4 1966171168
    %v4023 = vunpack.c.0.s8 %v4022
    %v4024 = vlaneseq
    %v4025 = vshrl.u32 %v4024, 7
    %v4026 = vsub.s32 %v4023, %v4025
    %v4027 = vrot.slane %v4018, %v4026
    %v4029 = vunpack.c.l.s4 1966171168
    %v4030 = vunpack.c.0.s8 %v4029
    %v4031 = vlaneseq
    %v4032 = vshrl.u32 %v4031, 7
    %v4033 = vsub.s32 %v4030, %v4032
    %v4034 = vrot.slane %v4020, %v4033
    %v4035 = vcombine.high %v4027, %v4027
    %v4036 = vcombine.high %v4034, %v4034
    %v4038 = vunpack.c.l.s4 1966171168
    %v4039 = vunpack.c.0.s8 %v4038
    %v4040 = vlaneseq
    %v4041 = vshrl.u32 %v4040, 7
    %v4042 = vsub.s32 %v4039, %v4041
    %v4043 = vrot.slane %v4027, %v4042
    %v4045 = vunpack.c.l.s4 1966171168
    %v4046 = vunpack.c.0.s8 %v4045
    %v4047 = vlaneseq
    %v4048 = vshrl.u32 %v4047, 7
    %v4049 = vsub.s32 %v4046, %v4048
    %v4050 = vrot.slane %v4034, %v4049
    %v4052 = vunpack.c.l.s4 1966171168
    %v4053 = vunpack.c.0.s8 %v4052
    %v4054 = vlaneseq
    %v4055 = vshrl.u32 %v4054, 7
    %v4056 = vsub.s32 %v4053, %v4055
    %v4057 = vrot.slane %v4035, %v4056
    %v4059 = vunpack.c.l.s4 1966171168
    %v4060 = vunpack.c.0.s8 %v4059
    %v4061 = vlaneseq
    %v4062 = vshrl.u32 %v4061, 7
    %v4063 = vsub.s32 %v4060, %v4062
    %v4064 = vrot.slane %v4036, %v4063
    %v4065 = vcombine.high %v4043, %v4043
    %v4066 = vcombine.high %v4050, %v4050
    %v4067 = vcombine.high %v4057, %v4057
    %v4068 = vcombine.high %v4064, %v4064
    %v4069 = vlaneseq
    %v4070 = vshrl.u32 %v4069, 7
    %v4071 = vsub.s32 0, %v4070
    %v4072 = vrot.slane %v3992, %v4071
    %v4073 = vlaneseq
    %v4074 = vshrl.u32 %v4073, 7
    %v4075 = vsub.s32 0, %v4074
    %v4076 = vrot.slane %v4006, %v4075
    %v4077 = vlaneseq
    %v4078 = vshrl.u32 %v4077, 7
    %v4079 = vsub.s32 0, %v4078
    %v4080 = vrot.slane %v4014, %v4079
    %v4081 = vlaneseq
    %v4082 = vshrl.u32 %v4081, 7
    %v4083 = vsub.s32 0, %v4082
    %v4084 = vrot.slane %v4016, %v4083
    %v4085 = vlaneseq
    %v4086 = vshrl.u32 %v4085, 7
    %v4087 = vsub.s32 0, %v4086
    %v4088 = vrot.slane %v3999, %v4087
    %v4089 = vlaneseq
    %v4090 = vshrl.u32 %v4089, 7
    %v4091 = vsub.s32 0, %v4090
    %v4092 = vrot.slane %v4013, %v4091
    %v4093 = vlaneseq
    %v4094 = vshrl.u32 %v4093, 7
    %v4095 = vsub.s32 0, %v4094
    %v4096 = vrot.slane %v4015, %v4095
    %v4097 = vlaneseq
    %v4098 = vshrl.u32 %v4097, 7
    %v4099 = vsub.s32 0, %v4098
    %v4100 = vrot.slane %v4017, %v4099
    %v4109 = vmul.f32 %v4072, %v208
    %v4110 = vmul.f32 %v4072, %v311
    %v4111 = vmul.f32 %v4076, %v208
    %v4112 = vmul.f32 %v4076, %v311
    %v4113 = vmul.f32 %v4080, %v208
    %v4114 = vmul.f32 %v4080, %v311
    %v4115 = vmul.f32 %v4084, %v208
    %v4116 = vmul.f32 %v4084, %v311
    %v4117 = vmul.f32 %v4088, %v208
    %v4118 = vmul.f32 %v4088, %v311
    %v4119 = vmul.f32 %v4092, %v208
    %v4120 = vmul.f32 %v4092, %v311
    %v4121 = vmul.f32 %v4096, %v208
    %v4122 = vmul.f32 %v4096, %v311
    %v4123 = vmul.f32 %v4100, %v208
    %v4124 = vmul.f32 %v4100, %v311
    %v4125 = vlaneseq
    %v4126 = vshrl.u32 %v4125, 7
    %v4127 = vsub.s32 0, %v4126
    %v4128 = vrot.slane %v4043, %v4127
    %v4129 = vlaneseq
    %v4130 = vshrl.u32 %v4129, 7
    %v4131 = vsub.s32 0, %v4130
    %v4132 = vrot.slane %v4057, %v4131
    %v4133 = vlaneseq
    %v4134 = vshrl.u32 %v4133, 7
    %v4135 = vsub.s32 0, %v4134
    %v4136 = vrot.slane %v4065, %v4135
    %v4137 = vlaneseq
    %v4138 = vshrl.u32 %v4137, 7
    %v4139 = vsub.s32 0, %v4138
    %v4140 = vrot.slane %v4067, %v4139
    %v4141 = vlaneseq
    %v4142 = vshrl.u32 %v4141, 7
    %v4143 = vsub.s32 0, %v4142
    %v4144 = vrot.slane %v4050, %v4143
    %v4145 = vlaneseq
    %v4146 = vshrl.u32 %v4145, 7
    %v4147 = vsub.s32 0, %v4146
    %v4148 = vrot.slane %v4064, %v4147
    %v4149 = vlaneseq
    %v4150 = vshrl.u32 %v4149, 7
    %v4151 = vsub.s32 0, %v4150
    %v4152 = vrot.slane %v4066, %v4151
    %v4153 = vlaneseq
    %v4154 = vshrl.u32 %v4153, 7
    %v4155 = vsub.s32 0, %v4154
    %v4156 = vrot.slane %v4068, %v4155
    %v4165 = vmul.f32 %v4128, %v415
    %v4166 = vmul.f32 %v4128, %v519
    %v4167 = vmul.f32 %v4132, %v415
    %v4168 = vmul.f32 %v4132, %v519
    %v4169 = vmul.f32 %v4136, %v415
    %v4170 = vmul.f32 %v4136, %v519
    %v4171 = vmul.f32 %v4140, %v415
    %v4172 = vmul.f32 %v4140, %v519
    %v4173 = vmul.f32 %v4144, %v415
    %v4174 = vmul.f32 %v4144, %v519
    %v4175 = vmul.f32 %v4148, %v415
    %v4176 = vmul.f32 %v4148, %v519
    %v4177 = vmul.f32 %v4152, %v415
    %v4178 = vmul.f32 %v4152, %v519
    %v4179 = vmul.f32 %v4156, %v415
    %v4180 = vmul.f32 %v4156, %v519
    %v4181 = vsub.f32 %v4109, %v4165
    %v4182 = vsub.f32 %v4110, %v4166
    %v4183 = vsub.f32 %v4111, %v4167
    %v4184 = vsub.f32 %v4112, %v4168
    %v4185 = vsub.f32 %v4113, %v4169
    %v4186 = vsub.f32 %v4114, %v4170
    %v4187 = vsub.f32 %v4115, %v4171
    %v4188 = vsub.f32 %v4116, %v4172
    %v4189 = vsub.f32 %v4117, %v4173
    %v4190 = vsub.f32 %v4118, %v4174
    %v4191 = vsub.f32 %v4119, %v4175
    %v4192 = vsub.f32 %v4120, %v4176
    %v4193 = vsub.f32 %v4121, %v4177
    %v4194 = vsub.f32 %v4122, %v4178
    %v4195 = vsub.f32 %v4123, %v4179
    %v4196 = vsub.f32 %v4124, %v4180
    %v4197 = vpack.c.bf16 %v4182, %v4181
    %v4198 = vpack.c.bf16 %v4184, %v4183
    %v4199 = vpack.c.bf16 %v4186, %v4185
    %v4200 = vpack.c.bf16 %v4188, %v4187
    %v4201 = vpack.c.bf16 %v4190, %v4189
    %v4202 = vpack.c.bf16 %v4192, %v4191
    %v4203 = vpack.c.bf16 %v4194, %v4193
    %v4204 = vpack.c.bf16 %v4196, %v4195
    %v4205 = vmul.f32 %v4072, %v415
    %v4206 = vmul.f32 %v4072, %v519
    %v4207 = vmul.f32 %v4076, %v415
    %v4208 = vmul.f32 %v4076, %v519
    %v4209 = vmul.f32 %v4080, %v415
    %v4210 = vmul.f32 %v4080, %v519
    %v4211 = vmul.f32 %v4084, %v415
    %v4212 = vmul.f32 %v4084, %v519
    %v4213 = vmul.f32 %v4088, %v415
    %v4214 = vmul.f32 %v4088, %v519
    %v4215 = vmul.f32 %v4092, %v415
    %v4216 = vmul.f32 %v4092, %v519
    %v4217 = vmul.f32 %v4096, %v415
    %v4218 = vmul.f32 %v4096, %v519
    %v4219 = vmul.f32 %v4100, %v415
    %v4220 = vmul.f32 %v4100, %v519
    %v4221 = vmul.f32 %v4128, %v208
    %v4222 = vmul.f32 %v4128, %v311
    %v4223 = vmul.f32 %v4132, %v208
    %v4224 = vmul.f32 %v4132, %v311
    %v4225 = vmul.f32 %v4136, %v208
    %v4226 = vmul.f32 %v4136, %v311
    %v4227 = vmul.f32 %v4140, %v208
    %v4228 = vmul.f32 %v4140, %v311
    %v4229 = vmul.f32 %v4144, %v208
    %v4230 = vmul.f32 %v4144, %v311
    %v4231 = vmul.f32 %v4148, %v208
    %v4232 = vmul.f32 %v4148, %v311
    %v4233 = vmul.f32 %v4152, %v208
    %v4234 = vmul.f32 %v4152, %v311
    %v4235 = vmul.f32 %v4156, %v208
    %v4236 = vmul.f32 %v4156, %v311
    %v4237 = vadd.f32 %v4205, %v4221
    %v4238 = vadd.f32 %v4206, %v4222
    %v4239 = vadd.f32 %v4207, %v4223
    %v4240 = vadd.f32 %v4208, %v4224
    %v4241 = vadd.f32 %v4209, %v4225
    %v4242 = vadd.f32 %v4210, %v4226
    %v4243 = vadd.f32 %v4211, %v4227
    %v4244 = vadd.f32 %v4212, %v4228
    %v4245 = vadd.f32 %v4213, %v4229
    %v4246 = vadd.f32 %v4214, %v4230
    %v4247 = vadd.f32 %v4215, %v4231
    %v4248 = vadd.f32 %v4216, %v4232
    %v4249 = vadd.f32 %v4217, %v4233
    %v4250 = vadd.f32 %v4218, %v4234
    %v4251 = vadd.f32 %v4219, %v4235
    %v4252 = vadd.f32 %v4220, %v4236
    %v4253 = vpack.c.bf16 %v4238, %v4237
    %v4254 = vpack.c.bf16 %v4240, %v4239
    %v4255 = vpack.c.bf16 %v4242, %v4241
    %v4256 = vpack.c.bf16 %v4244, %v4243
    %v4257 = vpack.c.bf16 %v4246, %v4245
    %v4258 = vpack.c.bf16 %v4248, %v4247
    %v4259 = vpack.c.bf16 %v4250, %v4249
    %v4260 = vpack.c.bf16 %v4252, %v4251
    %v4261 = vld [vmem:[#allocation2] sm:$0xff]
    %v4262 = vld [vmem:[#allocation2 + $0x8] sm:$0xff]
    %v4263 = vld [vmem:[#allocation2 + $0x10] sm:$0xff]
    %v4264 = vld [vmem:[#allocation2 + $0x18] sm:$0xff]
    %v4265 = vld [vmem:[#allocation2 + $0x20] sm:$0xff]
    %v4266 = vld [vmem:[#allocation2 + $0x28] sm:$0xff]
    %v4267 = vld [vmem:[#allocation2 + $0x30] sm:$0xff]
    %v4268 = vld [vmem:[#allocation2 + $0x38] sm:$0xff]
    %v4269 = vld [vmem:[#allocation2 + $0x40] sm:$0xff]
    %v4270 = vld [vmem:[#allocation2 + $0x48] sm:$0xff]
    %v4271 = vld [vmem:[#allocation2 + $0x50] sm:$0xff]
    %v4272 = vld [vmem:[#allocation2 + $0x58] sm:$0xff]
    %v4273 = vld [vmem:[#allocation2 + $0x60] sm:$0xff]
    %v4274 = vld [vmem:[#allocation2 + $0x68] sm:$0xff]
    %v4275 = vld [vmem:[#allocation2 + $0x70] sm:$0xff]
    %v4276 = vld [vmem:[#allocation2 + $0x78] sm:$0xff]
    %4277 = vmatprep.subr.bf16.mxu0 0
    %4278 = vmatpush1.bf16.msra.mxu0 %v2287
    %4279 = vmatprep.subr.bf16.mxu0 0
    %4280 = vmatpush1.bf16.msra.mxu0 %v2288
    %4281 = vmatprep.subr.bf16.mxu0 0
    %4282 = vmatpush1.bf16.msra.mxu0 %v2289
    %4283 = vmatprep.subr.bf16.mxu0 0
    %4284 = vmatpush1.bf16.msra.mxu0 %v2290
    %4285 = vmatprep.subr.bf16.mxu0 0
    %4286 = vmatpush1.bf16.msra.mxu0 %v2291
    %4287 = vmatprep.subr.bf16.mxu0 0
    %4288 = vmatpush1.bf16.msra.mxu0 %v2292
    %4289 = vmatprep.subr.bf16.mxu0 0
    %4290 = vmatpush1.bf16.msra.mxu0 %v2293
    %4291 = vmatprep.subr.bf16.mxu0 0
    %4292 = vmatpush1.bf16.msra.mxu0 %v2294
    %4293 = vmatprep.subr.bf16.mxu0 0
    %4294 = vmatpush1.bf16.msra.mxu0 0
    %4295 = vmatprep.subr.bf16.mxu0 0
    %4296 = vmatpush1.bf16.msra.mxu0 0
    %4297 = vmatprep.subr.bf16.mxu0 0
    %4298 = vmatpush1.bf16.msra.mxu0 0
    %4299 = vmatprep.subr.bf16.mxu0 0
    %4300 = vmatpush1.bf16.msra.mxu0 0
    %4301 = vmatprep.subr.bf16.mxu0 0
    %4302 = vmatpush1.bf16.msra.mxu0 0
    %4303 = vmatprep.subr.bf16.mxu0 0
    %4304 = vmatpush1.bf16.msra.mxu0 0
    %4305 = vmatprep.subr.bf16.mxu0 0
    %4306 = vmatpush1.bf16.msra.mxu0 0
    %4307 = vmatprep.subr.bf16.mxu0 0
    %4308 = vmatpush1.bf16.msra.mxu0 0
    %4309 = vmatprep.mubr.bf16.mxu0 0
    %4310 = vmatmul.mubr.bf16.gmra.mrb[0].mxu0 %v4197
    %v4311 = vpop.f32.mrb[0].mxu0
    %v4312 = vadd.f32 0.0, %v4311
    %v4313 = vpop.f32.mrb[0].mxu0
    %v4314 = vpop.f32.mrb[0].mxu0
    %v4315 = vadd.f32 0.0, %v4314
    %v4316 = vpop.f32.mrb[0].mxu0
    %4317 = vmatprep.mubr.bf16.mxu0 0
    %4318 = vmatmul.mubr.bf16.gmra.mrb[0].mxu0 %v4198
    %v4319 = vpop.f32.mrb[0].mxu0
    %v4320 = vadd.f32 0.0, %v4319
    %v4321 = vpop.f32.mrb[0].mxu0
    %v4322 = vpop.f32.mrb[0].mxu0
    %v4323 = vadd.f32 0.0, %v4322
    %v4324 = vpop.f32.mrb[0].mxu0
    %4325 = vmatprep.mubr.bf16.mxu0 0
    %4326 = vmatmul.mubr.bf16.gmra.mrb[0].mxu0 %v4199
    %v4327 = vpop.f32.mrb[0].mxu0
    %v4328 = vadd.f32 0.0, %v4327
    %v4329 = vpop.f32.mrb[0].mxu0
    %v4330 = vpop.f32.mrb[0].mxu0
    %v4331 = vadd.f32 0.0, %v4330
    %v4332 = vpop.f32.mrb[0].mxu0
    %4333 = vmatprep.mubr.bf16.mxu0 0
    %4334 = vmatmul.mubr.bf16.gmra.mrb[0].mxu0 %v4200
    %v4335 = vpop.f32.mrb[0].mxu0
    %v4336 = vadd.f32 0.0, %v4335
    %v4337 = vpop.f32.mrb[0].mxu0
    %v4338 = vpop.f32.mrb[0].mxu0
    %v4339 = vadd.f32 0.0, %v4338
    %v4340 = vpop.f32.mrb[0].mxu0
    %4341 = vmatprep.mubr.bf16.mxu0 0
    %4342 = vmatmul.mubr.bf16.gmra.mrb[0].mxu0 %v4201
    %v4343 = vpop.f32.mrb[0].mxu0
    %v4344 = vadd.f32 0.0, %v4343
    %v4345 = vpop.f32.mrb[0].mxu0
    %v4346 = vpop.f32.mrb[0].mxu0
    %v4347 = vadd.f32 0.0, %v4346
    %v4348 = vpop.f32.mrb[0].mxu0
    %4349 = vmatprep.mubr.bf16.mxu0 0
    %4350 = vmatmul.mubr.bf16.gmra.mrb[0].mxu0 %v4202
    %v4351 = vpop.f32.mrb[0].mxu0
    %v4352 = vadd.f32 0.0, %v4351
    %v4353 = vpop.f32.mrb[0].mxu0
    %v4354 = vpop.f32.mrb[0].mxu0
    %v4355 = vadd.f32 0.0, %v4354
    %v4356 = vpop.f32.mrb[0].mxu0
    %4357 = vmatprep.mubr.bf16.mxu0 0
    %4358 = vmatmul.mubr.bf16.gmra.mrb[0].mxu0 %v4203
    %v4359 = vpop.f32.mrb[0].mxu0
    %v4360 = vadd.f32 0.0, %v4359
    %v4361 = vpop.f32.mrb[0].mxu0
    %v4362 = vpop.f32.mrb[0].mxu0
    %v4363 = vadd.f32 0.0, %v4362
    %v4364 = vpop.f32.mrb[0].mxu0
    %4365 = vmatprep.mubr.bf16.mxu0 0
    %4366 = vmatmul.mubr.bf16.gmra.mrb[0].mxu0 %v4204
    %v4367 = vpop.f32.mrb[0].mxu0
    %v4368 = vadd.f32 0.0, %v4367
    %v4369 = vpop.f32.mrb[0].mxu0
    %v4370 = vpop.f32.mrb[0].mxu0
    %v4371 = vadd.f32 0.0, %v4370
    %v4372 = vpop.f32.mrb[0].mxu0
    %4373 = vdwg.mxu0
    %4374 = vmatprep.subr.bf16.mxu0 0
    %4375 = vmatpush1.bf16.msra.mxu0 %v3959
    %4376 = vmatprep.subr.bf16.mxu0 0
    %4377 = vmatpush1.bf16.msra.mxu0 %v3960
    %4378 = vmatprep.subr.bf16.mxu0 0
    %4379 = vmatpush1.bf16.msra.mxu0 %v3961
    %4380 = vmatprep.subr.bf16.mxu0 0
    %4381 = vmatpush1.bf16.msra.mxu0 %v3962
    %4382 = vmatprep.subr.bf16.mxu0 0
    %4383 = vmatpush1.bf16.msra.mxu0 %v3963
    %4384 = vmatprep.subr.bf16.mxu0 0
    %4385 = vmatpush1.bf16.msra.mxu0 %v3964
    %4386 = vmatprep.subr.bf16.mxu0 0
    %4387 = vmatpush1.bf16.msra.mxu0 %v3965
    %4388 = vmatprep.subr.bf16.mxu0 0
    %4389 = vmatpush1.bf16.msra.mxu0 %v3966
    %4390 = vmatprep.subr.bf16.mxu0 0
    %4391 = vmatpush1.bf16.msra.mxu0 0
    %4392 = vmatprep.subr.bf16.mxu0 0
    %4393 = vmatpush1.bf16.msra.mxu0 0
    %4394 = vmatprep.subr.bf16.mxu0 0
    %4395 = vmatpush1.bf16.msra.mxu0 0
    %4396 = vmatprep.subr.bf16.mxu0 0
    %4397 = vmatpush1.bf16.msra.mxu0 0
    %4398 = vmatprep.subr.bf16.mxu0 0
    %4399 = vmatpush1.bf16.msra.mxu0 0
    %4400 = vmatprep.subr.bf16.mxu0 0
    %4401 = vmatpush1.bf16.msra.mxu0 0
    %4402 = vmatprep.subr.bf16.mxu0 0
    %4403 = vmatpush1.bf16.msra.mxu0 0
    %4404 = vmatprep.subr.bf16.mxu0 0
    %4405 = vmatpush1.bf16.msra.mxu0 0
    %4406 = vmatprep.mubr.bf16.mxu0 0
    %4407 = vmatmul.mubr.bf16.gmra.mrb[0].mxu0 %v4253
    %v4408 = vpop.f32.mrb[0].mxu0
    %v4409 = vadd.f32 0.0, %v4408
    %v4410 = vpop.f32.mrb[0].mxu0
    %v4411 = vpop.f32.mrb[0].mxu0
    %v4412 = vadd.f32 0.0, %v4411
    %v4413 = vpop.f32.mrb[0].mxu0
    %4414 = vmatprep.mubr.bf16.mxu0 0
    %4415 = vmatmul.mubr.bf16.gmra.mrb[0].mxu0 %v4254
    %v4416 = vpop.f32.mrb[0].mxu0
    %v4417 = vadd.f32 0.0, %v4416
    %v4418 = vpop.f32.mrb[0].mxu0
    %v4419 = vpop.f32.mrb[0].mxu0
    %v4420 = vadd.f32 0.0, %v4419
    %v4421 = vpop.f32.mrb[0].mxu0
    %4422 = vmatprep.mubr.bf16.mxu0 0
    %4423 = vmatmul.mubr.bf16.gmra.mrb[0].mxu0 %v4255
    %v4424 = vpop.f32.mrb[0].mxu0
    %v4425 = vadd.f32 0.0, %v4424
    %v4426 = vpop.f32.mrb[0].mxu0
    %v4427 = vpop.f32.mrb[0].mxu0
    %v4428 = vadd.f32 0.0, %v4427
    %v4429 = vpop.f32.mrb[0].mxu0
    %4430 = vmatprep.mubr.bf16.mxu0 0
    %4431 = vmatmul.mubr.bf16.gmra.mrb[0].mxu0 %v4256
    %v4432 = vpop.f32.mrb[0].mxu0
    %v4433 = vadd.f32 0.0, %v4432
    %v4434 = vpop.f32.mrb[0].mxu0
    %v4435 = vpop.f32.mrb[0].mxu0
    %v4436 = vadd.f32 0.0, %v4435
    %v4437 = vpop.f32.mrb[0].mxu0
    %4438 = vmatprep.mubr.bf16.mxu0 0
    %4439 = vmatmul.mubr.bf16.gmra.mrb[0].mxu0 %v4257
    %v4440 = vpop.f32.mrb[0].mxu0
    %v4441 = vadd.f32 0.0, %v4440
    %v4442 = vpop.f32.mrb[0].mxu0
    %v4443 = vpop.f32.mrb[0].mxu0
    %v4444 = vadd.f32 0.0, %v4443
    %v4445 = vpop.f32.mrb[0].mxu0
    %4446 = vmatprep.mubr.bf16.mxu0 0
    %4447 = vmatmul.mubr.bf16.gmra.mrb[0].mxu0 %v4258
    %v4448 = vpop.f32.mrb[0].mxu0
    %v4449 = vadd.f32 0.0, %v4448
    %v4450 = vpop.f32.mrb[0].mxu0
    %v4451 = vpop.f32.mrb[0].mxu0
    %v4452 = vadd.f32 0.0, %v4451
    %v4453 = vpop.f32.mrb[0].mxu0
    %4454 = vmatprep.mubr.bf16.mxu0 0
    %4455 = vmatmul.mubr.bf16.gmra.mrb[0].mxu0 %v4259
    %v4456 = vpop.f32.mrb[0].mxu0
    %v4457 = vadd.f32 0.0, %v4456
    %v4458 = vpop.f32.mrb[0].mxu0
    %v4459 = vpop.f32.mrb[0].mxu0
    %v4460 = vadd.f32 0.0, %v4459
    %v4461 = vpop.f32.mrb[0].mxu0
    %4462 = vmatprep.mubr.bf16.mxu0 0
    %4463 = vmatmul.mubr.bf16.gmra.mrb[0].mxu0 %v4260
    %v4464 = vpop.f32.mrb[0].mxu0
    %v4465 = vadd.f32 0.0, %v4464
    %v4466 = vpop.f32.mrb[0].mxu0
    %v4467 = vpop.f32.mrb[0].mxu0
    %v4468 = vadd.f32 0.0, %v4467
    %v4469 = vpop.f32.mrb[0].mxu0
    %4470 = vdwg.mxu0
    %v4471 = vsub.f32 %v4312, %v4409
    %v4472 = vsub.f32 %v4315, %v4412
    %v4473 = vsub.f32 %v4320, %v4417
    %v4474 = vsub.f32 %v4323, %v4420
    %v4475 = vsub.f32 %v4328, %v4425
    %v4476 = vsub.f32 %v4331, %v4428
    %v4477 = vsub.f32 %v4336, %v4433
    %v4478 = vsub.f32 %v4339, %v4436
    %v4479 = vsub.f32 %v4344, %v4441
    %v4480 = vsub.f32 %v4347, %v4444
    %v4481 = vsub.f32 %v4352, %v4449
    %v4482 = vsub.f32 %v4355, %v4452
    %v4483 = vsub.f32 %v4360, %v4457
    %v4484 = vsub.f32 %v4363, %v4460
    %v4485 = vsub.f32 %v4368, %v4465
    %v4486 = vsub.f32 %v4371, %v4468
    %v4487 = vadd.f32 %v4261, %v4471
    %v4488 = vadd.f32 %v4262, %v4472
    %v4489 = vadd.f32 %v4263, %v4473
    %v4490 = vadd.f32 %v4264, %v4474
    %v4491 = vadd.f32 %v4265, %v4475
    %v4492 = vadd.f32 %v4266, %v4476
    %v4493 = vadd.f32 %v4267, %v4477
    %v4494 = vadd.f32 %v4268, %v4478
    %v4495 = vadd.f32 %v4269, %v4479
    %v4496 = vadd.f32 %v4270, %v4480
    %v4497 = vadd.f32 %v4271, %v4481
    %v4498 = vadd.f32 %v4272, %v4482
    %v4499 = vadd.f32 %v4273, %v4483
    %v4500 = vadd.f32 %v4274, %v4484
    %v4501 = vadd.f32 %v4275, %v4485
    %v4502 = vadd.f32 %v4276, %v4486
    %4503 = vst [vmem:[#allocation2] sm:$0xff] %v4487
    %4504 = vst [vmem:[#allocation2 + $0x8] sm:$0xff] %v4488
    %4505 = vst [vmem:[#allocation2 + $0x10] sm:$0xff] %v4489
    %4506 = vst [vmem:[#allocation2 + $0x18] sm:$0xff] %v4490
    %4507 = vst [vmem:[#allocation2 + $0x20] sm:$0xff] %v4491
    %4508 = vst [vmem:[#allocation2 + $0x28] sm:$0xff] %v4492
    %4509 = vst [vmem:[#allocation2 + $0x30] sm:$0xff] %v4493
    %4510 = vst [vmem:[#allocation2 + $0x38] sm:$0xff] %v4494
    %4511 = vst [vmem:[#allocation2 + $0x40] sm:$0xff] %v4495
    %4512 = vst [vmem:[#allocation2 + $0x48] sm:$0xff] %v4496
    %4513 = vst [vmem:[#allocation2 + $0x50] sm:$0xff] %v4497
    %4514 = vst [vmem:[#allocation2 + $0x58] sm:$0xff] %v4498
    %4515 = vst [vmem:[#allocation2 + $0x60] sm:$0xff] %v4499
    %4516 = vst [vmem:[#allocation2 + $0x68] sm:$0xff] %v4500
    %4517 = vst [vmem:[#allocation2 + $0x70] sm:$0xff] %v4501
    %4518 = vst [vmem:[#allocation2 + $0x78] sm:$0xff] %v4502
    %v4519 = vld [vmem:[#allocation3] sm:$0xff]
    %v4520 = vld [vmem:[#allocation3 + $0x8] sm:$0xff]
    %v4521 = vld [vmem:[#allocation3 + $0x10] sm:$0xff]
    %v4522 = vld [vmem:[#allocation3 + $0x18] sm:$0xff]
    %v4523 = vld [vmem:[#allocation3 + $0x20] sm:$0xff]
    %v4524 = vld [vmem:[#allocation3 + $0x28] sm:$0xff]
    %v4525 = vld [vmem:[#allocation3 + $0x30] sm:$0xff]
    %v4526 = vld [vmem:[#allocation3 + $0x38] sm:$0xff]
    %v4527 = vld [vmem:[#allocation3 + $0x40] sm:$0xff]
    %v4528 = vld [vmem:[#allocation3 + $0x48] sm:$0xff]
    %v4529 = vld [vmem:[#allocation3 + $0x50] sm:$0xff]
    %v4530 = vld [vmem:[#allocation3 + $0x58] sm:$0xff]
    %v4531 = vld [vmem:[#allocation3 + $0x60] sm:$0xff]
    %v4532 = vld [vmem:[#allocation3 + $0x68] sm:$0xff]
    %v4533 = vld [vmem:[#allocation3 + $0x70] sm:$0xff]
    %v4534 = vld [vmem:[#allocation3 + $0x78] sm:$0xff]
    %4535 = vmatprep.subr.bf16.mxu0 0
    %4536 = vmatpush1.bf16.msra.mxu0 %v2287
    %4537 = vmatprep.subr.bf16.mxu0 0
    %4538 = vmatpush1.bf16.msra.mxu0 %v2288
    %4539 = vmatprep.subr.bf16.mxu0 0
    %4540 = vmatpush1.bf16.msra.mxu0 %v2289
    %4541 = vmatprep.subr.bf16.mxu0 0
    %4542 = vmatpush1.bf16.msra.mxu0 %v2290
    %4543 = vmatprep.subr.bf16.mxu0 0
    %4544 = vmatpush1.bf16.msra.mxu0 %v2291
    %4545 = vmatprep.subr.bf16.mxu0 0
    %4546 = vmatpush1.bf16.msra.mxu0 %v2292
    %4547 = vmatprep.subr.bf16.mxu0 0
    %4548 = vmatpush1.bf16.msra.mxu0 %v2293
    %4549 = vmatprep.subr.bf16.mxu0 0
    %4550 = vmatpush1.bf16.msra.mxu0 %v2294
    %4551 = vmatprep.subr.bf16.mxu0 0
    %4552 = vmatpush1.bf16.msra.mxu0 0
    %4553 = vmatprep.subr.bf16.mxu0 0
    %4554 = vmatpush1.bf16.msra.mxu0 0
    %4555 = vmatprep.subr.bf16.mxu0 0
    %4556 = vmatpush1.bf16.msra.mxu0 0
    %4557 = vmatprep.subr.bf16.mxu0 0
    %4558 = vmatpush1.bf16.msra.mxu0 0
    %4559 = vmatprep.subr.bf16.mxu0 0
    %4560 = vmatpush1.bf16.msra.mxu0 0
    %4561 = vmatprep.subr.bf16.mxu0 0
    %4562 = vmatpush1.bf16.msra.mxu0 0
    %4563 = vmatprep.subr.bf16.mxu0 0
    %4564 = vmatpush1.bf16.msra.mxu0 0
    %4565 = vmatprep.subr.bf16.mxu0 0
    %4566 = vmatpush1.bf16.msra.mxu0 0
    %4567 = vmatprep.mubr.bf16.mxu0 0
    %4568 = vmatmul.mubr.bf16.gmra.mrb[0].mxu0 %v4253
    %v4569 = vpop.f32.mrb[0].mxu0
    %v4570 = vadd.f32 0.0, %v4569
    %v4571 = vpop.f32.mrb[0].mxu0
    %v4572 = vpop.f32.mrb[0].mxu0
    %v4573 = vadd.f32 0.0, %v4572
    %v4574 = vpop.f32.mrb[0].mxu0
    %4575 = vmatprep.mubr.bf16.mxu0 0
    %4576 = vmatmul.mubr.bf16.gmra.mrb[0].mxu0 %v4254
    %v4577 = vpop.f32.mrb[0].mxu0
    %v4578 = vadd.f32 0.0, %v4577
    %v4579 = vpop.f32.mrb[0].mxu0
    %v4580 = vpop.f32.mrb[0].mxu0
    %v4581 = vadd.f32 0.0, %v4580
    %v4582 = vpop.f32.mrb[0].mxu0
    %4583 = vmatprep.mubr.bf16.mxu0 0
    %4584 = vmatmul.mubr.bf16.gmra.mrb[0].mxu0 %v4255
    %v4585 = vpop.f32.mrb[0].mxu0
    %v4586 = vadd.f32 0.0, %v4585
    %v4587 = vpop.f32.mrb[0].mxu0
    %v4588 = vpop.f32.mrb[0].mxu0
    %v4589 = vadd.f32 0.0, %v4588
    %v4590 = vpop.f32.mrb[0].mxu0
    %4591 = vmatprep.mubr.bf16.mxu0 0
    %4592 = vmatmul.mubr.bf16.gmra.mrb[0].mxu0 %v4256
    %v4593 = vpop.f32.mrb[0].mxu0
    %v4594 = vadd.f32 0.0, %v4593
    %v4595 = vpop.f32.mrb[0].mxu0
    %v4596 = vpop.f32.mrb[0].mxu0
    %v4597 = vadd.f32 0.0, %v4596
    %v4598 = vpop.f32.mrb[0].mxu0
    %4599 = vmatprep.mubr.bf16.mxu0 0
    %4600 = vmatmul.mubr.bf16.gmra.mrb[0].mxu0 %v4257
    %v4601 = vpop.f32.mrb[0].mxu0
    %v4602 = vadd.f32 0.0, %v4601
    %v4603 = vpop.f32.mrb[0].mxu0
    %v4604 = vpop.f32.mrb[0].mxu0
    %v4605 = vadd.f32 0.0, %v4604
    %v4606 = vpop.f32.mrb[0].mxu0
    %4607 = vmatprep.mubr.bf16.mxu0 0
    %4608 = vmatmul.mubr.bf16.gmra.mrb[0].mxu0 %v4258
    %v4609 = vpop.f32.mrb[0].mxu0
    %v4610 = vadd.f32 0.0, %v4609
    %v4611 = vpop.f32.mrb[0].mxu0
    %v4612 = vpop.f32.mrb[0].mxu0
    %v4613 = vadd.f32 0.0, %v4612
    %v4614 = vpop.f32.mrb[0].mxu0
    %4615 = vmatprep.mubr.bf16.mxu0 0
    %4616 = vmatmul.mubr.bf16.gmra.mrb[0].mxu0 %v4259
    %v4617 = vpop.f32.mrb[0].mxu0
    %v4618 = vadd.f32 0.0, %v4617
    %v4619 = vpop.f32.mrb[0].mxu0
    %v4620 = vpop.f32.mrb[0].mxu0
    %v4621 = vadd.f32 0.0, %v4620
    %v4622 = vpop.f32.mrb[0].mxu0
    %4623 = vmatprep.mubr.bf16.mxu0 0
    %4624 = vmatmul.mubr.bf16.gmra.mrb[0].mxu0 %v4260
    %v4625 = vpop.f32.mrb[0].mxu0
    %v4626 = vadd.f32 0.0, %v4625
    %v4627 = vpop.f32.mrb[0].mxu0
    %v4628 = vpop.f32.mrb[0].mxu0
    %v4629 = vadd.f32 0.0, %v4628
    %v4630 = vpop.f32.mrb[0].mxu0
    %4631 = vdwg.mxu0
    %4632 = vmatprep.subr.bf16.mxu0 0
    %4633 = vmatpush1.bf16.msra.mxu0 %v3959
    %4634 = vmatprep.subr.bf16.mxu0 0
    %4635 = vmatpush1.bf16.msra.mxu0 %v3960
    %4636 = vmatprep.subr.bf16.mxu0 0
    %4637 = vmatpush1.bf16.msra.mxu0 %v3961
    %4638 = vmatprep.subr.bf16.mxu0 0
    %4639 = vmatpush1.bf16.msra.mxu0 %v3962
    %4640 = vmatprep.subr.bf16.mxu0 0
    %4641 = vmatpush1.bf16.msra.mxu0 %v3963
    %4642 = vmatprep.subr.bf16.mxu0 0
    %4643 = vmatpush1.bf16.msra.mxu0 %v3964
    %4644 = vmatprep.subr.bf16.mxu0 0
    %4645 = vmatpush1.bf16.msra.mxu0 %v3965
    %4646 = vmatprep.subr.bf16.mxu0 0
    %4647 = vmatpush1.bf16.msra.mxu0 %v3966
    %4648 = vmatprep.subr.bf16.mxu0 0
    %4649 = vmatpush1.bf16.msra.mxu0 0
    %4650 = vmatprep.subr.bf16.mxu0 0
    %4651 = vmatpush1.bf16.msra.mxu0 0
    %4652 = vmatprep.subr.bf16.mxu0 0
    %4653 = vmatpush1.bf16.msra.mxu0 0
    %4654 = vmatprep.subr.bf16.mxu0 0
    %4655 = vmatpush1.bf16.msra.mxu0 0
    %4656 = vmatprep.subr.bf16.mxu0 0
    %4657 = vmatpush1.bf16.msra.mxu0 0
    %4658 = vmatprep.subr.bf16.mxu0 0
    %4659 = vmatpush1.bf16.msra.mxu0 0
    %4660 = vmatprep.subr.bf16.mxu0 0
    %4661 = vmatpush1.bf16.msra.mxu0 0
    %4662 = vmatprep.subr.bf16.mxu0 0
    %4663 = vmatpush1.bf16.msra.mxu0 0
    %4664 = vmatprep.mubr.bf16.mxu0 0
    %4665 = vmatmul.mubr.bf16.gmra.mrb[0].mxu0 %v4197
    %v4666 = vpop.f32.mrb[0].mxu0
    %v4667 = vadd.f32 %v4570, %v4666
    %v4668 = vpop.f32.mrb[0].mxu0
    %v4669 = vpop.f32.mrb[0].mxu0
    %v4670 = vadd.f32 %v4573, %v4669
    %v4671 = vpop.f32.mrb[0].mxu0
    %4672 = vmatprep.mubr.bf16.mxu0 0
    %4673 = vmatmul.mubr.bf16.gmra.mrb[0].mxu0 %v4198
    %v4674 = vpop.f32.mrb[0].mxu0
    %v4675 = vadd.f32 %v4578, %v4674
    %v4676 = vpop.f32.mrb[0].mxu0
    %v4677 = vpop.f32.mrb[0].mxu0
    %v4678 = vadd.f32 %v4581, %v4677
    %v4679 = vpop.f32.mrb[0].mxu0
    %4680 = vmatprep.mubr.bf16.mxu0 0
    %4681 = vmatmul.mubr.bf16.gmra.mrb[0].mxu0 %v4199
    %v4682 = vpop.f32.mrb[0].mxu0
    %v4683 = vadd.f32 %v4586, %v4682
    %v4684 = vpop.f32.mrb[0].mxu0
    %v4685 = vpop.f32.mrb[0].mxu0
    %v4686 = vadd.f32 %v4589, %v4685
    %v4687 = vpop.f32.mrb[0].mxu0
    %4688 = vmatprep.mubr.bf16.mxu0 0
    %4689 = vmatmul.mubr.bf16.gmra.mrb[0].mxu0 %v4200
    %v4690 = vpop.f32.mrb[0].mxu0
    %v4691 = vadd.f32 %v4594, %v4690
    %v4692 = vpop.f32.mrb[0].mxu0
    %v4693 = vpop.f32.mrb[0].mxu0
    %v4694 = vadd.f32 %v4597, %v4693
    %v4695 = vpop.f32.mrb[0].mxu0
    %4696 = vmatprep.mubr.bf16.mxu0 0
    %4697 = vmatmul.mubr.bf16.gmra.mrb[0].mxu0 %v4201
    %v4698 = vpop.f32.mrb[0].mxu0
    %v4699 = vadd.f32 %v4602, %v4698
    %v4700 = vpop.f32.mrb[0].mxu0
    %v4701 = vpop.f32.mrb[0].mxu0
    %v4702 = vadd.f32 %v4605, %v4701
    %v4703 = vpop.f32.mrb[0].mxu0
    %4704 = vmatprep.mubr.bf16.mxu0 0
    %4705 = vmatmul.mubr.bf16.gmra.mrb[0].mxu0 %v4202
    %v4706 = vpop.f32.mrb[0].mxu0
    %v4707 = vadd.f32 %v4610, %v4706
    %v4708 = vpop.f32.mrb[0].mxu0
    %v4709 = vpop.f32.mrb[0].mxu0
    %v4710 = vadd.f32 %v4613, %v4709
    %v4711 = vpop.f32.mrb[0].mxu0
    %4712 = vmatprep.mubr.bf16.mxu0 0
    %4713 = vmatmul.mubr.bf16.gmra.mrb[0].mxu0 %v4203
    %v4714 = vpop.f32.mrb[0].mxu0
    %v4715 = vadd.f32 %v4618, %v4714
    %v4716 = vpop.f32.mrb[0].mxu0
    %v4717 = vpop.f32.mrb[0].mxu0
    %v4718 = vadd.f32 %v4621, %v4717
    %v4719 = vpop.f32.mrb[0].mxu0
    %4720 = vmatprep.mubr.bf16.mxu0 0
    %4721 = vmatmul.mubr.bf16.gmra.mrb[0].mxu0 %v4204
    %v4722 = vpop.f32.mrb[0].mxu0
    %v4723 = vadd.f32 %v4626, %v4722
    %v4724 = vpop.f32.mrb[0].mxu0
    %v4725 = vpop.f32.mrb[0].mxu0
    %v4726 = vadd.f32 %v4629, %v4725
    %v4727 = vpop.f32.mrb[0].mxu0
    %4728 = vdwg.mxu0
    %v4729 = vadd.f32 %v4519, %v4667
    %v4730 = vadd.f32 %v4520, %v4670
    %v4731 = vadd.f32 %v4521, %v4675
    %v4732 = vadd.f32 %v4522, %v4678
    %v4733 = vadd.f32 %v4523, %v4683
    %v4734 = vadd.f32 %v4524, %v4686
    %v4735 = vadd.f32 %v4525, %v4691
    %v4736 = vadd.f32 %v4526, %v4694
    %v4737 = vadd.f32 %v4527, %v4699
    %v4738 = vadd.f32 %v4528, %v4702
    %v4739 = vadd.f32 %v4529, %v4707
    %v4740 = vadd.f32 %v4530, %v4710
    %v4741 = vadd.f32 %v4531, %v4715
    %v4742 = vadd.f32 %v4532, %v4718
    %v4743 = vadd.f32 %v4533, %v4723
    %v4744 = vadd.f32 %v4534, %v4726
    %4745 = vst [vmem:[#allocation3] sm:$0xff] %v4729
    %4746 = vst [vmem:[#allocation3 + $0x8] sm:$0xff] %v4730
    %4747 = vst [vmem:[#allocation3 + $0x10] sm:$0xff] %v4731
    %4748 = vst [vmem:[#allocation3 + $0x18] sm:$0xff] %v4732
    %4749 = vst [vmem:[#allocation3 + $0x20] sm:$0xff] %v4733
    %4750 = vst [vmem:[#allocation3 + $0x28] sm:$0xff] %v4734
    %4751 = vst [vmem:[#allocation3 + $0x30] sm:$0xff] %v4735
    %4752 = vst [vmem:[#allocation3 + $0x38] sm:$0xff] %v4736
    %4753 = vst [vmem:[#allocation3 + $0x40] sm:$0xff] %v4737
    %4754 = vst [vmem:[#allocation3 + $0x48] sm:$0xff] %v4738
    %4755 = vst [vmem:[#allocation3 + $0x50] sm:$0xff] %v4739
    %4756 = vst [vmem:[#allocation3 + $0x58] sm:$0xff] %v4740
    %4757 = vst [vmem:[#allocation3 + $0x60] sm:$0xff] %v4741
    %4758 = vst [vmem:[#allocation3 + $0x68] sm:$0xff] %v4742
    %4759 = vst [vmem:[#allocation3 + $0x70] sm:$0xff] %v4743
    %4760 = vst [vmem:[#allocation3 + $0x78] sm:$0xff] %v4744
    // Predicated region
    $region46: #{closed_call.8} parent=1 // pred_check
      %p4761 = pneg %p49
    $region47: #{closed_call.8} parent=1 // pred_check_branch
      %4763 = sbr.rel (%p4761) target = $region49
    $region48: #{closed_call.8} parent=1 // pred_region
      %v4764 = vld [vmem:[%s6] sm:$0xff]
      %v4765 = vld [vmem:[%s6 + $0x8] sm:$0xff]
      %v4766 = vld [vmem:[%s6 + $0x10] sm:$0xff]
      %v4767 = vld [vmem:[%s6 + $0x18] sm:$0xff]
      %v4768 = vld [vmem:[%s6 + $0x20] sm:$0xff]
      %v4769 = vld [vmem:[%s6 + $0x28] sm:$0xff]
      %v4770 = vld [vmem:[%s6 + $0x30] sm:$0xff]
      %v4771 = vld [vmem:[%s6 + $0x38] sm:$0xff]
      %v4772 = vld [vmem:[%s6 + $0x40] sm:$0xff]
      %v4773 = vld [vmem:[%s6 + $0x48] sm:$0xff]
      %v4774 = vld [vmem:[%s6 + $0x50] sm:$0xff]
      %v4775 = vld [vmem:[%s6 + $0x58] sm:$0xff]
      %v4776 = vld [vmem:[%s6 + $0x60] sm:$0xff]
      %v4777 = vld [vmem:[%s6 + $0x68] sm:$0xff]
      %v4778 = vld [vmem:[%s6 + $0x70] sm:$0xff]
      %v4779 = vld [vmem:[%s6 + $0x78] sm:$0xff]
      %v4780 = vld [vmem:[#allocation4] sm:$0xff]
      %v4781 = vld [vmem:[#allocation4 + $0x8] sm:$0xff]
      %v4782 = vld [vmem:[#allocation4 + $0x10] sm:$0xff]
      %v4783 = vld [vmem:[#allocation4 + $0x18] sm:$0xff]
      %v4784 = vld [vmem:[#allocation4 + $0x20] sm:$0xff]
      %v4785 = vld [vmem:[#allocation4 + $0x28] sm:$0xff]
      %v4786 = vld [vmem:[#allocation4 + $0x30] sm:$0xff]
      %v4787 = vld [vmem:[#allocation4 + $0x38] sm:$0xff]
      %v4788 = vld [vmem:[#allocation4 + $0x40] sm:$0xff]
      %v4789 = vld [vmem:[#allocation4 + $0x48] sm:$0xff]
      %v4790 = vld [vmem:[#allocation4 + $0x50] sm:$0xff]
      %v4791 = vld [vmem:[#allocation4 + $0x58] sm:$0xff]
      %v4792 = vld [vmem:[#allocation4 + $0x60] sm:$0xff]
      %v4793 = vld [vmem:[#allocation4 + $0x68] sm:$0xff]
      %v4794 = vld [vmem:[#allocation4 + $0x70] sm:$0xff]
      %v4795 = vld [vmem:[#allocation4 + $0x78] sm:$0xff]
      %v4796 = vld [vmem:[#allocation2] sm:$0xff]
      %v4797 = vld [vmem:[#allocation2 + $0x8] sm:$0xff]
      %v4798 = vld [vmem:[#allocation2 + $0x10] sm:$0xff]
      %v4799 = vld [vmem:[#allocation2 + $0x18] sm:$0xff]
      %v4800 = vld [vmem:[#allocation2 + $0x20] sm:$0xff]
      %v4801 = vld [vmem:[#allocation2 + $0x28] sm:$0xff]
      %v4802 = vld [vmem:[#allocation2 + $0x30] sm:$0xff]
      %v4803 = vld [vmem:[#allocation2 + $0x38] sm:$0xff]
      %v4804 = vld [vmem:[#allocation2 + $0x40] sm:$0xff]
      %v4805 = vld [vmem:[#allocation2 + $0x48] sm:$0xff]
      %v4806 = vld [vmem:[#allocation2 + $0x50] sm:$0xff]
      %v4807 = vld [vmem:[#allocation2 + $0x58] sm:$0xff]
      %v4808 = vld [vmem:[#allocation2 + $0x60] sm:$0xff]
      %v4809 = vld [vmem:[#allocation2 + $0x68] sm:$0xff]
      %v4810 = vld [vmem:[#allocation2 + $0x70] sm:$0xff]
      %v4811 = vld [vmem:[#allocation2 + $0x78] sm:$0xff]
      %v4812 = vld [vmem:[#allocation3] sm:$0xff]
      %v4813 = vld [vmem:[#allocation3 + $0x8] sm:$0xff]
      %v4814 = vld [vmem:[#allocation3 + $0x10] sm:$0xff]
      %v4815 = vld [vmem:[#allocation3 + $0x18] sm:$0xff]
      %v4816 = vld [vmem:[#allocation3 + $0x20] sm:$0xff]
      %v4817 = vld [vmem:[#allocation3 + $0x28] sm:$0xff]
      %v4818 = vld [vmem:[#allocation3 + $0x30] sm:$0xff]
      %v4819 = vld [vmem:[#allocation3 + $0x38] sm:$0xff]
      %v4820 = vld [vmem:[#allocation3 + $0x40] sm:$0xff]
      %v4821 = vld [vmem:[#allocation3 + $0x48] sm:$0xff]
      %v4822 = vld [vmem:[#allocation3 + $0x50] sm:$0xff]
      %v4823 = vld [vmem:[#allocation3 + $0x58] sm:$0xff]
      %v4824 = vld [vmem:[#allocation3 + $0x60] sm:$0xff]
      %v4825 = vld [vmem:[#allocation3 + $0x68] sm:$0xff]
      %v4826 = vld [vmem:[#allocation3 + $0x70] sm:$0xff]
      %v4827 = vld [vmem:[#allocation3 + $0x78] sm:$0xff]
      %v4828 = vmul.f32 %v4764, %v4796
      %v4829 = vmul.f32 %v4765, %v4797
      %v4830 = vmul.f32 %v4766, %v4798
      %v4831 = vmul.f32 %v4767, %v4799
      %v4832 = vmul.f32 %v4768, %v4800
      %v4833 = vmul.f32 %v4769, %v4801
      %v4834 = vmul.f32 %v4770, %v4802
      %v4835 = vmul.f32 %v4771, %v4803
      %v4836 = vmul.f32 %v4772, %v4804
      %v4837 = vmul.f32 %v4773, %v4805
      %v4838 = vmul.f32 %v4774, %v4806
      %v4839 = vmul.f32 %v4775, %v4807
      %v4840 = vmul.f32 %v4776, %v4808
      %v4841 = vmul.f32 %v4777, %v4809
      %v4842 = vmul.f32 %v4778, %v4810
      %v4843 = vmul.f32 %v4779, %v4811
      %v4844 = vmul.f32 %v4780, %v4812
      %v4845 = vmul.f32 %v4781, %v4813
      %v4846 = vmul.f32 %v4782, %v4814
      %v4847 = vmul.f32 %v4783, %v4815
      %v4848 = vmul.f32 %v4784, %v4816
      %v4849 = vmul.f32 %v4785, %v4817
      %v4850 = vmul.f32 %v4786, %v4818
      %v4851 = vmul.f32 %v4787, %v4819
      %v4852 = vmul.f32 %v4788, %v4820
      %v4853 = vmul.f32 %v4789, %v4821
      %v4854 = vmul.f32 %v4790, %v4822
      %v4855 = vmul.f32 %v4791, %v4823
      %v4856 = vmul.f32 %v4792, %v4824
      %v4857 = vmul.f32 %v4793, %v4825
      %v4858 = vmul.f32 %v4794, %v4826
      %v4859 = vmul.f32 %v4795, %v4827
      %v4860 = vadd.f32 %v4828, %v4844
      %v4861 = vadd.f32 %v4829, %v4845
      %v4862 = vadd.f32 %v4830, %v4846
      %v4863 = vadd.f32 %v4831, %v4847
      %v4864 = vadd.f32 %v4832, %v4848
      %v4865 = vadd.f32 %v4833, %v4849
      %v4866 = vadd.f32 %v4834, %v4850
      %v4867 = vadd.f32 %v4835, %v4851
      %v4868 = vadd.f32 %v4836, %v4852
      %v4869 = vadd.f32 %v4837, %v4853
      %v4870 = vadd.f32 %v4838, %v4854
      %v4871 = vadd.f32 %v4839, %v4855
      %v4872 = vadd.f32 %v4840, %v4856
      %v4873 = vadd.f32 %v4841, %v4857
      %v4874 = vadd.f32 %v4842, %v4858
      %v4875 = vadd.f32 %v4843, %v4859
      %v4876 = vmul.f32 %v4764, %v4812
      %v4877 = vmul.f32 %v4765, %v4813
      %v4878 = vmul.f32 %v4766, %v4814
      %v4879 = vmul.f32 %v4767, %v4815
      %v4880 = vmul.f32 %v4768, %v4816
      %v4881 = vmul.f32 %v4769, %v4817
      %v4882 = vmul.f32 %v4770, %v4818
      %v4883 = vmul.f32 %v4771, %v4819
      %v4884 = vmul.f32 %v4772, %v4820
      %v4885 = vmul.f32 %v4773, %v4821
      %v4886 = vmul.f32 %v4774, %v4822
      %v4887 = vmul.f32 %v4775, %v4823
      %v4888 = vmul.f32 %v4776, %v4824
      %v4889 = vmul.f32 %v4777, %v4825
      %v4890 = vmul.f32 %v4778, %v4826
      %v4891 = vmul.f32 %v4779, %v4827
      %v4892 = vmul.f32 %v4780, %v4796
      %v4893 = vmul.f32 %v4781, %v4797
      %v4894 = vmul.f32 %v4782, %v4798
      %v4895 = vmul.f32 %v4783, %v4799
      %v4896 = vmul.f32 %v4784, %v4800
      %v4897 = vmul.f32 %v4785, %v4801
      %v4898 = vmul.f32 %v4786, %v4802
      %v4899 = vmul.f32 %v4787, %v4803
      %v4900 = vmul.f32 %v4788, %v4804
      %v4901 = vmul.f32 %v4789, %v4805
      %v4902 = vmul.f32 %v4790, %v4806
      %v4903 = vmul.f32 %v4791, %v4807
      %v4904 = vmul.f32 %v4792, %v4808
      %v4905 = vmul.f32 %v4793, %v4809
      %v4906 = vmul.f32 %v4794, %v4810
      %v4907 = vmul.f32 %v4795, %v4811
      %v4908 = vsub.f32 %v4876, %v4892
      %v4909 = vsub.f32 %v4877, %v4893
      %v4910 = vsub.f32 %v4878, %v4894
      %v4911 = vsub.f32 %v4879, %v4895
      %v4912 = vsub.f32 %v4880, %v4896
      %v4913 = vsub.f32 %v4881, %v4897
      %v4914 = vsub.f32 %v4882, %v4898
      %v4915 = vsub.f32 %v4883, %v4899
      %v4916 = vsub.f32 %v4884, %v4900
      %v4917 = vsub.f32 %v4885, %v4901
      %v4918 = vsub.f32 %v4886, %v4902
      %v4919 = vsub.f32 %v4887, %v4903
      %v4920 = vsub.f32 %v4888, %v4904
      %v4921 = vsub.f32 %v4889, %v4905
      %v4922 = vsub.f32 %v4890, %v4906
      %v4923 = vsub.f32 %v4891, %v4907
      %v4924 = vld [vmem:[%s8] sm:$0xff]
      %v4925 = vld [vmem:[%s8 + $0x8] sm:$0xff]
      %4926 = vmatprep.subr.mxu0 0.0
      %4927 = vmatpush1.msra.mxu0 %v4860
      %4928 = vmatprep.subr.mxu0 0.0
      %4929 = vmatpush1.msra.mxu0 %v4861
      %4930 = vmatprep.subr.mxu0 0.0
      %4931 = vmatpush1.msra.mxu0 %v4862
      %4932 = vmatprep.subr.mxu0 0.0
      %4933 = vmatpush1.msra.mxu0 %v4863
      %4934 = vmatprep.subr.mxu0 0.0
      %4935 = vmatpush1.msra.mxu0 %v4864
      %4936 = vmatprep.subr.mxu0 0.0
      %4937 = vmatpush1.msra.mxu0 %v4865
      %4938 = vmatprep.subr.mxu0 0.0
      %4939 = vmatpush1.msra.mxu0 %v4866
      %4940 = vmatprep.subr.mxu0 0.0
      %4941 = vmatpush1.msra.mxu0 %v4867
      %4942 = vmatprep.subr.mxu0 0.0
      %4943 = vmatpush1.msra.mxu0 %v4868
      %4944 = vmatprep.subr.mxu0 0.0
      %4945 = vmatpush1.msra.mxu0 %v4869
      %4946 = vmatprep.subr.mxu0 0.0
      %4947 = vmatpush1.msra.mxu0 %v4870
      %4948 = vmatprep.subr.mxu0 0.0
      %4949 = vmatpush1.msra.mxu0 %v4871
      %4950 = vmatprep.subr.mxu0 0.0
      %4951 = vmatpush1.msra.mxu0 %v4872
      %4952 = vmatprep.subr.mxu0 0.0
      %4953 = vmatpush1.msra.mxu0 %v4873
      %4954 = vmatprep.subr.mxu0 0.0
      %4955 = vmatpush1.msra.mxu0 %v4874
      %4956 = vmatprep.subr.mxu0 0.0
      %4957 = vmatpush1.msra.mxu0 %v4875
      %4958 = vmatprep.subr.mxu0 0.0
      %4959 = vmatpush1.msra.mxu0 0.0
      %4960 = vmatprep.subr.mxu0 0.0
      %4961 = vmatpush1.msra.mxu0 0.0
      %4962 = vmatprep.subr.mxu0 0.0
      %4963 = vmatpush1.msra.mxu0 0.0
      %4964 = vmatprep.subr.mxu0 0.0
      %4965 = vmatpush1.msra.mxu0 0.0
      %4966 = vmatprep.subr.mxu0 0.0
      %4967 = vmatpush1.msra.mxu0 0.0
      %4968 = vmatprep.subr.mxu0 0.0
      %4969 = vmatpush1.msra.mxu0 0.0
      %4970 = vmatprep.subr.mxu0 0.0
      %4971 = vmatpush1.msra.mxu0 0.0
      %4972 = vmatprep.subr.mxu0 0.0
      %4973 = vmatpush1.msra.mxu0 0.0
      %4974 = vmatprep.subr.mxu0 0.0
      %4975 = vmatpush1.msra.mxu0 0.0
      %4976 = vmatprep.subr.mxu0 0.0
      %4977 = vmatpush1.msra.mxu0 0.0
      %4978 = vmatprep.subr.mxu0 0.0
      %4979 = vmatpush1.msra.mxu0 0.0
      %4980 = vmatprep.subr.mxu0 0.0
      %4981 = vmatpush1.msra.mxu0 0.0
      %4982 = vmatprep.subr.mxu0 0.0
      %4983 = vmatpush1.msra.mxu0 0.0
      %4984 = vmatprep.subr.mxu0 0.0
      %4985 = vmatpush1.msra.mxu0 0.0
      %4986 = vmatprep.subr.mxu0 0.0
      %4987 = vmatpush1.msra.mxu0 0.0
      %4988 = vmatprep.subr.mxu0 0.0
      %4989 = vmatpush1.msra.mxu0 0.0
      %4990 = vmatprep.mubr.f32.mxu0 0.0
      %4991 = vmatmul.mubr.f32.gmra.mrb[0].mxu0 %v4924
      %v4992 = vpop.f32.mrb[0].mxu0
      %v4993 = vadd.f32 0.0, %v4992
      %v4994 = vpop.f32.mrb[0].mxu0
      %4995 = vmatprep.mubr.f32.mxu0 0.0
      %4996 = vmatmul.mubr.f32.gmra.mrb[0].mxu0 %v4925
      %v4997 = vpop.f32.mrb[0].mxu0
      %v4998 = vadd.f32 0.0, %v4997
      %v4999 = vpop.f32.mrb[0].mxu0
      %5000 = vdwg.mxu0
      %v5001 = vmul.f32 %v4993, 0.0625
      %v5002 = vmul.f32 %v4998, 0.0625
      %5003 = vst [vmem:[%s9] sm:$0xff] %v5001
      %5004 = vst [vmem:[%s9 + $0x8] sm:$0xff] %v5002
      %5005 = vmatprep.subr.mxu0 0.0
      %5006 = vmatpush1.msra.mxu0 %v4908
      %5007 = vmatprep.subr.mxu0 0.0
      %5008 = vmatpush1.msra.mxu0 %v4909
      %5009 = vmatprep.subr.mxu0 0.0
      %5010 = vmatpush1.msra.mxu0 %v4910
      %5011 = vmatprep.subr.mxu0 0.0
      %5012 = vmatpush1.msra.mxu0 %v4911
      %5013 = vmatprep.subr.mxu0 0.0
      %5014 = vmatpush1.msra.mxu0 %v4912
      %5015 = vmatprep.subr.mxu0 0.0
      %5016 = vmatpush1.msra.mxu0 %v4913
      %5017 = vmatprep.subr.mxu0 0.0
      %5018 = vmatpush1.msra.mxu0 %v4914
      %5019 = vmatprep.subr.mxu0 0.0
      %5020 = vmatpush1.msra.mxu0 %v4915
      %5021 = vmatprep.subr.mxu0 0.0
      %5022 = vmatpush1.msra.mxu0 %v4916
      %5023 = vmatprep.subr.mxu0 0.0
      %5024 = vmatpush1.msra.mxu0 %v4917
      %5025 = vmatprep.subr.mxu0 0.0
      %5026 = vmatpush1.msra.mxu0 %v4918
      %5027 = vmatprep.subr.mxu0 0.0
      %5028 = vmatpush1.msra.mxu0 %v4919
      %5029 = vmatprep.subr.mxu0 0.0
      %5030 = vmatpush1.msra.mxu0 %v4920
      %5031 = vmatprep.subr.mxu0 0.0
      %5032 = vmatpush1.msra.mxu0 %v4921
      %5033 = vmatprep.subr.mxu0 0.0
      %5034 = vmatpush1.msra.mxu0 %v4922
      %5035 = vmatprep.subr.mxu0 0.0
      %5036 = vmatpush1.msra.mxu0 %v4923
      %5037 = vmatprep.subr.mxu0 0.0
      %5038 = vmatpush1.msra.mxu0 0.0
      %5039 = vmatprep.subr.mxu0 0.0
      %5040 = vmatpush1.msra.mxu0 0.0
      %5041 = vmatprep.subr.mxu0 0.0
      %5042 = vmatpush1.msra.mxu0 0.0
      %5043 = vmatprep.subr.mxu0 0.0
      %5044 = vmatpush1.msra.mxu0 0.0
      %5045 = vmatprep.subr.mxu0 0.0
      %5046 = vmatpush1.msra.mxu0 0.0
      %5047 = vmatprep.subr.mxu0 0.0
      %5048 = vmatpush1.msra.mxu0 0.0
      %5049 = vmatprep.subr.mxu0 0.0
      %5050 = vmatpush1.msra.mxu0 0.0
      %5051 = vmatprep.subr.mxu0 0.0
      %5052 = vmatpush1.msra.mxu0 0.0
      %5053 = vmatprep.subr.mxu0 0.0
      %5054 = vmatpush1.msra.mxu0 0.0
      %5055 = vmatprep.subr.mxu0 0.0
      %5056 = vmatpush1.msra.mxu0 0.0
      %5057 = vmatprep.subr.mxu0 0.0
      %5058 = vmatpush1.msra.mxu0 0.0
      %5059 = vmatprep.subr.mxu0 0.0
      %5060 = vmatpush1.msra.mxu0 0.0
      %5061 = vmatprep.subr.mxu0 0.0
      %5062 = vmatpush1.msra.mxu0 0.0
      %5063 = vmatprep.subr.mxu0 0.0
      %5064 = vmatpush1.msra.mxu0 0.0
      %5065 = vmatprep.subr.mxu0 0.0
      %5066 = vmatpush1.msra.mxu0 0.0
      %5067 = vmatprep.subr.mxu0 0.0
      %5068 = vmatpush1.msra.mxu0 0.0
      %5069 = vmatprep.mubr.f32.mxu0 0.0
      %5070 = vmatmul.mubr.f32.gmra.mrb[0].mxu0 %v4924
      %v5071 = vpop.f32.mrb[0].mxu0
      %v5072 = vadd.f32 0.0, %v5071
      %v5073 = vpop.f32.mrb[0].mxu0
      %5074 = vmatprep.mubr.f32.mxu0 0.0
      %5075 = vmatmul.mubr.f32.gmra.mrb[0].mxu0 %v4925
      %v5076 = vpop.f32.mrb[0].mxu0
      %v5077 = vadd.f32 0.0, %v5076
      %v5078 = vpop.f32.mrb[0].mxu0
      %5079 = vdwg.mxu0
      %v5080 = vmul.f32 %v5072, 0.0625
      %v5081 = vmul.f32 %v5077, 0.0625
      %5082 = vst [vmem:[%s10] sm:$0xff] %v5080
      %5083 = vst [vmem:[%s10 + $0x8] sm:$0xff] %v5081
    $region49: #{closed_call.8} parent=1 // pred_fallthru
      _
    // Predicated region
    $region50: #{closed_call.8} parent=1 // pred_check
      _
    $region51: #{closed_call.8} parent=1 // pred_check_branch
      %5085 = sbr.rel (0) target = $region53
    $region52: #{closed_call.8} parent=1 // pred_region
      _
    $region53: #{closed_call.8} parent=1 // pred_fallthru
      _
    // Predicated region
    $region54: #{closed_call.8} parent=1 // pred_check
      _
    $region55: #{closed_call.8} parent=1 // pred_check_branch
      %5087 = sbr.rel (0) target = $region57
    $region56: #{closed_call.8} parent=1 // pred_region
      _
    $region57: #{closed_call.8} parent=1 // pred_fallthru
      _
    // Predicated region
    $region58: #{closed_call.8} parent=1 // pred_check
      _
    $region59: #{closed_call.8} parent=1 // pred_check_branch
      %5089 = sbr.rel (0) target = $region61
    $region60: #{closed_call.8} parent=1 // pred_region
      _
    $region61: #{closed_call.8} parent=1 // pred_fallthru
      _
    // Predicated region
    $region62: #{closed_call.8} parent=1 // pred_check
      _
    $region63: #{closed_call.8} parent=1 // pred_check_branch
      %5091 = sbr.rel (0) target = $region65
    $region64: #{closed_call.8} parent=1 // pred_region
      _
    $region65: #{closed_call.8} parent=1 // pred_fallthru
      _
    %5092 = vsyncpa [#allocation5], 1

</llo_original>
